<compile_context>
chip_gen: v6e
topology: v6e:2x2x1
jax: 0.10.0
libtpu: 0.0.40
codegen_flags: <defaults>
</compile_context>

<pallas_src>
import jax
import jax.numpy as jnp
from jax import lax
from jax.experimental import pallas as pl
from jax.experimental.pallas import tpu as pltpu

N_IMG = 16            # images per bag (view(-1, 32*4*196) groups 16 MNIST images)
H = W = 28            # spatial size implied by the Linear input dim
C1, C2 = 16, 32
K = 5
PAD = 2
FEAT = 32 * 4 * 196   # 25088 = 16 images * 32ch * 7 * 7


# ----------------------------------------------------------------------------
# Fused kernel: conv1(1->16,5x5,pad2)+ReLU+pool2, conv2(16->32)+ReLU+pool2, Linear
# ----------------------------------------------------------------------------
def _fused_kernel(xq_ref, w1b_ref, b1_ref, w2_ref, b2_ref, wl_ref, bl_ref,
                  o_ref, e2_ref, o2_ref, patch_ref, lin0_ref, lin1_ref):
    # xq_ref  : (1, 32, 4, 128) f32  padded conv1 input for this bag, phase-split
    #                                by (w_pad mod 4): xq[r, s, t*16+n] = xpad[r, 4t+s, n]
    # w1b_ref : (25, 16, 128)  f32   conv1 weights lane-broadcast: w1b[kh*5+kw, c, :]
    # b1_ref  : (16, 1)        f32
    # w2_ref  : (32, 400)      bf16  w2[c_out, (kh*5+kw)*16 + c_in]
    # b2_ref  : (32, 1)        f32
    # wl_ref  : (14, 32, 112)  f32   Linear weights permuted: wl[k*7+h, c, w*16+n]
    # bl_ref  : (1, 2)         f32
    # o_ref   : (1, 1, 2)      f32   logits for this bag
    # e2_ref/o2_ref : (18, 16, 144) bf16  zero-padded conv1 output, even / odd
    #                 pooled-width parity; lane = j*16 + n, j=0 / j=8 are pads
    # patch_ref     : (400, 512) bf16  conv2 im2col RHS (4 combos x 128 lanes)
    # lin0_ref/lin1_ref : (32, 112) f32 per-class Linear partial products

    e2_ref[...] = jnp.zeros_like(e2_ref)
    o2_ref[...] = jnp.zeros_like(o2_ref)

    # ---- conv1 + ReLU + 2x2 max-pool: one pooled row per iteration -----------
    # Input-row-outer structure: for each of the 6 padded input rows feeding
    # this pooled row, build the 8 sublane-broadcast width-windows once and
    # accumulate into all 8 (conv-row rr, width-phase q) accumulators.
    def conv1_row(i, carry):
        acc = {}
        for d in range(6):                                   # padded input row 2i+d
            row = xq_ref[0, 2 * i + d]                       # (4, 128) f32
            # piece[j] covers tap offset j = q + kw  (j = 0..7): a (16,112)
            # sublane-broadcast of xpad[2i+d, 4*(t0+m)+s, n], s=j%4, t0=j//4.
            piece = [
                jnp.broadcast_to(
                    row[j % 4:j % 4 + 1, (j // 4) * 16:(j // 4) * 16 + 112],
                    (C1, 112))
                for j in range(8)
            ]
            for rr in range(2):                              # conv rows 2i, 2i+1
                kh = d - rr
                if 0 <= kh < K:
                    # weights for this (input row, conv row): 5 lane-broadcast taps
                    wrow = [w1b_ref[kh * K + kw, :, 0:112] for kw in range(K)]
                    for q in range(4):                       # output width phase
                        a = acc.get((rr, q))
                        for kw in range(K):
                            p = wrow[kw] * piece[q + kw]     # plain vmul on (16,112)
                            a = p if a is None else a + p
                        acc[(rr, q)] = a
        # pool: rows {2i, 2i+1}; width phases {0,1} -> even pooled col,
        # {2,3} -> odd.  relu(max(.) + b) == max(relu(. + b)).
        b1 = b1_ref[...]
        h1e = jnp.maximum(jnp.maximum(acc[(0, 0)], acc[(1, 0)]),
                          jnp.maximum(acc[(0, 1)], acc[(1, 1)]))
        h1o = jnp.maximum(jnp.maximum(acc[(0, 2)], acc[(1, 2)]),
                          jnp.maximum(acc[(0, 3)], acc[(1, 3)]))
        h1e = jnp.maximum(h1e + b1, 0.0).astype(jnp.bfloat16)
        h1o = jnp.maximum(h1o + b1, 0.0).astype(jnp.bfloat16)
        e2_ref[2 + i, :, 16:128] = h1e
        o2_ref[2 + i, :, 16:128] = h1o
        return carry

    lax.fori_loop(0, 14, conv1_row, 0)

    # ---- conv2 + ReLU + 2x2 max-pool + Linear accumulation --------------------
    # w2/b2 are only loaded now (after conv1) to keep conv1's vreg pressure low.
    w2 = w2_ref[...]                                         # (32, 400) bf16
    b2 = b2_ref[...]                                         # (32, 1)  f32
    lin0_ref[...] = jnp.zeros_like(lin0_ref)                 # tiny (8 vst) init
    lin1_ref[...] = jnp.zeros_like(lin1_ref)

    def conv2_row(i, carry):
        # Build the (400, 512) im2col RHS: combos (rr, p2) occupy 128-lane
        # aligned slices; lanes 112:128 of each slice are unused pad columns
        # (never read back, so left uninitialized).
        for d in range(6):                                   # padded pooled row 2i+d
            erow = e2_ref[2 * i + d]                         # (16, 144) bf16
            orow = o2_ref[2 * i + d]
            win = [[erow[:, t0 * 16:t0 * 16 + 112] for t0 in range(3)],
                   [orow[:, t0 * 16:t0 * 16 + 112] for t0 in range(3)]]
            for rr in range(2):                              # conv rows 2i, 2i+1
                kh = d - rr
                if 0 <= kh < K:
                    for p2 in range(2):                      # output width phase
                        c0 = (rr * 2 + p2) * 128
                        for kw in range(K):
                            s, t0 = (p2 + kw) % 2, (p2 + kw) // 2
                            r0 = (kh * K + kw) * C1
                            patch_ref[r0:r0 + C1, c0:c0 + 112] = win[s][t0]
        # One deep MXU matmul per pooled row: (32,400) @ (400,512), f32 acc.
        r = jnp.dot(w2, patch_ref[...], preferred_element_type=jnp.float32)
        pooled = jnp.maximum(jnp.maximum(r[:, 0:112], r[:, 128:240]),
                             jnp.maximum(r[:, 256:368], r[:, 384:496]))
        h2row = jnp.maximum(pooled + b2, 0.0)                # (32, 112) f32
        lin0_ref[...] = lin0_ref[...] + wl_ref[i] * h2row
        lin1_ref[...] = lin1_ref[...] + wl_ref[7 + i] * h2row
        return carry

    lax.fori_loop(0, 7, conv2_row, 0)

    # ---- Linear finalization ---------------------------------------------------
    s0 = jnp.sum(jnp.sum(lin0_ref[...], axis=1, keepdims=True), axis=0, keepdims=True)
    s1 = jnp.sum(jnp.sum(lin1_ref[...], axis=1, keepdims=True), axis=0, keepdims=True)
    o_ref[0, 0:1, 0:1] = s0 + bl_ref[0:1, 0:1]
    o_ref[0, 0:1, 1:2] = s1 + bl_ref[0:1, 1:2]


# ----------------------------------------------------------------------------
# Wrapper: tiny layout prep in plain JAX, then one bag-parallel pallas_call
# ----------------------------------------------------------------------------
def _prep_inputs(x_nchw, params):
    n_total = x_nchw.shape[0]
    bags = n_total // N_IMG
    # conv1 input per bag: pad (H, W) by 2, images -> lanes, split width by
    # (w_pad mod 4): xq[b, r, s, t*16 + n] = xpad[b, r, 4*t + s, n]
    xt = jnp.transpose(x_nchw[:, 0].reshape(bags, N_IMG, H, W), (0, 2, 3, 1))
    xp = jnp.pad(xt, ((0, 0), (PAD, PAD), (PAD, PAD), (0, 0)))    # (B, 32, 32, 16)
    xq = (xp.reshape(bags, H + 4, 8, 4, N_IMG)
            .transpose(0, 1, 3, 2, 4)
            .reshape(bags, H + 4, 4, 8 * N_IMG))

    # conv1 weights pre-broadcast over lanes: (25, 16, 128), so in-kernel taps
    # are plain vmul+vadd (no per-tap broadcasts).
    w1k = params["w1"].reshape(C1, K * K)                          # (16, 25)
    w1b = jnp.broadcast_to(jnp.transpose(w1k)[:, :, None],
                           (K * K, C1, 128)).astype(jnp.float32)
    b1c = params["b1"].reshape(C1, 1)
    # conv2 weights [c_out, kh, kw, c_in] -> (32, 400), bf16 for the MXU.
    w2m = jnp.transpose(params["w2"], (0, 2, 3, 1)).reshape(C2, K * K * C1)
    w2m = w2m.astype(jnp.bfloat16)
    b2c = params["b2"].reshape(C2, 1)
    # Linear weights permuted to the kernel's h2 layout: wl[k*7+h, c, w*16+n]
    # (matches x.view(-1, 25088) ordering = (n, c, h, w)).  Kept f32.
    wlr = params["wl"].reshape(2, N_IMG, C2, 7, 7)
    wlr = jnp.transpose(wlr, (0, 3, 2, 4, 1)).reshape(14, C2, 7 * N_IMG)
    blr = params["bl"].reshape(1, 2)
    return xq, w1b, b1c, w2m, b2c, wlr, blr


def cnn_forward(x_nchw, params):
    xq, w1b, b1c, w2m, b2c, wlr, blr = _prep_inputs(x_nchw, params)
    bags = xq.shape[0]
    out = pl.pallas_call(
        _fused_kernel,
        out_shape=jax.ShapeDtypeStruct((bags, 1, 2), jnp.float32),
        grid=(bags,),
        in_specs=[
            pl.BlockSpec((1, H + 4, 4, 128), lambda b: (b, 0, 0, 0)),
            pl.BlockSpec((K * K, C1, 128), lambda b: (0, 0, 0)),
            pl.BlockSpec((C1, 1), lambda b: (0, 0)),
            pl.BlockSpec((C2, K * K * C1), lambda b: (0, 0)),
            pl.BlockSpec((C2, 1), lambda b: (0, 0)),
            pl.BlockSpec((14, C2, 7 * N_IMG), lambda b: (0, 0, 0)),
            pl.BlockSpec((1, 2), lambda b: (0, 0)),
        ],
        out_specs=pl.BlockSpec((1, 1, 2), lambda b: (b, 0, 0)),
        scratch_shapes=[
            pltpu.VMEM((18, C1, 9 * N_IMG), jnp.bfloat16),   # conv1 out (even pooled cols)
            pltpu.VMEM((18, C1, 9 * N_IMG), jnp.bfloat16),   # conv1 out (odd pooled cols)
            pltpu.VMEM((K * K * C1, 4 * 128), jnp.bfloat16), # conv2 im2col RHS (400, 512)
            pltpu.VMEM((C2, 7 * N_IMG), jnp.float32),        # Linear partials, class 0
            pltpu.VMEM((C2, 7 * N_IMG), jnp.float32),        # Linear partials, class 1
        ],
        compiler_params=pltpu.CompilerParams(
            dimension_semantics=("parallel",)),
    )(xq, w1b, b1c, w2m, b2c, wlr, blr)
    return out.reshape(bags, 2)


# ----------------------------------------------------------------------------
# Pure-JAX reference (mirrors the PyTorch forward) for a correctness check
# ----------------------------------------------------------------------------
def cnn_reference(x, params):
    dn = ("NCHW", "OIHW", "NCHW")
    y = lax.conv_general_dilated(x, params["w1"], (1, 1), ((PAD, PAD), (PAD, PAD)),
                                 dimension_numbers=dn, precision=lax.Precision.HIGHEST)
    y = jnp.maximum(y + params["b1"][None, :, None, None], 0.0)
    y = lax.reduce_window(y, -jnp.inf, lax.max, (1, 1, 2, 2), (1, 1, 2, 2), "VALID")
    y = lax.conv_general_dilated(y, params["w2"], (1, 1), ((PAD, PAD), (PAD, PAD)),
                                 dimension_numbers=dn, precision=lax.Precision.HIGHEST)
    y = jnp.maximum(y + params["b2"][None, :, None, None], 0.0)
    y = lax.reduce_window(y, -jnp.inf, lax.max, (1, 1, 2, 2), (1, 1, 2, 2), "VALID")
    y = y.reshape(-1, FEAT)
    return jnp.dot(y, params["wl"].T, precision=lax.Precision.HIGHEST) + params["bl"]


if __name__ == "__main__":
    key = jax.random.PRNGKey(0)
    ks = jax.random.split(key, 7)
    # Deterministic synthetic parameters at the PyTorch shapes.
    params = dict(
        w1=0.2 * jax.random.normal(ks[0], (C1, 1, K, K), jnp.float32),
        b1=0.1 * jax.random.normal(ks[1], (C1,), jnp.float32),
        w2=0.1 * jax.random.normal(ks[2], (C2, C1, K, K), jnp.float32),
        b2=0.1 * jax.random.normal(ks[3], (C2,), jnp.float32),
        wl=0.02 * jax.random.normal(ks[4], (2, FEAT), jnp.float32),
        bl=0.1 * jax.random.normal(ks[5], (2,), jnp.float32),
    )
    BAGS = 2                                                  # exercise the bag grid
    x = jax.random.normal(ks[6], (BAGS * N_IMG, 1, H, W), jnp.float32)

    out = jax.block_until_ready(jax.jit(cnn_forward)(x, params))
    ref = jax.block_until_ready(cnn_reference(x, params))

    assert out.shape == (BAGS, 2)
    # Tolerance accounts for the bf16 h1 / w2 on the conv2 MXU path (f32 accumulation).
    assert jnp.allclose(out, ref, rtol=5e-2, atol=7e-2), (
        f"mismatch vs reference:\n{out}\n{ref}")
    print("KERNEL_OK")
</pallas_src>

<mosaic_0001>
module attributes {stable_mosaic.version = 11 : i64} {
  func.func @_fused_kernel(%arg0: i32, %arg1: memref<1x32x4x128xf32, #tpu.memory_space<vmem>>, %arg2: memref<25x16x128xf32, #tpu.memory_space<vmem>>, %arg3: memref<16x1xf32, #tpu.memory_space<vmem>>, %arg4: memref<32x400xbf16, #tpu.memory_space<vmem>>, %arg5: memref<32x1xf32, #tpu.memory_space<vmem>>, %arg6: memref<14x32x112xf32, #tpu.memory_space<vmem>>, %arg7: memref<1x2xf32, #tpu.memory_space<vmem>>, %arg8: memref<1x1x2xf32, #tpu.memory_space<vmem>>, %arg9: memref<18x16x144xbf16, #tpu.memory_space<vmem>>, %arg10: memref<18x16x144xbf16, #tpu.memory_space<vmem>>, %arg11: memref<400x512xbf16, #tpu.memory_space<vmem>>, %arg12: memref<32x112xf32, #tpu.memory_space<vmem>>, %arg13: memref<32x112xf32, #tpu.memory_space<vmem>>) attributes {dimension_semantics = [#tpu.dimension_semantics<parallel>], iteration_bounds = array<i64: 2>, scalar_prefetch = 0 : i64, scratch_operands = 5 : i64, tpu.core_type = #tpu.core_type<tc>, window_params = [{transform_indices = @transform_0, window_bounds = array<i64: 1, 32, 4, 128>}, {pipeline_mode = #tpu.pipeline_mode<synchronous>, transform_indices = @transform_1, window_bounds = array<i64: 25, 16, 128>}, {pipeline_mode = #tpu.pipeline_mode<synchronous>, transform_indices = @transform_2, window_bounds = array<i64: 16, 1>}, {pipeline_mode = #tpu.pipeline_mode<synchronous>, transform_indices = @transform_3, window_bounds = array<i64: 32, 400>}, {pipeline_mode = #tpu.pipeline_mode<synchronous>, transform_indices = @transform_4, window_bounds = array<i64: 32, 1>}, {pipeline_mode = #tpu.pipeline_mode<synchronous>, transform_indices = @transform_5, window_bounds = array<i64: 14, 32, 112>}, {pipeline_mode = #tpu.pipeline_mode<synchronous>, transform_indices = @transform_6, window_bounds = array<i64: 1, 2>}, {transform_indices = @transform_7, window_bounds = array<i64: 1, 1, 2>}]} {
    %cst = arith.constant 0.000000e+00 : bf16
    %0 = vector.broadcast %cst : bf16 to vector<18x16x144xbf16>
    %c0 = arith.constant 0 : index
    %c0_0 = arith.constant 0 : index
    %c0_1 = arith.constant 0 : index
    %1 = vector.load %arg9[%c0, %c0_0, %c0_1] : memref<18x16x144xbf16, #tpu.memory_space<vmem>>, vector<18x16x144xbf16>
    tpu.vector_store %arg9[%c0, %c0_0, %c0_1], %0 {strides = array<i32>} : memref<18x16x144xbf16, #tpu.memory_space<vmem>>, vector<18x16x144xbf16>,
    %cst_2 = arith.constant 0.000000e+00 : bf16
    %2 = vector.broadcast %cst_2 : bf16 to vector<18x16x144xbf16>
    %c0_3 = arith.constant 0 : index
    %c0_4 = arith.constant 0 : index
    %c0_5 = arith.constant 0 : index
    %3 = vector.load %arg10[%c0_3, %c0_4, %c0_5] : memref<18x16x144xbf16, #tpu.memory_space<vmem>>, vector<18x16x144xbf16>
    tpu.vector_store %arg10[%c0_3, %c0_4, %c0_5], %2 {strides = array<i32>} : memref<18x16x144xbf16, #tpu.memory_space<vmem>>, vector<18x16x144xbf16>,
    %c0_i32 = arith.constant 0 : i32
    %c14_i32 = arith.constant 14 : i32
    %4 = arith.addi %c0_i32, %c14_i32 : i32
    %c1_i32 = arith.constant 1 : i32
    scf.for %arg14 = %c0_i32 to %4 step %c1_i32  : i32 {
      %c2_i32 = arith.constant 2 : i32
      %32 = arith.muli %c2_i32, %arg14 : i32
      %c0_i32_37 = arith.constant 0 : i32
      %33 = arith.addi %32, %c0_i32_37 : i32
      %c0_38 = arith.constant 0 : index
      %34 = arith.index_cast %33 : i32 to index
      %c0_39 = arith.constant 0 : index
      %c0_40 = arith.constant 0 : index
      %35 = vector.load %arg1[%c0_38, %34, %c0_39, %c0_40] : memref<1x32x4x128xf32, #tpu.memory_space<vmem>>, vector<1x1x4x128xf32>
      %36 = vector.shape_cast %35 : vector<1x1x4x128xf32> to vector<4x128xf32>
      %37 = vector.extract_strided_slice %36 {offsets = [0, 0], sizes = [1, 112], strides = [1, 1]} : vector<4x128xf32> to vector<1x112xf32>
      %38 = vector.shape_cast %37 : vector<1x112xf32> to vector<1x112xf32>
      %39 = vector.broadcast %38 : vector<1x112xf32> to vector<16x112xf32>
      %40 = vector.extract_strided_slice %36 {offsets = [1, 0], sizes = [1, 112], strides = [1, 1]} : vector<4x128xf32> to vector<1x112xf32>
      %41 = vector.shape_cast %40 : vector<1x112xf32> to vector<1x112xf32>
      %42 = vector.broadcast %41 : vector<1x112xf32> to vector<16x112xf32>
      %43 = vector.extract_strided_slice %36 {offsets = [2, 0], sizes = [1, 112], strides = [1, 1]} : vector<4x128xf32> to vector<1x112xf32>
      %44 = vector.shape_cast %43 : vector<1x112xf32> to vector<1x112xf32>
      %45 = vector.broadcast %44 : vector<1x112xf32> to vector<16x112xf32>
      %46 = vector.extract_strided_slice %36 {offsets = [3, 0], sizes = [1, 112], strides = [1, 1]} : vector<4x128xf32> to vector<1x112xf32>
      %47 = vector.shape_cast %46 : vector<1x112xf32> to vector<1x112xf32>
      %48 = vector.broadcast %47 : vector<1x112xf32> to vector<16x112xf32>
      %49 = vector.extract_strided_slice %36 {offsets = [0, 16], sizes = [1, 112], strides = [1, 1]} : vector<4x128xf32> to vector<1x112xf32>
      %50 = vector.shape_cast %49 : vector<1x112xf32> to vector<1x112xf32>
      %51 = vector.broadcast %50 : vector<1x112xf32> to vector<16x112xf32>
      %52 = vector.extract_strided_slice %36 {offsets = [1, 16], sizes = [1, 112], strides = [1, 1]} : vector<4x128xf32> to vector<1x112xf32>
      %53 = vector.shape_cast %52 : vector<1x112xf32> to vector<1x112xf32>
      %54 = vector.broadcast %53 : vector<1x112xf32> to vector<16x112xf32>
      %55 = vector.extract_strided_slice %36 {offsets = [2, 16], sizes = [1, 112], strides = [1, 1]} : vector<4x128xf32> to vector<1x112xf32>
      %56 = vector.shape_cast %55 : vector<1x112xf32> to vector<1x112xf32>
      %57 = vector.broadcast %56 : vector<1x112xf32> to vector<16x112xf32>
      %58 = vector.extract_strided_slice %36 {offsets = [3, 16], sizes = [1, 112], strides = [1, 1]} : vector<4x128xf32> to vector<1x112xf32>
      %59 = vector.shape_cast %58 : vector<1x112xf32> to vector<1x112xf32>
      %60 = vector.broadcast %59 : vector<1x112xf32> to vector<16x112xf32>
      %c0_41 = arith.constant 0 : index
      %c0_42 = arith.constant 0 : index
      %c0_43 = arith.constant 0 : index
      %61 = vector.load %arg2[%c0_41, %c0_42, %c0_43] : memref<25x16x128xf32, #tpu.memory_space<vmem>>, vector<1x16x112xf32>
      %62 = vector.shape_cast %61 : vector<1x16x112xf32> to vector<16x112xf32>
      %c1_44 = arith.constant 1 : index
      %c0_45 = arith.constant 0 : index
      %c0_46 = arith.constant 0 : index
      %63 = vector.load %arg2[%c1_44, %c0_45, %c0_46] : memref<25x16x128xf32, #tpu.memory_space<vmem>>, vector<1x16x112xf32>
      %64 = vector.shape_cast %63 : vector<1x16x112xf32> to vector<16x112xf32>
      %c2 = arith.constant 2 : index
      %c0_47 = arith.constant 0 : index
      %c0_48 = arith.constant 0 : index
      %65 = vector.load %arg2[%c2, %c0_47, %c0_48] : memref<25x16x128xf32, #tpu.memory_space<vmem>>, vector<1x16x112xf32>
      %66 = vector.shape_cast %65 : vector<1x16x112xf32> to vector<16x112xf32>
      %c3 = arith.constant 3 : index
      %c0_49 = arith.constant 0 : index
      %c0_50 = arith.constant 0 : index
      %67 = vector.load %arg2[%c3, %c0_49, %c0_50] : memref<25x16x128xf32, #tpu.memory_space<vmem>>, vector<1x16x112xf32>
      %68 = vector.shape_cast %67 : vector<1x16x112xf32> to vector<16x112xf32>
      %c4 = arith.constant 4 : index
      %c0_51 = arith.constant 0 : index
      %c0_52 = arith.constant 0 : index
      %69 = vector.load %arg2[%c4, %c0_51, %c0_52] : memref<25x16x128xf32, #tpu.memory_space<vmem>>, vector<1x16x112xf32>
      %70 = vector.shape_cast %69 : vector<1x16x112xf32> to vector<16x112xf32>
      %71 = arith.mulf %62, %39 : vector<16x112xf32>
      %72 = arith.mulf %64, %42 : vector<16x112xf32>
      %73 = arith.addf %71, %72 : vector<16x112xf32>
      %74 = arith.mulf %66, %45 : vector<16x112xf32>
      %75 = arith.addf %73, %74 : vector<16x112xf32>
      %76 = arith.mulf %68, %48 : vector<16x112xf32>
      %77 = arith.addf %75, %76 : vector<16x112xf32>
      %78 = arith.mulf %70, %51 : vector<16x112xf32>
      %79 = arith.addf %77, %78 : vector<16x112xf32>
      %80 = arith.mulf %62, %42 : vector<16x112xf32>
      %81 = arith.mulf %64, %45 : vector<16x112xf32>
      %82 = arith.addf %80, %81 : vector<16x112xf32>
      %83 = arith.mulf %66, %48 : vector<16x112xf32>
      %84 = arith.addf %82, %83 : vector<16x112xf32>
      %85 = arith.mulf %68, %51 : vector<16x112xf32>
      %86 = arith.addf %84, %85 : vector<16x112xf32>
      %87 = arith.mulf %70, %54 : vector<16x112xf32>
      %88 = arith.addf %86, %87 : vector<16x112xf32>
      %89 = arith.mulf %62, %45 : vector<16x112xf32>
      %90 = arith.mulf %64, %48 : vector<16x112xf32>
      %91 = arith.addf %89, %90 : vector<16x112xf32>
      %92 = arith.mulf %66, %51 : vector<16x112xf32>
      %93 = arith.addf %91, %92 : vector<16x112xf32>
      %94 = arith.mulf %68, %54 : vector<16x112xf32>
      %95 = arith.addf %93, %94 : vector<16x112xf32>
      %96 = arith.mulf %70, %57 : vector<16x112xf32>
      %97 = arith.addf %95, %96 : vector<16x112xf32>
      %98 = arith.mulf %62, %48 : vector<16x112xf32>
      %99 = arith.mulf %64, %51 : vector<16x112xf32>
      %100 = arith.addf %98, %99 : vector<16x112xf32>
      %101 = arith.mulf %66, %54 : vector<16x112xf32>
      %102 = arith.addf %100, %101 : vector<16x112xf32>
      %103 = arith.mulf %68, %57 : vector<16x112xf32>
      %104 = arith.addf %102, %103 : vector<16x112xf32>
      %105 = arith.mulf %70, %60 : vector<16x112xf32>
      %106 = arith.addf %104, %105 : vector<16x112xf32>
      %c2_i32_53 = arith.constant 2 : i32
      %107 = arith.muli %c2_i32_53, %arg14 : i32
      %c1_i32_54 = arith.constant 1 : i32
      %108 = arith.addi %107, %c1_i32_54 : i32
      %c0_55 = arith.constant 0 : index
      %109 = arith.index_cast %108 : i32 to index
      %c0_56 = arith.constant 0 : index
      %c0_57 = arith.constant 0 : index
      %110 = vector.load %arg1[%c0_55, %109, %c0_56, %c0_57] : memref<1x32x4x128xf32, #tpu.memory_space<vmem>>, vector<1x1x4x128xf32>
      %111 = vector.shape_cast %110 : vector<1x1x4x128xf32> to vector<4x128xf32>
      %112 = vector.extract_strided_slice %111 {offsets = [0, 0], sizes = [1, 112], strides = [1, 1]} : vector<4x128xf32> to vector<1x112xf32>
      %113 = vector.shape_cast %112 : vector<1x112xf32> to vector<1x112xf32>
      %114 = vector.broadcast %113 : vector<1x112xf32> to vector<16x112xf32>
      %115 = vector.extract_strided_slice %111 {offsets = [1, 0], sizes = [1, 112], strides = [1, 1]} : vector<4x128xf32> to vector<1x112xf32>
      %116 = vector.shape_cast %115 : vector<1x112xf32> to vector<1x112xf32>
      %117 = vector.broadcast %116 : vector<1x112xf32> to vector<16x112xf32>
      %118 = vector.extract_strided_slice %111 {offsets = [2, 0], sizes = [1, 112], strides = [1, 1]} : vector<4x128xf32> to vector<1x112xf32>
      %119 = vector.shape_cast %118 : vector<1x112xf32> to vector<1x112xf32>
      %120 = vector.broadcast %119 : vector<1x112xf32> to vector<16x112xf32>
      %121 = vector.extract_strided_slice %111 {offsets = [3, 0], sizes = [1, 112], strides = [1, 1]} : vector<4x128xf32> to vector<1x112xf32>
      %122 = vector.shape_cast %121 : vector<1x112xf32> to vector<1x112xf32>
      %123 = vector.broadcast %122 : vector<1x112xf32> to vector<16x112xf32>
      %124 = vector.extract_strided_slice %111 {offsets = [0, 16], sizes = [1, 112], strides = [1, 1]} : vector<4x128xf32> to vector<1x112xf32>
      %125 = vector.shape_cast %124 : vector<1x112xf32> to vector<1x112xf32>
      %126 = vector.broadcast %125 : vector<1x112xf32> to vector<16x112xf32>
      %127 = vector.extract_strided_slice %111 {offsets = [1, 16], sizes = [1, 112], strides = [1, 1]} : vector<4x128xf32> to vector<1x112xf32>
      %128 = vector.shape_cast %127 : vector<1x112xf32> to vector<1x112xf32>
      %129 = vector.broadcast %128 : vector<1x112xf32> to vector<16x112xf32>
      %130 = vector.extract_strided_slice %111 {offsets = [2, 16], sizes = [1, 112], strides = [1, 1]} : vector<4x128xf32> to vector<1x112xf32>
      %131 = vector.shape_cast %130 : vector<1x112xf32> to vector<1x112xf32>
      %132 = vector.broadcast %131 : vector<1x112xf32> to vector<16x112xf32>
      %133 = vector.extract_strided_slice %111 {offsets = [3, 16], sizes = [1, 112], strides = [1, 1]} : vector<4x128xf32> to vector<1x112xf32>
      %134 = vector.shape_cast %133 : vector<1x112xf32> to vector<1x112xf32>
      %135 = vector.broadcast %134 : vector<1x112xf32> to vector<16x112xf32>
      %c5 = arith.constant 5 : index
      %c0_58 = arith.constant 0 : index
      %c0_59 = arith.constant 0 : index
      %136 = vector.load %arg2[%c5, %c0_58, %c0_59] : memref<25x16x128xf32, #tpu.memory_space<vmem>>, vector<1x16x112xf32>
      %137 = vector.shape_cast %136 : vector<1x16x112xf32> to vector<16x112xf32>
      %c6 = arith.constant 6 : index
      %c0_60 = arith.constant 0 : index
      %c0_61 = arith.constant 0 : index
      %138 = vector.load %arg2[%c6, %c0_60, %c0_61] : memref<25x16x128xf32, #tpu.memory_space<vmem>>, vector<1x16x112xf32>
      %139 = vector.shape_cast %138 : vector<1x16x112xf32> to vector<16x112xf32>
      %c7 = arith.constant 7 : index
      %c0_62 = arith.constant 0 : index
      %c0_63 = arith.constant 0 : index
      %140 = vector.load %arg2[%c7, %c0_62, %c0_63] : memref<25x16x128xf32, #tpu.memory_space<vmem>>, vector<1x16x112xf32>
      %141 = vector.shape_cast %140 : vector<1x16x112xf32> to vector<16x112xf32>
      %c8 = arith.constant 8 : index
      %c0_64 = arith.constant 0 : index
      %c0_65 = arith.constant 0 : index
      %142 = vector.load %arg2[%c8, %c0_64, %c0_65] : memref<25x16x128xf32, #tpu.memory_space<vmem>>, vector<1x16x112xf32>
      %143 = vector.shape_cast %142 : vector<1x16x112xf32> to vector<16x112xf32>
      %c9 = arith.constant 9 : index
      %c0_66 = arith.constant 0 : index
      %c0_67 = arith.constant 0 : index
      %144 = vector.load %arg2[%c9, %c0_66, %c0_67] : memref<25x16x128xf32, #tpu.memory_space<vmem>>, vector<1x16x112xf32>
      %145 = vector.shape_cast %144 : vector<1x16x112xf32> to vector<16x112xf32>
      %146 = arith.mulf %137, %114 : vector<16x112xf32>
      %147 = arith.addf %79, %146 : vector<16x112xf32>
      %148 = arith.mulf %139, %117 : vector<16x112xf32>
      %149 = arith.addf %147, %148 : vector<16x112xf32>
      %150 = arith.mulf %141, %120 : vector<16x112xf32>
      %151 = arith.addf %149, %150 : vector<16x112xf32>
      %152 = arith.mulf %143, %123 : vector<16x112xf32>
      %153 = arith.addf %151, %152 : vector<16x112xf32>
      %154 = arith.mulf %145, %126 : vector<16x112xf32>
      %155 = arith.addf %153, %154 : vector<16x112xf32>
      %156 = arith.mulf %137, %117 : vector<16x112xf32>
      %157 = arith.addf %88, %156 : vector<16x112xf32>
      %158 = arith.mulf %139, %120 : vector<16x112xf32>
      %159 = arith.addf %157, %158 : vector<16x112xf32>
      %160 = arith.mulf %141, %123 : vector<16x112xf32>
      %161 = arith.addf %159, %160 : vector<16x112xf32>
      %162 = arith.mulf %143, %126 : vector<16x112xf32>
      %163 = arith.addf %161, %162 : vector<16x112xf32>
      %164 = arith.mulf %145, %129 : vector<16x112xf32>
      %165 = arith.addf %163, %164 : vector<16x112xf32>
      %166 = arith.mulf %137, %120 : vector<16x112xf32>
      %167 = arith.addf %97, %166 : vector<16x112xf32>
      %168 = arith.mulf %139, %123 : vector<16x112xf32>
      %169 = arith.addf %167, %168 : vector<16x112xf32>
      %170 = arith.mulf %141, %126 : vector<16x112xf32>
      %171 = arith.addf %169, %170 : vector<16x112xf32>
      %172 = arith.mulf %143, %129 : vector<16x112xf32>
      %173 = arith.addf %171, %172 : vector<16x112xf32>
      %174 = arith.mulf %145, %132 : vector<16x112xf32>
      %175 = arith.addf %173, %174 : vector<16x112xf32>
      %176 = arith.mulf %137, %123 : vector<16x112xf32>
      %177 = arith.addf %106, %176 : vector<16x112xf32>
      %178 = arith.mulf %139, %126 : vector<16x112xf32>
      %179 = arith.addf %177, %178 : vector<16x112xf32>
      %180 = arith.mulf %141, %129 : vector<16x112xf32>
      %181 = arith.addf %179, %180 : vector<16x112xf32>
      %182 = arith.mulf %143, %132 : vector<16x112xf32>
      %183 = arith.addf %181, %182 : vector<16x112xf32>
      %184 = arith.mulf %145, %135 : vector<16x112xf32>
      %185 = arith.addf %183, %184 : vector<16x112xf32>
      %c0_68 = arith.constant 0 : index
      %c0_69 = arith.constant 0 : index
      %c0_70 = arith.constant 0 : index
      %186 = vector.load %arg2[%c0_68, %c0_69, %c0_70] : memref<25x16x128xf32, #tpu.memory_space<vmem>>, vector<1x16x112xf32>
      %187 = vector.shape_cast %186 : vector<1x16x112xf32> to vector<16x112xf32>
      %c1_71 = arith.constant 1 : index
      %c0_72 = arith.constant 0 : index
      %c0_73 = arith.constant 0 : index
      %188 = vector.load %arg2[%c1_71, %c0_72, %c0_73] : memref<25x16x128xf32, #tpu.memory_space<vmem>>, vector<1x16x112xf32>
      %189 = vector.shape_cast %188 : vector<1x16x112xf32> to vector<16x112xf32>
      %c2_74 = arith.constant 2 : index
      %c0_75 = arith.constant 0 : index
      %c0_76 = arith.constant 0 : index
      %190 = vector.load %arg2[%c2_74, %c0_75, %c0_76] : memref<25x16x128xf32, #tpu.memory_space<vmem>>, vector<1x16x112xf32>
      %191 = vector.shape_cast %190 : vector<1x16x112xf32> to vector<16x112xf32>
      %c3_77 = arith.constant 3 : index
      %c0_78 = arith.constant 0 : index
      %c0_79 = arith.constant 0 : index
      %192 = vector.load %arg2[%c3_77, %c0_78, %c0_79] : memref<25x16x128xf32, #tpu.memory_space<vmem>>, vector<1x16x112xf32>
      %193 = vector.shape_cast %192 : vector<1x16x112xf32> to vector<16x112xf32>
      %c4_80 = arith.constant 4 : index
      %c0_81 = arith.constant 0 : index
      %c0_82 = arith.constant 0 : index
      %194 = vector.load %arg2[%c4_80, %c0_81, %c0_82] : memref<25x16x128xf32, #tpu.memory_space<vmem>>, vector<1x16x112xf32>
      %195 = vector.shape_cast %194 : vector<1x16x112xf32> to vector<16x112xf32>
      %196 = arith.mulf %187, %114 : vector<16x112xf32>
      %197 = arith.mulf %189, %117 : vector<16x112xf32>
      %198 = arith.addf %196, %197 : vector<16x112xf32>
      %199 = arith.mulf %191, %120 : vector<16x112xf32>
      %200 = arith.addf %198, %199 : vector<16x112xf32>
      %201 = arith.mulf %193, %123 : vector<16x112xf32>
      %202 = arith.addf %200, %201 : vector<16x112xf32>
      %203 = arith.mulf %195, %126 : vector<16x112xf32>
      %204 = arith.addf %202, %203 : vector<16x112xf32>
      %205 = arith.mulf %187, %117 : vector<16x112xf32>
      %206 = arith.mulf %189, %120 : vector<16x112xf32>
      %207 = arith.addf %205, %206 : vector<16x112xf32>
      %208 = arith.mulf %191, %123 : vector<16x112xf32>
      %209 = arith.addf %207, %208 : vector<16x112xf32>
      %210 = arith.mulf %193, %126 : vector<16x112xf32>
      %211 = arith.addf %209, %210 : vector<16x112xf32>
      %212 = arith.mulf %195, %129 : vector<16x112xf32>
      %213 = arith.addf %211, %212 : vector<16x112xf32>
      %214 = arith.mulf %187, %120 : vector<16x112xf32>
      %215 = arith.mulf %189, %123 : vector<16x112xf32>
      %216 = arith.addf %214, %215 : vector<16x112xf32>
      %217 = arith.mulf %191, %126 : vector<16x112xf32>
      %218 = arith.addf %216, %217 : vector<16x112xf32>
      %219 = arith.mulf %193, %129 : vector<16x112xf32>
      %220 = arith.addf %218, %219 : vector<16x112xf32>
      %221 = arith.mulf %195, %132 : vector<16x112xf32>
      %222 = arith.addf %220, %221 : vector<16x112xf32>
      %223 = arith.mulf %187, %123 : vector<16x112xf32>
      %224 = arith.mulf %189, %126 : vector<16x112xf32>
      %225 = arith.addf %223, %224 : vector<16x112xf32>
      %226 = arith.mulf %191, %129 : vector<16x112xf32>
      %227 = arith.addf %225, %226 : vector<16x112xf32>
      %228 = arith.mulf %193, %132 : vector<16x112xf32>
      %229 = arith.addf %227, %228 : vector<16x112xf32>
      %230 = arith.mulf %195, %135 : vector<16x112xf32>
      %231 = arith.addf %229, %230 : vector<16x112xf32>
      %c2_i32_83 = arith.constant 2 : i32
      %232 = arith.muli %c2_i32_83, %arg14 : i32
      %c2_i32_84 = arith.constant 2 : i32
      %233 = arith.addi %232, %c2_i32_84 : i32
      %c0_85 = arith.constant 0 : index
      %234 = arith.index_cast %233 : i32 to index
      %c0_86 = arith.constant 0 : index
      %c0_87 = arith.constant 0 : index
      %235 = vector.load %arg1[%c0_85, %234, %c0_86, %c0_87] : memref<1x32x4x128xf32, #tpu.memory_space<vmem>>, vector<1x1x4x128xf32>
      %236 = vector.shape_cast %235 : vector<1x1x4x128xf32> to vector<4x128xf32>
      %237 = vector.extract_strided_slice %236 {offsets = [0, 0], sizes = [1, 112], strides = [1, 1]} : vector<4x128xf32> to vector<1x112xf32>
      %238 = vector.shape_cast %237 : vector<1x112xf32> to vector<1x112xf32>
      %239 = vector.broadcast %238 : vector<1x112xf32> to vector<16x112xf32>
      %240 = vector.extract_strided_slice %236 {offsets = [1, 0], sizes = [1, 112], strides = [1, 1]} : vector<4x128xf32> to vector<1x112xf32>
      %241 = vector.shape_cast %240 : vector<1x112xf32> to vector<1x112xf32>
      %242 = vector.broadcast %241 : vector<1x112xf32> to vector<16x112xf32>
      %243 = vector.extract_strided_slice %236 {offsets = [2, 0], sizes = [1, 112], strides = [1, 1]} : vector<4x128xf32> to vector<1x112xf32>
      %244 = vector.shape_cast %243 : vector<1x112xf32> to vector<1x112xf32>
      %245 = vector.broadcast %244 : vector<1x112xf32> to vector<16x112xf32>
      %246 = vector.extract_strided_slice %236 {offsets = [3, 0], sizes = [1, 112], strides = [1, 1]} : vector<4x128xf32> to vector<1x112xf32>
      %247 = vector.shape_cast %246 : vector<1x112xf32> to vector<1x112xf32>
      %248 = vector.broadcast %247 : vector<1x112xf32> to vector<16x112xf32>
      %249 = vector.extract_strided_slice %236 {offsets = [0, 16], sizes = [1, 112], strides = [1, 1]} : vector<4x128xf32> to vector<1x112xf32>
      %250 = vector.shape_cast %249 : vector<1x112xf32> to vector<1x112xf32>
      %251 = vector.broadcast %250 : vector<1x112xf32> to vector<16x112xf32>
      %252 = vector.extract_strided_slice %236 {offsets = [1, 16], sizes = [1, 112], strides = [1, 1]} : vector<4x128xf32> to vector<1x112xf32>
      %253 = vector.shape_cast %252 : vector<1x112xf32> to vector<1x112xf32>
      %254 = vector.broadcast %253 : vector<1x112xf32> to vector<16x112xf32>
      %255 = vector.extract_strided_slice %236 {offsets = [2, 16], sizes = [1, 112], strides = [1, 1]} : vector<4x128xf32> to vector<1x112xf32>
      %256 = vector.shape_cast %255 : vector<1x112xf32> to vector<1x112xf32>
      %257 = vector.broadcast %256 : vector<1x112xf32> to vector<16x112xf32>
      %258 = vector.extract_strided_slice %236 {offsets = [3, 16], sizes = [1, 112], strides = [1, 1]} : vector<4x128xf32> to vector<1x112xf32>
      %259 = vector.shape_cast %258 : vector<1x112xf32> to vector<1x112xf32>
      %260 = vector.broadcast %259 : vector<1x112xf32> to vector<16x112xf32>
      %c10 = arith.constant 10 : index
      %c0_88 = arith.constant 0 : index
      %c0_89 = arith.constant 0 : index
      %261 = vector.load %arg2[%c10, %c0_88, %c0_89] : memref<25x16x128xf32, #tpu.memory_space<vmem>>, vector<1x16x112xf32>
      %262 = vector.shape_cast %261 : vector<1x16x112xf32> to vector<16x112xf32>
      %c11 = arith.constant 11 : index
      %c0_90 = arith.constant 0 : index
      %c0_91 = arith.constant 0 : index
      %263 = vector.load %arg2[%c11, %c0_90, %c0_91] : memref<25x16x128xf32, #tpu.memory_space<vmem>>, vector<1x16x112xf32>
      %264 = vector.shape_cast %263 : vector<1x16x112xf32> to vector<16x112xf32>
      %c12 = arith.constant 12 : index
      %c0_92 = arith.constant 0 : index
      %c0_93 = arith.constant 0 : index
      %265 = vector.load %arg2[%c12, %c0_92, %c0_93] : memref<25x16x128xf32, #tpu.memory_space<vmem>>, vector<1x16x112xf32>
      %266 = vector.shape_cast %265 : vector<1x16x112xf32> to vector<16x112xf32>
      %c13 = arith.constant 13 : index
      %c0_94 = arith.constant 0 : index
      %c0_95 = arith.constant 0 : index
      %267 = vector.load %arg2[%c13, %c0_94, %c0_95] : memref<25x16x128xf32, #tpu.memory_space<vmem>>, vector<1x16x112xf32>
      %268 = vector.shape_cast %267 : vector<1x16x112xf32> to vector<16x112xf32>
      %c14 = arith.constant 14 : index
      %c0_96 = arith.constant 0 : index
      %c0_97 = arith.constant 0 : index
      %269 = vector.load %arg2[%c14, %c0_96, %c0_97] : memref<25x16x128xf32, #tpu.memory_space<vmem>>, vector<1x16x112xf32>
      %270 = vector.shape_cast %269 : vector<1x16x112xf32> to vector<16x112xf32>
      %271 = arith.mulf %262, %239 : vector<16x112xf32>
      %272 = arith.addf %155, %271 : vector<16x112xf32>
      %273 = arith.mulf %264, %242 : vector<16x112xf32>
      %274 = arith.addf %272, %273 : vector<16x112xf32>
      %275 = arith.mulf %266, %245 : vector<16x112xf32>
      %276 = arith.addf %274, %275 : vector<16x112xf32>
      %277 = arith.mulf %268, %248 : vector<16x112xf32>
      %278 = arith.addf %276, %277 : vector<16x112xf32>
      %279 = arith.mulf %270, %251 : vector<16x112xf32>
      %280 = arith.addf %278, %279 : vector<16x112xf32>
      %281 = arith.mulf %262, %242 : vector<16x112xf32>
      %282 = arith.addf %165, %281 : vector<16x112xf32>
      %283 = arith.mulf %264, %245 : vector<16x112xf32>
      %284 = arith.addf %282, %283 : vector<16x112xf32>
      %285 = arith.mulf %266, %248 : vector<16x112xf32>
      %286 = arith.addf %284, %285 : vector<16x112xf32>
      %287 = arith.mulf %268, %251 : vector<16x112xf32>
      %288 = arith.addf %286, %287 : vector<16x112xf32>
      %289 = arith.mulf %270, %254 : vector<16x112xf32>
      %290 = arith.addf %288, %289 : vector<16x112xf32>
      %291 = arith.mulf %262, %245 : vector<16x112xf32>
      %292 = arith.addf %175, %291 : vector<16x112xf32>
      %293 = arith.mulf %264, %248 : vector<16x112xf32>
      %294 = arith.addf %292, %293 : vector<16x112xf32>
      %295 = arith.mulf %266, %251 : vector<16x112xf32>
      %296 = arith.addf %294, %295 : vector<16x112xf32>
      %297 = arith.mulf %268, %254 : vector<16x112xf32>
      %298 = arith.addf %296, %297 : vector<16x112xf32>
      %299 = arith.mulf %270, %257 : vector<16x112xf32>
      %300 = arith.addf %298, %299 : vector<16x112xf32>
      %301 = arith.mulf %262, %248 : vector<16x112xf32>
      %302 = arith.addf %185, %301 : vector<16x112xf32>
      %303 = arith.mulf %264, %251 : vector<16x112xf32>
      %304 = arith.addf %302, %303 : vector<16x112xf32>
      %305 = arith.mulf %266, %254 : vector<16x112xf32>
      %306 = arith.addf %304, %305 : vector<16x112xf32>
      %307 = arith.mulf %268, %257 : vector<16x112xf32>
      %308 = arith.addf %306, %307 : vector<16x112xf32>
      %309 = arith.mulf %270, %260 : vector<16x112xf32>
      %310 = arith.addf %308, %309 : vector<16x112xf32>
      %c5_98 = arith.constant 5 : index
      %c0_99 = arith.constant 0 : index
      %c0_100 = arith.constant 0 : index
      %311 = vector.load %arg2[%c5_98, %c0_99, %c0_100] : memref<25x16x128xf32, #tpu.memory_space<vmem>>, vector<1x16x112xf32>
      %312 = vector.shape_cast %311 : vector<1x16x112xf32> to vector<16x112xf32>
      %c6_101 = arith.constant 6 : index
      %c0_102 = arith.constant 0 : index
      %c0_103 = arith.constant 0 : index
      %313 = vector.load %arg2[%c6_101, %c0_102, %c0_103] : memref<25x16x128xf32, #tpu.memory_space<vmem>>, vector<1x16x112xf32>
      %314 = vector.shape_cast %313 : vector<1x16x112xf32> to vector<16x112xf32>
      %c7_104 = arith.constant 7 : index
      %c0_105 = arith.constant 0 : index
      %c0_106 = arith.constant 0 : index
      %315 = vector.load %arg2[%c7_104, %c0_105, %c0_106] : memref<25x16x128xf32, #tpu.memory_space<vmem>>, vector<1x16x112xf32>
      %316 = vector.shape_cast %315 : vector<1x16x112xf32> to vector<16x112xf32>
      %c8_107 = arith.constant 8 : index
      %c0_108 = arith.constant 0 : index
      %c0_109 = arith.constant 0 : index
      %317 = vector.load %arg2[%c8_107, %c0_108, %c0_109] : memref<25x16x128xf32, #tpu.memory_space<vmem>>, vector<1x16x112xf32>
      %318 = vector.shape_cast %317 : vector<1x16x112xf32> to vector<16x112xf32>
      %c9_110 = arith.constant 9 : index
      %c0_111 = arith.constant 0 : index
      %c0_112 = arith.constant 0 : index
      %319 = vector.load %arg2[%c9_110, %c0_111, %c0_112] : memref<25x16x128xf32, #tpu.memory_space<vmem>>, vector<1x16x112xf32>
      %320 = vector.shape_cast %319 : vector<1x16x112xf32> to vector<16x112xf32>
      %321 = arith.mulf %312, %239 : vector<16x112xf32>
      %322 = arith.addf %204, %321 : vector<16x112xf32>
      %323 = arith.mulf %314, %242 : vector<16x112xf32>
      %324 = arith.addf %322, %323 : vector<16x112xf32>
      %325 = arith.mulf %316, %245 : vector<16x112xf32>
      %326 = arith.addf %324, %325 : vector<16x112xf32>
      %327 = arith.mulf %318, %248 : vector<16x112xf32>
      %328 = arith.addf %326, %327 : vector<16x112xf32>
      %329 = arith.mulf %320, %251 : vector<16x112xf32>
      %330 = arith.addf %328, %329 : vector<16x112xf32>
      %331 = arith.mulf %312, %242 : vector<16x112xf32>
      %332 = arith.addf %213, %331 : vector<16x112xf32>
      %333 = arith.mulf %314, %245 : vector<16x112xf32>
      %334 = arith.addf %332, %333 : vector<16x112xf32>
      %335 = arith.mulf %316, %248 : vector<16x112xf32>
      %336 = arith.addf %334, %335 : vector<16x112xf32>
      %337 = arith.mulf %318, %251 : vector<16x112xf32>
      %338 = arith.addf %336, %337 : vector<16x112xf32>
      %339 = arith.mulf %320, %254 : vector<16x112xf32>
      %340 = arith.addf %338, %339 : vector<16x112xf32>
      %341 = arith.mulf %312, %245 : vector<16x112xf32>
      %342 = arith.addf %222, %341 : vector<16x112xf32>
      %343 = arith.mulf %314, %248 : vector<16x112xf32>
      %344 = arith.addf %342, %343 : vector<16x112xf32>
      %345 = arith.mulf %316, %251 : vector<16x112xf32>
      %346 = arith.addf %344, %345 : vector<16x112xf32>
      %347 = arith.mulf %318, %254 : vector<16x112xf32>
      %348 = arith.addf %346, %347 : vector<16x112xf32>
      %349 = arith.mulf %320, %257 : vector<16x112xf32>
      %350 = arith.addf %348, %349 : vector<16x112xf32>
      %351 = arith.mulf %312, %248 : vector<16x112xf32>
      %352 = arith.addf %231, %351 : vector<16x112xf32>
      %353 = arith.mulf %314, %251 : vector<16x112xf32>
      %354 = arith.addf %352, %353 : vector<16x112xf32>
      %355 = arith.mulf %316, %254 : vector<16x112xf32>
      %356 = arith.addf %354, %355 : vector<16x112xf32>
      %357 = arith.mulf %318, %257 : vector<16x112xf32>
      %358 = arith.addf %356, %357 : vector<16x112xf32>
      %359 = arith.mulf %320, %260 : vector<16x112xf32>
      %360 = arith.addf %358, %359 : vector<16x112xf32>
      %c2_i32_113 = arith.constant 2 : i32
      %361 = arith.muli %c2_i32_113, %arg14 : i32
      %c3_i32 = arith.constant 3 : i32
      %362 = arith.addi %361, %c3_i32 : i32
      %c0_114 = arith.constant 0 : index
      %363 = arith.index_cast %362 : i32 to index
      %c0_115 = arith.constant 0 : index
      %c0_116 = arith.constant 0 : index
      %364 = vector.load %arg1[%c0_114, %363, %c0_115, %c0_116] : memref<1x32x4x128xf32, #tpu.memory_space<vmem>>, vector<1x1x4x128xf32>
      %365 = vector.shape_cast %364 : vector<1x1x4x128xf32> to vector<4x128xf32>
      %366 = vector.extract_strided_slice %365 {offsets = [0, 0], sizes = [1, 112], strides = [1, 1]} : vector<4x128xf32> to vector<1x112xf32>
      %367 = vector.shape_cast %366 : vector<1x112xf32> to vector<1x112xf32>
      %368 = vector.broadcast %367 : vector<1x112xf32> to vector<16x112xf32>
      %369 = vector.extract_strided_slice %365 {offsets = [1, 0], sizes = [1, 112], strides = [1, 1]} : vector<4x128xf32> to vector<1x112xf32>
      %370 = vector.shape_cast %369 : vector<1x112xf32> to vector<1x112xf32>
      %371 = vector.broadcast %370 : vector<1x112xf32> to vector<16x112xf32>
      %372 = vector.extract_strided_slice %365 {offsets = [2, 0], sizes = [1, 112], strides = [1, 1]} : vector<4x128xf32> to vector<1x112xf32>
      %373 = vector.shape_cast %372 : vector<1x112xf32> to vector<1x112xf32>
      %374 = vector.broadcast %373 : vector<1x112xf32> to vector<16x112xf32>
      %375 = vector.extract_strided_slice %365 {offsets = [3, 0], sizes = [1, 112], strides = [1, 1]} : vector<4x128xf32> to vector<1x112xf32>
      %376 = vector.shape_cast %375 : vector<1x112xf32> to vector<1x112xf32>
      %377 = vector.broadcast %376 : vector<1x112xf32> to vector<16x112xf32>
      %378 = vector.extract_strided_slice %365 {offsets = [0, 16], sizes = [1, 112], strides = [1, 1]} : vector<4x128xf32> to vector<1x112xf32>
      %379 = vector.shape_cast %378 : vector<1x112xf32> to vector<1x112xf32>
      %380 = vector.broadcast %379 : vector<1x112xf32> to vector<16x112xf32>
      %381 = vector.extract_strided_slice %365 {offsets = [1, 16], sizes = [1, 112], strides = [1, 1]} : vector<4x128xf32> to vector<1x112xf32>
      %382 = vector.shape_cast %381 : vector<1x112xf32> to vector<1x112xf32>
      %383 = vector.broadcast %382 : vector<1x112xf32> to vector<16x112xf32>
      %384 = vector.extract_strided_slice %365 {offsets = [2, 16], sizes = [1, 112], strides = [1, 1]} : vector<4x128xf32> to vector<1x112xf32>
      %385 = vector.shape_cast %384 : vector<1x112xf32> to vector<1x112xf32>
      %386 = vector.broadcast %385 : vector<1x112xf32> to vector<16x112xf32>
      %387 = vector.extract_strided_slice %365 {offsets = [3, 16], sizes = [1, 112], strides = [1, 1]} : vector<4x128xf32> to vector<1x112xf32>
      %388 = vector.shape_cast %387 : vector<1x112xf32> to vector<1x112xf32>
      %389 = vector.broadcast %388 : vector<1x112xf32> to vector<16x112xf32>
      %c15 = arith.constant 15 : index
      %c0_117 = arith.constant 0 : index
      %c0_118 = arith.constant 0 : index
      %390 = vector.load %arg2[%c15, %c0_117, %c0_118] : memref<25x16x128xf32, #tpu.memory_space<vmem>>, vector<1x16x112xf32>
      %391 = vector.shape_cast %390 : vector<1x16x112xf32> to vector<16x112xf32>
      %c16 = arith.constant 16 : index
      %c0_119 = arith.constant 0 : index
      %c0_120 = arith.constant 0 : index
      %392 = vector.load %arg2[%c16, %c0_119, %c0_120] : memref<25x16x128xf32, #tpu.memory_space<vmem>>, vector<1x16x112xf32>
      %393 = vector.shape_cast %392 : vector<1x16x112xf32> to vector<16x112xf32>
      %c17 = arith.constant 17 : index
      %c0_121 = arith.constant 0 : index
      %c0_122 = arith.constant 0 : index
      %394 = vector.load %arg2[%c17, %c0_121, %c0_122] : memref<25x16x128xf32, #tpu.memory_space<vmem>>, vector<1x16x112xf32>
      %395 = vector.shape_cast %394 : vector<1x16x112xf32> to vector<16x112xf32>
      %c18 = arith.constant 18 : index
      %c0_123 = arith.constant 0 : index
      %c0_124 = arith.constant 0 : index
      %396 = vector.load %arg2[%c18, %c0_123, %c0_124] : memref<25x16x128xf32, #tpu.memory_space<vmem>>, vector<1x16x112xf32>
      %397 = vector.shape_cast %396 : vector<1x16x112xf32> to vector<16x112xf32>
      %c19 = arith.constant 19 : index
      %c0_125 = arith.constant 0 : index
      %c0_126 = arith.constant 0 : index
      %398 = vector.load %arg2[%c19, %c0_125, %c0_126] : memref<25x16x128xf32, #tpu.memory_space<vmem>>, vector<1x16x112xf32>
      %399 = vector.shape_cast %398 : vector<1x16x112xf32> to vector<16x112xf32>
      %400 = arith.mulf %391, %368 : vector<16x112xf32>
      %401 = arith.addf %280, %400 : vector<16x112xf32>
      %402 = arith.mulf %393, %371 : vector<16x112xf32>
      %403 = arith.addf %401, %402 : vector<16x112xf32>
      %404 = arith.mulf %395, %374 : vector<16x112xf32>
      %405 = arith.addf %403, %404 : vector<16x112xf32>
      %406 = arith.mulf %397, %377 : vector<16x112xf32>
      %407 = arith.addf %405, %406 : vector<16x112xf32>
      %408 = arith.mulf %399, %380 : vector<16x112xf32>
      %409 = arith.addf %407, %408 : vector<16x112xf32>
      %410 = arith.mulf %391, %371 : vector<16x112xf32>
      %411 = arith.addf %290, %410 : vector<16x112xf32>
      %412 = arith.mulf %393, %374 : vector<16x112xf32>
      %413 = arith.addf %411, %412 : vector<16x112xf32>
      %414 = arith.mulf %395, %377 : vector<16x112xf32>
      %415 = arith.addf %413, %414 : vector<16x112xf32>
      %416 = arith.mulf %397, %380 : vector<16x112xf32>
      %417 = arith.addf %415, %416 : vector<16x112xf32>
      %418 = arith.mulf %399, %383 : vector<16x112xf32>
      %419 = arith.addf %417, %418 : vector<16x112xf32>
      %420 = arith.mulf %391, %374 : vector<16x112xf32>
      %421 = arith.addf %300, %420 : vector<16x112xf32>
      %422 = arith.mulf %393, %377 : vector<16x112xf32>
      %423 = arith.addf %421, %422 : vector<16x112xf32>
      %424 = arith.mulf %395, %380 : vector<16x112xf32>
      %425 = arith.addf %423, %424 : vector<16x112xf32>
      %426 = arith.mulf %397, %383 : vector<16x112xf32>
      %427 = arith.addf %425, %426 : vector<16x112xf32>
      %428 = arith.mulf %399, %386 : vector<16x112xf32>
      %429 = arith.addf %427, %428 : vector<16x112xf32>
      %430 = arith.mulf %391, %377 : vector<16x112xf32>
      %431 = arith.addf %310, %430 : vector<16x112xf32>
      %432 = arith.mulf %393, %380 : vector<16x112xf32>
      %433 = arith.addf %431, %432 : vector<16x112xf32>
      %434 = arith.mulf %395, %383 : vector<16x112xf32>
      %435 = arith.addf %433, %434 : vector<16x112xf32>
      %436 = arith.mulf %397, %386 : vector<16x112xf32>
      %437 = arith.addf %435, %436 : vector<16x112xf32>
      %438 = arith.mulf %399, %389 : vector<16x112xf32>
      %439 = arith.addf %437, %438 : vector<16x112xf32>
      %c10_127 = arith.constant 10 : index
      %c0_128 = arith.constant 0 : index
      %c0_129 = arith.constant 0 : index
      %440 = vector.load %arg2[%c10_127, %c0_128, %c0_129] : memref<25x16x128xf32, #tpu.memory_space<vmem>>, vector<1x16x112xf32>
      %441 = vector.shape_cast %440 : vector<1x16x112xf32> to vector<16x112xf32>
      %c11_130 = arith.constant 11 : index
      %c0_131 = arith.constant 0 : index
      %c0_132 = arith.constant 0 : index
      %442 = vector.load %arg2[%c11_130, %c0_131, %c0_132] : memref<25x16x128xf32, #tpu.memory_space<vmem>>, vector<1x16x112xf32>
      %443 = vector.shape_cast %442 : vector<1x16x112xf32> to vector<16x112xf32>
      %c12_133 = arith.constant 12 : index
      %c0_134 = arith.constant 0 : index
      %c0_135 = arith.constant 0 : index
      %444 = vector.load %arg2[%c12_133, %c0_134, %c0_135] : memref<25x16x128xf32, #tpu.memory_space<vmem>>, vector<1x16x112xf32>
      %445 = vector.shape_cast %444 : vector<1x16x112xf32> to vector<16x112xf32>
      %c13_136 = arith.constant 13 : index
      %c0_137 = arith.constant 0 : index
      %c0_138 = arith.constant 0 : index
      %446 = vector.load %arg2[%c13_136, %c0_137, %c0_138] : memref<25x16x128xf32, #tpu.memory_space<vmem>>, vector<1x16x112xf32>
      %447 = vector.shape_cast %446 : vector<1x16x112xf32> to vector<16x112xf32>
      %c14_139 = arith.constant 14 : index
      %c0_140 = arith.constant 0 : index
      %c0_141 = arith.constant 0 : index
      %448 = vector.load %arg2[%c14_139, %c0_140, %c0_141] : memref<25x16x128xf32, #tpu.memory_space<vmem>>, vector<1x16x112xf32>
      %449 = vector.shape_cast %448 : vector<1x16x112xf32> to vector<16x112xf32>
      %450 = arith.mulf %441, %368 : vector<16x112xf32>
      %451 = arith.addf %330, %450 : vector<16x112xf32>
      %452 = arith.mulf %443, %371 : vector<16x112xf32>
      %453 = arith.addf %451, %452 : vector<16x112xf32>
      %454 = arith.mulf %445, %374 : vector<16x112xf32>
      %455 = arith.addf %453, %454 : vector<16x112xf32>
      %456 = arith.mulf %447, %377 : vector<16x112xf32>
      %457 = arith.addf %455, %456 : vector<16x112xf32>
      %458 = arith.mulf %449, %380 : vector<16x112xf32>
      %459 = arith.addf %457, %458 : vector<16x112xf32>
      %460 = arith.mulf %441, %371 : vector<16x112xf32>
      %461 = arith.addf %340, %460 : vector<16x112xf32>
      %462 = arith.mulf %443, %374 : vector<16x112xf32>
      %463 = arith.addf %461, %462 : vector<16x112xf32>
      %464 = arith.mulf %445, %377 : vector<16x112xf32>
      %465 = arith.addf %463, %464 : vector<16x112xf32>
      %466 = arith.mulf %447, %380 : vector<16x112xf32>
      %467 = arith.addf %465, %466 : vector<16x112xf32>
      %468 = arith.mulf %449, %383 : vector<16x112xf32>
      %469 = arith.addf %467, %468 : vector<16x112xf32>
      %470 = arith.mulf %441, %374 : vector<16x112xf32>
      %471 = arith.addf %350, %470 : vector<16x112xf32>
      %472 = arith.mulf %443, %377 : vector<16x112xf32>
      %473 = arith.addf %471, %472 : vector<16x112xf32>
      %474 = arith.mulf %445, %380 : vector<16x112xf32>
      %475 = arith.addf %473, %474 : vector<16x112xf32>
      %476 = arith.mulf %447, %383 : vector<16x112xf32>
      %477 = arith.addf %475, %476 : vector<16x112xf32>
      %478 = arith.mulf %449, %386 : vector<16x112xf32>
      %479 = arith.addf %477, %478 : vector<16x112xf32>
      %480 = arith.mulf %441, %377 : vector<16x112xf32>
      %481 = arith.addf %360, %480 : vector<16x112xf32>
      %482 = arith.mulf %443, %380 : vector<16x112xf32>
      %483 = arith.addf %481, %482 : vector<16x112xf32>
      %484 = arith.mulf %445, %383 : vector<16x112xf32>
      %485 = arith.addf %483, %484 : vector<16x112xf32>
      %486 = arith.mulf %447, %386 : vector<16x112xf32>
      %487 = arith.addf %485, %486 : vector<16x112xf32>
      %488 = arith.mulf %449, %389 : vector<16x112xf32>
      %489 = arith.addf %487, %488 : vector<16x112xf32>
      %c2_i32_142 = arith.constant 2 : i32
      %490 = arith.muli %c2_i32_142, %arg14 : i32
      %c4_i32 = arith.constant 4 : i32
      %491 = arith.addi %490, %c4_i32 : i32
      %c0_143 = arith.constant 0 : index
      %492 = arith.index_cast %491 : i32 to index
      %c0_144 = arith.constant 0 : index
      %c0_145 = arith.constant 0 : index
      %493 = vector.load %arg1[%c0_143, %492, %c0_144, %c0_145] : memref<1x32x4x128xf32, #tpu.memory_space<vmem>>, vector<1x1x4x128xf32>
      %494 = vector.shape_cast %493 : vector<1x1x4x128xf32> to vector<4x128xf32>
      %495 = vector.extract_strided_slice %494 {offsets = [0, 0], sizes = [1, 112], strides = [1, 1]} : vector<4x128xf32> to vector<1x112xf32>
      %496 = vector.shape_cast %495 : vector<1x112xf32> to vector<1x112xf32>
      %497 = vector.broadcast %496 : vector<1x112xf32> to vector<16x112xf32>
      %498 = vector.extract_strided_slice %494 {offsets = [1, 0], sizes = [1, 112], strides = [1, 1]} : vector<4x128xf32> to vector<1x112xf32>
      %499 = vector.shape_cast %498 : vector<1x112xf32> to vector<1x112xf32>
      %500 = vector.broadcast %499 : vector<1x112xf32> to vector<16x112xf32>
      %501 = vector.extract_strided_slice %494 {offsets = [2, 0], sizes = [1, 112], strides = [1, 1]} : vector<4x128xf32> to vector<1x112xf32>
      %502 = vector.shape_cast %501 : vector<1x112xf32> to vector<1x112xf32>
      %503 = vector.broadcast %502 : vector<1x112xf32> to vector<16x112xf32>
      %504 = vector.extract_strided_slice %494 {offsets = [3, 0], sizes = [1, 112], strides = [1, 1]} : vector<4x128xf32> to vector<1x112xf32>
      %505 = vector.shape_cast %504 : vector<1x112xf32> to vector<1x112xf32>
      %506 = vector.broadcast %505 : vector<1x112xf32> to vector<16x112xf32>
      %507 = vector.extract_strided_slice %494 {offsets = [0, 16], sizes = [1, 112], strides = [1, 1]} : vector<4x128xf32> to vector<1x112xf32>
      %508 = vector.shape_cast %507 : vector<1x112xf32> to vector<1x112xf32>
      %509 = vector.broadcast %508 : vector<1x112xf32> to vector<16x112xf32>
      %510 = vector.extract_strided_slice %494 {offsets = [1, 16], sizes = [1, 112], strides = [1, 1]} : vector<4x128xf32> to vector<1x112xf32>
      %511 = vector.shape_cast %510 : vector<1x112xf32> to vector<1x112xf32>
      %512 = vector.broadcast %511 : vector<1x112xf32> to vector<16x112xf32>
      %513 = vector.extract_strided_slice %494 {offsets = [2, 16], sizes = [1, 112], strides = [1, 1]} : vector<4x128xf32> to vector<1x112xf32>
      %514 = vector.shape_cast %513 : vector<1x112xf32> to vector<1x112xf32>
      %515 = vector.broadcast %514 : vector<1x112xf32> to vector<16x112xf32>
      %516 = vector.extract_strided_slice %494 {offsets = [3, 16], sizes = [1, 112], strides = [1, 1]} : vector<4x128xf32> to vector<1x112xf32>
      %517 = vector.shape_cast %516 : vector<1x112xf32> to vector<1x112xf32>
      %518 = vector.broadcast %517 : vector<1x112xf32> to vector<16x112xf32>
      %c20 = arith.constant 20 : index
      %c0_146 = arith.constant 0 : index
      %c0_147 = arith.constant 0 : index
      %519 = vector.load %arg2[%c20, %c0_146, %c0_147] : memref<25x16x128xf32, #tpu.memory_space<vmem>>, vector<1x16x112xf32>
      %520 = vector.shape_cast %519 : vector<1x16x112xf32> to vector<16x112xf32>
      %c21 = arith.constant 21 : index
      %c0_148 = arith.constant 0 : index
      %c0_149 = arith.constant 0 : index
      %521 = vector.load %arg2[%c21, %c0_148, %c0_149] : memref<25x16x128xf32, #tpu.memory_space<vmem>>, vector<1x16x112xf32>
      %522 = vector.shape_cast %521 : vector<1x16x112xf32> to vector<16x112xf32>
      %c22 = arith.constant 22 : index
      %c0_150 = arith.constant 0 : index
      %c0_151 = arith.constant 0 : index
      %523 = vector.load %arg2[%c22, %c0_150, %c0_151] : memref<25x16x128xf32, #tpu.memory_space<vmem>>, vector<1x16x112xf32>
      %524 = vector.shape_cast %523 : vector<1x16x112xf32> to vector<16x112xf32>
      %c23 = arith.constant 23 : index
      %c0_152 = arith.constant 0 : index
      %c0_153 = arith.constant 0 : index
      %525 = vector.load %arg2[%c23, %c0_152, %c0_153] : memref<25x16x128xf32, #tpu.memory_space<vmem>>, vector<1x16x112xf32>
      %526 = vector.shape_cast %525 : vector<1x16x112xf32> to vector<16x112xf32>
      %c24 = arith.constant 24 : index
      %c0_154 = arith.constant 0 : index
      %c0_155 = arith.constant 0 : index
      %527 = vector.load %arg2[%c24, %c0_154, %c0_155] : memref<25x16x128xf32, #tpu.memory_space<vmem>>, vector<1x16x112xf32>
      %528 = vector.shape_cast %527 : vector<1x16x112xf32> to vector<16x112xf32>
      %529 = arith.mulf %520, %497 : vector<16x112xf32>
      %530 = arith.addf %409, %529 : vector<16x112xf32>
      %531 = arith.mulf %522, %500 : vector<16x112xf32>
      %532 = arith.addf %530, %531 : vector<16x112xf32>
      %533 = arith.mulf %524, %503 : vector<16x112xf32>
      %534 = arith.addf %532, %533 : vector<16x112xf32>
      %535 = arith.mulf %526, %506 : vector<16x112xf32>
      %536 = arith.addf %534, %535 : vector<16x112xf32>
      %537 = arith.mulf %528, %509 : vector<16x112xf32>
      %538 = arith.addf %536, %537 : vector<16x112xf32>
      %539 = arith.mulf %520, %500 : vector<16x112xf32>
      %540 = arith.addf %419, %539 : vector<16x112xf32>
      %541 = arith.mulf %522, %503 : vector<16x112xf32>
      %542 = arith.addf %540, %541 : vector<16x112xf32>
      %543 = arith.mulf %524, %506 : vector<16x112xf32>
      %544 = arith.addf %542, %543 : vector<16x112xf32>
      %545 = arith.mulf %526, %509 : vector<16x112xf32>
      %546 = arith.addf %544, %545 : vector<16x112xf32>
      %547 = arith.mulf %528, %512 : vector<16x112xf32>
      %548 = arith.addf %546, %547 : vector<16x112xf32>
      %549 = arith.mulf %520, %503 : vector<16x112xf32>
      %550 = arith.addf %429, %549 : vector<16x112xf32>
      %551 = arith.mulf %522, %506 : vector<16x112xf32>
      %552 = arith.addf %550, %551 : vector<16x112xf32>
      %553 = arith.mulf %524, %509 : vector<16x112xf32>
      %554 = arith.addf %552, %553 : vector<16x112xf32>
      %555 = arith.mulf %526, %512 : vector<16x112xf32>
      %556 = arith.addf %554, %555 : vector<16x112xf32>
      %557 = arith.mulf %528, %515 : vector<16x112xf32>
      %558 = arith.addf %556, %557 : vector<16x112xf32>
      %559 = arith.mulf %520, %506 : vector<16x112xf32>
      %560 = arith.addf %439, %559 : vector<16x112xf32>
      %561 = arith.mulf %522, %509 : vector<16x112xf32>
      %562 = arith.addf %560, %561 : vector<16x112xf32>
      %563 = arith.mulf %524, %512 : vector<16x112xf32>
      %564 = arith.addf %562, %563 : vector<16x112xf32>
      %565 = arith.mulf %526, %515 : vector<16x112xf32>
      %566 = arith.addf %564, %565 : vector<16x112xf32>
      %567 = arith.mulf %528, %518 : vector<16x112xf32>
      %568 = arith.addf %566, %567 : vector<16x112xf32>
      %c15_156 = arith.constant 15 : index
      %c0_157 = arith.constant 0 : index
      %c0_158 = arith.constant 0 : index
      %569 = vector.load %arg2[%c15_156, %c0_157, %c0_158] : memref<25x16x128xf32, #tpu.memory_space<vmem>>, vector<1x16x112xf32>
      %570 = vector.shape_cast %569 : vector<1x16x112xf32> to vector<16x112xf32>
      %c16_159 = arith.constant 16 : index
      %c0_160 = arith.constant 0 : index
      %c0_161 = arith.constant 0 : index
      %571 = vector.load %arg2[%c16_159, %c0_160, %c0_161] : memref<25x16x128xf32, #tpu.memory_space<vmem>>, vector<1x16x112xf32>
      %572 = vector.shape_cast %571 : vector<1x16x112xf32> to vector<16x112xf32>
      %c17_162 = arith.constant 17 : index
      %c0_163 = arith.constant 0 : index
      %c0_164 = arith.constant 0 : index
      %573 = vector.load %arg2[%c17_162, %c0_163, %c0_164] : memref<25x16x128xf32, #tpu.memory_space<vmem>>, vector<1x16x112xf32>
      %574 = vector.shape_cast %573 : vector<1x16x112xf32> to vector<16x112xf32>
      %c18_165 = arith.constant 18 : index
      %c0_166 = arith.constant 0 : index
      %c0_167 = arith.constant 0 : index
      %575 = vector.load %arg2[%c18_165, %c0_166, %c0_167] : memref<25x16x128xf32, #tpu.memory_space<vmem>>, vector<1x16x112xf32>
      %576 = vector.shape_cast %575 : vector<1x16x112xf32> to vector<16x112xf32>
      %c19_168 = arith.constant 19 : index
      %c0_169 = arith.constant 0 : index
      %c0_170 = arith.constant 0 : index
      %577 = vector.load %arg2[%c19_168, %c0_169, %c0_170] : memref<25x16x128xf32, #tpu.memory_space<vmem>>, vector<1x16x112xf32>
      %578 = vector.shape_cast %577 : vector<1x16x112xf32> to vector<16x112xf32>
      %579 = arith.mulf %570, %497 : vector<16x112xf32>
      %580 = arith.addf %459, %579 : vector<16x112xf32>
      %581 = arith.mulf %572, %500 : vector<16x112xf32>
      %582 = arith.addf %580, %581 : vector<16x112xf32>
      %583 = arith.mulf %574, %503 : vector<16x112xf32>
      %584 = arith.addf %582, %583 : vector<16x112xf32>
      %585 = arith.mulf %576, %506 : vector<16x112xf32>
      %586 = arith.addf %584, %585 : vector<16x112xf32>
      %587 = arith.mulf %578, %509 : vector<16x112xf32>
      %588 = arith.addf %586, %587 : vector<16x112xf32>
      %589 = arith.mulf %570, %500 : vector<16x112xf32>
      %590 = arith.addf %469, %589 : vector<16x112xf32>
      %591 = arith.mulf %572, %503 : vector<16x112xf32>
      %592 = arith.addf %590, %591 : vector<16x112xf32>
      %593 = arith.mulf %574, %506 : vector<16x112xf32>
      %594 = arith.addf %592, %593 : vector<16x112xf32>
      %595 = arith.mulf %576, %509 : vector<16x112xf32>
      %596 = arith.addf %594, %595 : vector<16x112xf32>
      %597 = arith.mulf %578, %512 : vector<16x112xf32>
      %598 = arith.addf %596, %597 : vector<16x112xf32>
      %599 = arith.mulf %570, %503 : vector<16x112xf32>
      %600 = arith.addf %479, %599 : vector<16x112xf32>
      %601 = arith.mulf %572, %506 : vector<16x112xf32>
      %602 = arith.addf %600, %601 : vector<16x112xf32>
      %603 = arith.mulf %574, %509 : vector<16x112xf32>
      %604 = arith.addf %602, %603 : vector<16x112xf32>
      %605 = arith.mulf %576, %512 : vector<16x112xf32>
      %606 = arith.addf %604, %605 : vector<16x112xf32>
      %607 = arith.mulf %578, %515 : vector<16x112xf32>
      %608 = arith.addf %606, %607 : vector<16x112xf32>
      %609 = arith.mulf %570, %506 : vector<16x112xf32>
      %610 = arith.addf %489, %609 : vector<16x112xf32>
      %611 = arith.mulf %572, %509 : vector<16x112xf32>
      %612 = arith.addf %610, %611 : vector<16x112xf32>
      %613 = arith.mulf %574, %512 : vector<16x112xf32>
      %614 = arith.addf %612, %613 : vector<16x112xf32>
      %615 = arith.mulf %576, %515 : vector<16x112xf32>
      %616 = arith.addf %614, %615 : vector<16x112xf32>
      %617 = arith.mulf %578, %518 : vector<16x112xf32>
      %618 = arith.addf %616, %617 : vector<16x112xf32>
      %c2_i32_171 = arith.constant 2 : i32
      %619 = arith.muli %c2_i32_171, %arg14 : i32
      %c5_i32 = arith.constant 5 : i32
      %620 = arith.addi %619, %c5_i32 : i32
      %c0_172 = arith.constant 0 : index
      %621 = arith.index_cast %620 : i32 to index
      %c0_173 = arith.constant 0 : index
      %c0_174 = arith.constant 0 : index
      %622 = vector.load %arg1[%c0_172, %621, %c0_173, %c0_174] : memref<1x32x4x128xf32, #tpu.memory_space<vmem>>, vector<1x1x4x128xf32>
      %623 = vector.shape_cast %622 : vector<1x1x4x128xf32> to vector<4x128xf32>
      %624 = vector.extract_strided_slice %623 {offsets = [0, 0], sizes = [1, 112], strides = [1, 1]} : vector<4x128xf32> to vector<1x112xf32>
      %625 = vector.shape_cast %624 : vector<1x112xf32> to vector<1x112xf32>
      %626 = vector.broadcast %625 : vector<1x112xf32> to vector<16x112xf32>
      %627 = vector.extract_strided_slice %623 {offsets = [1, 0], sizes = [1, 112], strides = [1, 1]} : vector<4x128xf32> to vector<1x112xf32>
      %628 = vector.shape_cast %627 : vector<1x112xf32> to vector<1x112xf32>
      %629 = vector.broadcast %628 : vector<1x112xf32> to vector<16x112xf32>
      %630 = vector.extract_strided_slice %623 {offsets = [2, 0], sizes = [1, 112], strides = [1, 1]} : vector<4x128xf32> to vector<1x112xf32>
      %631 = vector.shape_cast %630 : vector<1x112xf32> to vector<1x112xf32>
      %632 = vector.broadcast %631 : vector<1x112xf32> to vector<16x112xf32>
      %633 = vector.extract_strided_slice %623 {offsets = [3, 0], sizes = [1, 112], strides = [1, 1]} : vector<4x128xf32> to vector<1x112xf32>
      %634 = vector.shape_cast %633 : vector<1x112xf32> to vector<1x112xf32>
      %635 = vector.broadcast %634 : vector<1x112xf32> to vector<16x112xf32>
      %636 = vector.extract_strided_slice %623 {offsets = [0, 16], sizes = [1, 112], strides = [1, 1]} : vector<4x128xf32> to vector<1x112xf32>
      %637 = vector.shape_cast %636 : vector<1x112xf32> to vector<1x112xf32>
      %638 = vector.broadcast %637 : vector<1x112xf32> to vector<16x112xf32>
      %639 = vector.extract_strided_slice %623 {offsets = [1, 16], sizes = [1, 112], strides = [1, 1]} : vector<4x128xf32> to vector<1x112xf32>
      %640 = vector.shape_cast %639 : vector<1x112xf32> to vector<1x112xf32>
      %641 = vector.broadcast %640 : vector<1x112xf32> to vector<16x112xf32>
      %642 = vector.extract_strided_slice %623 {offsets = [2, 16], sizes = [1, 112], strides = [1, 1]} : vector<4x128xf32> to vector<1x112xf32>
      %643 = vector.shape_cast %642 : vector<1x112xf32> to vector<1x112xf32>
      %644 = vector.broadcast %643 : vector<1x112xf32> to vector<16x112xf32>
      %645 = vector.extract_strided_slice %623 {offsets = [3, 16], sizes = [1, 112], strides = [1, 1]} : vector<4x128xf32> to vector<1x112xf32>
      %646 = vector.shape_cast %645 : vector<1x112xf32> to vector<1x112xf32>
      %647 = vector.broadcast %646 : vector<1x112xf32> to vector<16x112xf32>
      %c20_175 = arith.constant 20 : index
      %c0_176 = arith.constant 0 : index
      %c0_177 = arith.constant 0 : index
      %648 = vector.load %arg2[%c20_175, %c0_176, %c0_177] : memref<25x16x128xf32, #tpu.memory_space<vmem>>, vector<1x16x112xf32>
      %649 = vector.shape_cast %648 : vector<1x16x112xf32> to vector<16x112xf32>
      %c21_178 = arith.constant 21 : index
      %c0_179 = arith.constant 0 : index
      %c0_180 = arith.constant 0 : index
      %650 = vector.load %arg2[%c21_178, %c0_179, %c0_180] : memref<25x16x128xf32, #tpu.memory_space<vmem>>, vector<1x16x112xf32>
      %651 = vector.shape_cast %650 : vector<1x16x112xf32> to vector<16x112xf32>
      %c22_181 = arith.constant 22 : index
      %c0_182 = arith.constant 0 : index
      %c0_183 = arith.constant 0 : index
      %652 = vector.load %arg2[%c22_181, %c0_182, %c0_183] : memref<25x16x128xf32, #tpu.memory_space<vmem>>, vector<1x16x112xf32>
      %653 = vector.shape_cast %652 : vector<1x16x112xf32> to vector<16x112xf32>
      %c23_184 = arith.constant 23 : index
      %c0_185 = arith.constant 0 : index
      %c0_186 = arith.constant 0 : index
      %654 = vector.load %arg2[%c23_184, %c0_185, %c0_186] : memref<25x16x128xf32, #tpu.memory_space<vmem>>, vector<1x16x112xf32>
      %655 = vector.shape_cast %654 : vector<1x16x112xf32> to vector<16x112xf32>
      %c24_187 = arith.constant 24 : index
      %c0_188 = arith.constant 0 : index
      %c0_189 = arith.constant 0 : index
      %656 = vector.load %arg2[%c24_187, %c0_188, %c0_189] : memref<25x16x128xf32, #tpu.memory_space<vmem>>, vector<1x16x112xf32>
      %657 = vector.shape_cast %656 : vector<1x16x112xf32> to vector<16x112xf32>
      %658 = arith.mulf %649, %626 : vector<16x112xf32>
      %659 = arith.addf %588, %658 : vector<16x112xf32>
      %660 = arith.mulf %651, %629 : vector<16x112xf32>
      %661 = arith.addf %659, %660 : vector<16x112xf32>
      %662 = arith.mulf %653, %632 : vector<16x112xf32>
      %663 = arith.addf %661, %662 : vector<16x112xf32>
      %664 = arith.mulf %655, %635 : vector<16x112xf32>
      %665 = arith.addf %663, %664 : vector<16x112xf32>
      %666 = arith.mulf %657, %638 : vector<16x112xf32>
      %667 = arith.addf %665, %666 : vector<16x112xf32>
      %668 = arith.mulf %649, %629 : vector<16x112xf32>
      %669 = arith.addf %598, %668 : vector<16x112xf32>
      %670 = arith.mulf %651, %632 : vector<16x112xf32>
      %671 = arith.addf %669, %670 : vector<16x112xf32>
      %672 = arith.mulf %653, %635 : vector<16x112xf32>
      %673 = arith.addf %671, %672 : vector<16x112xf32>
      %674 = arith.mulf %655, %638 : vector<16x112xf32>
      %675 = arith.addf %673, %674 : vector<16x112xf32>
      %676 = arith.mulf %657, %641 : vector<16x112xf32>
      %677 = arith.addf %675, %676 : vector<16x112xf32>
      %678 = arith.mulf %649, %632 : vector<16x112xf32>
      %679 = arith.addf %608, %678 : vector<16x112xf32>
      %680 = arith.mulf %651, %635 : vector<16x112xf32>
      %681 = arith.addf %679, %680 : vector<16x112xf32>
      %682 = arith.mulf %653, %638 : vector<16x112xf32>
      %683 = arith.addf %681, %682 : vector<16x112xf32>
      %684 = arith.mulf %655, %641 : vector<16x112xf32>
      %685 = arith.addf %683, %684 : vector<16x112xf32>
      %686 = arith.mulf %657, %644 : vector<16x112xf32>
      %687 = arith.addf %685, %686 : vector<16x112xf32>
      %688 = arith.mulf %649, %635 : vector<16x112xf32>
      %689 = arith.addf %618, %688 : vector<16x112xf32>
      %690 = arith.mulf %651, %638 : vector<16x112xf32>
      %691 = arith.addf %689, %690 : vector<16x112xf32>
      %692 = arith.mulf %653, %641 : vector<16x112xf32>
      %693 = arith.addf %691, %692 : vector<16x112xf32>
      %694 = arith.mulf %655, %644 : vector<16x112xf32>
      %695 = arith.addf %693, %694 : vector<16x112xf32>
      %696 = arith.mulf %657, %647 : vector<16x112xf32>
      %697 = arith.addf %695, %696 : vector<16x112xf32>
      %c0_190 = arith.constant 0 : index
      %c0_191 = arith.constant 0 : index
      %698 = vector.load %arg3[%c0_190, %c0_191] : memref<16x1xf32, #tpu.memory_space<vmem>>, vector<16x1xf32>
      %699 = arith.maximumf %538, %667 : vector<16x112xf32>
      %700 = arith.maximumf %548, %677 : vector<16x112xf32>
      %701 = arith.maximumf %699, %700 : vector<16x112xf32>
      %702 = arith.maximumf %558, %687 : vector<16x112xf32>
      %703 = arith.maximumf %568, %697 : vector<16x112xf32>
      %704 = arith.maximumf %702, %703 : vector<16x112xf32>
      %705 = vector.broadcast %698 : vector<16x1xf32> to vector<16x112xf32>
      %706 = arith.addf %701, %705 : vector<16x112xf32>
      %cst_192 = arith.constant 0.000000e+00 : f32
      %707 = vector.broadcast %cst_192 : f32 to vector<16x112xf32>
      %708 = arith.maximumf %706, %707 : vector<16x112xf32>
      %709 = arith.truncf %708 : vector<16x112xf32> to vector<16x112xbf16>
      %710 = vector.broadcast %698 : vector<16x1xf32> to vector<16x112xf32>
      %711 = arith.addf %704, %710 : vector<16x112xf32>
      %cst_193 = arith.constant 0.000000e+00 : f32
      %712 = vector.broadcast %cst_193 : f32 to vector<16x112xf32>
      %713 = arith.maximumf %711, %712 : vector<16x112xf32>
      %714 = arith.truncf %713 : vector<16x112xf32> to vector<16x112xbf16>
      %c2_i32_194 = arith.constant 2 : i32
      %715 = arith.addi %c2_i32_194, %arg14 : i32
      %716 = arith.index_cast %715 : i32 to index
      %c0_195 = arith.constant 0 : index
      %c16_196 = arith.constant 16 : index
      %717 = vector.load %arg9[%716, %c0_195, %c16_196] : memref<18x16x144xbf16, #tpu.memory_space<vmem>>, vector<1x16x112xbf16>
      %718 = vector.shape_cast %717 : vector<1x16x112xbf16> to vector<16x112xbf16>
      %719 = vector.shape_cast %709 : vector<16x112xbf16> to vector<1x16x112xbf16>
      tpu.vector_store %arg9[%716, %c0_195, %c16_196], %719 {strides = array<i32>} : memref<18x16x144xbf16, #tpu.memory_space<vmem>>, vector<1x16x112xbf16>,
      %c2_i32_197 = arith.constant 2 : i32
      %720 = arith.addi %c2_i32_197, %arg14 : i32
      %721 = arith.index_cast %720 : i32 to index
      %c0_198 = arith.constant 0 : index
      %c16_199 = arith.constant 16 : index
      %722 = vector.load %arg10[%721, %c0_198, %c16_199] : memref<18x16x144xbf16, #tpu.memory_space<vmem>>, vector<1x16x112xbf16>
      %723 = vector.shape_cast %722 : vector<1x16x112xbf16> to vector<16x112xbf16>
      %724 = vector.shape_cast %714 : vector<16x112xbf16> to vector<1x16x112xbf16>
      tpu.vector_store %arg10[%721, %c0_198, %c16_199], %724 {strides = array<i32>} : memref<18x16x144xbf16, #tpu.memory_space<vmem>>, vector<1x16x112xbf16>,
    }
    %c14_i32_6 = arith.constant 14 : i32
    %c0_7 = arith.constant 0 : index
    %c0_8 = arith.constant 0 : index
    %5 = vector.load %arg4[%c0_7, %c0_8] : memref<32x400xbf16, #tpu.memory_space<vmem>>, vector<32x400xbf16>
    %c0_9 = arith.constant 0 : index
    %c0_10 = arith.constant 0 : index
    %6 = vector.load %arg5[%c0_9, %c0_10] : memref<32x1xf32, #tpu.memory_space<vmem>>, vector<32x1xf32>
    %cst_11 = arith.constant 0.000000e+00 : f32
    %7 = vector.broadcast %cst_11 : f32 to vector<32x112xf32>
    %c0_12 = arith.constant 0 : index
    %c0_13 = arith.constant 0 : index
    %8 = vector.load %arg12[%c0_12, %c0_13] : memref<32x112xf32, #tpu.memory_space<vmem>>, vector<32x112xf32>
    tpu.vector_store %arg12[%c0_12, %c0_13], %7 {strides = array<i32>} : memref<32x112xf32, #tpu.memory_space<vmem>>, vector<32x112xf32>,
    %cst_14 = arith.constant 0.000000e+00 : f32
    %9 = vector.broadcast %cst_14 : f32 to vector<32x112xf32>
    %c0_15 = arith.constant 0 : index
    %c0_16 = arith.constant 0 : index
    %10 = vector.load %arg13[%c0_15, %c0_16] : memref<32x112xf32, #tpu.memory_space<vmem>>, vector<32x112xf32>
    tpu.vector_store %arg13[%c0_15, %c0_16], %9 {strides = array<i32>} : memref<32x112xf32, #tpu.memory_space<vmem>>, vector<32x112xf32>,
    %c0_i32_17 = arith.constant 0 : i32
    %c7_i32 = arith.constant 7 : i32
    %11 = arith.addi %c0_i32_17, %c7_i32 : i32
    %c1_i32_18 = arith.constant 1 : i32
    scf.for %arg14 = %c0_i32_17 to %11 step %c1_i32_18  : i32 {
      %c2_i32 = arith.constant 2 : i32
      %32 = arith.muli %c2_i32, %arg14 : i32
      %c0_i32_37 = arith.constant 0 : i32
      %33 = arith.addi %32, %c0_i32_37 : i32
      %34 = arith.index_cast %33 : i32 to index
      %c0_38 = arith.constant 0 : index
      %c0_39 = arith.constant 0 : index
      %35 = vector.load %arg9[%34, %c0_38, %c0_39] : memref<18x16x144xbf16, #tpu.memory_space<vmem>>, vector<1x16x144xbf16>
      %36 = vector.shape_cast %35 : vector<1x16x144xbf16> to vector<16x144xbf16>
      %c2_i32_40 = arith.constant 2 : i32
      %37 = arith.muli %c2_i32_40, %arg14 : i32
      %c0_i32_41 = arith.constant 0 : i32
      %38 = arith.addi %37, %c0_i32_41 : i32
      %39 = arith.index_cast %38 : i32 to index
      %c0_42 = arith.constant 0 : index
      %c0_43 = arith.constant 0 : index
      %40 = vector.load %arg10[%39, %c0_42, %c0_43] : memref<18x16x144xbf16, #tpu.memory_space<vmem>>, vector<1x16x144xbf16>
      %41 = vector.shape_cast %40 : vector<1x16x144xbf16> to vector<16x144xbf16>
      %42 = vector.extract_strided_slice %36 {offsets = [0, 0], sizes = [16, 112], strides = [1, 1]} : vector<16x144xbf16> to vector<16x112xbf16>
      %43 = vector.extract_strided_slice %36 {offsets = [0, 16], sizes = [16, 112], strides = [1, 1]} : vector<16x144xbf16> to vector<16x112xbf16>
      %44 = vector.extract_strided_slice %36 {offsets = [0, 32], sizes = [16, 112], strides = [1, 1]} : vector<16x144xbf16> to vector<16x112xbf16>
      %45 = vector.extract_strided_slice %41 {offsets = [0, 0], sizes = [16, 112], strides = [1, 1]} : vector<16x144xbf16> to vector<16x112xbf16>
      %46 = vector.extract_strided_slice %41 {offsets = [0, 16], sizes = [16, 112], strides = [1, 1]} : vector<16x144xbf16> to vector<16x112xbf16>
      %47 = vector.extract_strided_slice %41 {offsets = [0, 32], sizes = [16, 112], strides = [1, 1]} : vector<16x144xbf16> to vector<16x112xbf16>
      %c0_44 = arith.constant 0 : index
      %c0_45 = arith.constant 0 : index
      %48 = vector.load %arg11[%c0_44, %c0_45] : memref<400x512xbf16, #tpu.memory_space<vmem>>, vector<16x112xbf16>
      tpu.vector_store %arg11[%c0_44, %c0_45], %42 {strides = array<i32>} : memref<400x512xbf16, #tpu.memory_space<vmem>>, vector<16x112xbf16>,
      %c16 = arith.constant 16 : index
      %c0_46 = arith.constant 0 : index
      %49 = vector.load %arg11[%c16, %c0_46] : memref<400x512xbf16, #tpu.memory_space<vmem>>, vector<16x112xbf16>
      tpu.vector_store %arg11[%c16, %c0_46], %45 {strides = array<i32>} : memref<400x512xbf16, #tpu.memory_space<vmem>>, vector<16x112xbf16>,
      %c32 = arith.constant 32 : index
      %c0_47 = arith.constant 0 : index
      %50 = vector.load %arg11[%c32, %c0_47] : memref<400x512xbf16, #tpu.memory_space<vmem>>, vector<16x112xbf16>
      tpu.vector_store %arg11[%c32, %c0_47], %43 {strides = array<i32>} : memref<400x512xbf16, #tpu.memory_space<vmem>>, vector<16x112xbf16>,
      %c48 = arith.constant 48 : index
      %c0_48 = arith.constant 0 : index
      %51 = vector.load %arg11[%c48, %c0_48] : memref<400x512xbf16, #tpu.memory_space<vmem>>, vector<16x112xbf16>
      tpu.vector_store %arg11[%c48, %c0_48], %46 {strides = array<i32>} : memref<400x512xbf16, #tpu.memory_space<vmem>>, vector<16x112xbf16>,
      %c64 = arith.constant 64 : index
      %c0_49 = arith.constant 0 : index
      %52 = vector.load %arg11[%c64, %c0_49] : memref<400x512xbf16, #tpu.memory_space<vmem>>, vector<16x112xbf16>
      tpu.vector_store %arg11[%c64, %c0_49], %44 {strides = array<i32>} : memref<400x512xbf16, #tpu.memory_space<vmem>>, vector<16x112xbf16>,
      %c0_50 = arith.constant 0 : index
      %c128 = arith.constant 128 : index
      %53 = vector.load %arg11[%c0_50, %c128] : memref<400x512xbf16, #tpu.memory_space<vmem>>, vector<16x112xbf16>
      tpu.vector_store %arg11[%c0_50, %c128], %45 {strides = array<i32>} : memref<400x512xbf16, #tpu.memory_space<vmem>>, vector<16x112xbf16>,
      %c16_51 = arith.constant 16 : index
      %c128_52 = arith.constant 128 : index
      %54 = vector.load %arg11[%c16_51, %c128_52] : memref<400x512xbf16, #tpu.memory_space<vmem>>, vector<16x112xbf16>
      tpu.vector_store %arg11[%c16_51, %c128_52], %43 {strides = array<i32>} : memref<400x512xbf16, #tpu.memory_space<vmem>>, vector<16x112xbf16>,
      %c32_53 = arith.constant 32 : index
      %c128_54 = arith.constant 128 : index
      %55 = vector.load %arg11[%c32_53, %c128_54] : memref<400x512xbf16, #tpu.memory_space<vmem>>, vector<16x112xbf16>
      tpu.vector_store %arg11[%c32_53, %c128_54], %46 {strides = array<i32>} : memref<400x512xbf16, #tpu.memory_space<vmem>>, vector<16x112xbf16>,
      %c48_55 = arith.constant 48 : index
      %c128_56 = arith.constant 128 : index
      %56 = vector.load %arg11[%c48_55, %c128_56] : memref<400x512xbf16, #tpu.memory_space<vmem>>, vector<16x112xbf16>
      tpu.vector_store %arg11[%c48_55, %c128_56], %44 {strides = array<i32>} : memref<400x512xbf16, #tpu.memory_space<vmem>>, vector<16x112xbf16>,
      %c64_57 = arith.constant 64 : index
      %c128_58 = arith.constant 128 : index
      %57 = vector.load %arg11[%c64_57, %c128_58] : memref<400x512xbf16, #tpu.memory_space<vmem>>, vector<16x112xbf16>
      tpu.vector_store %arg11[%c64_57, %c128_58], %47 {strides = array<i32>} : memref<400x512xbf16, #tpu.memory_space<vmem>>, vector<16x112xbf16>,
      %c2_i32_59 = arith.constant 2 : i32
      %58 = arith.muli %c2_i32_59, %arg14 : i32
      %c1_i32_60 = arith.constant 1 : i32
      %59 = arith.addi %58, %c1_i32_60 : i32
      %60 = arith.index_cast %59 : i32 to index
      %c0_61 = arith.constant 0 : index
      %c0_62 = arith.constant 0 : index
      %61 = vector.load %arg9[%60, %c0_61, %c0_62] : memref<18x16x144xbf16, #tpu.memory_space<vmem>>, vector<1x16x144xbf16>
      %62 = vector.shape_cast %61 : vector<1x16x144xbf16> to vector<16x144xbf16>
      %c2_i32_63 = arith.constant 2 : i32
      %63 = arith.muli %c2_i32_63, %arg14 : i32
      %c1_i32_64 = arith.constant 1 : i32
      %64 = arith.addi %63, %c1_i32_64 : i32
      %65 = arith.index_cast %64 : i32 to index
      %c0_65 = arith.constant 0 : index
      %c0_66 = arith.constant 0 : index
      %66 = vector.load %arg10[%65, %c0_65, %c0_66] : memref<18x16x144xbf16, #tpu.memory_space<vmem>>, vector<1x16x144xbf16>
      %67 = vector.shape_cast %66 : vector<1x16x144xbf16> to vector<16x144xbf16>
      %68 = vector.extract_strided_slice %62 {offsets = [0, 0], sizes = [16, 112], strides = [1, 1]} : vector<16x144xbf16> to vector<16x112xbf16>
      %69 = vector.extract_strided_slice %62 {offsets = [0, 16], sizes = [16, 112], strides = [1, 1]} : vector<16x144xbf16> to vector<16x112xbf16>
      %70 = vector.extract_strided_slice %62 {offsets = [0, 32], sizes = [16, 112], strides = [1, 1]} : vector<16x144xbf16> to vector<16x112xbf16>
      %71 = vector.extract_strided_slice %67 {offsets = [0, 0], sizes = [16, 112], strides = [1, 1]} : vector<16x144xbf16> to vector<16x112xbf16>
      %72 = vector.extract_strided_slice %67 {offsets = [0, 16], sizes = [16, 112], strides = [1, 1]} : vector<16x144xbf16> to vector<16x112xbf16>
      %73 = vector.extract_strided_slice %67 {offsets = [0, 32], sizes = [16, 112], strides = [1, 1]} : vector<16x144xbf16> to vector<16x112xbf16>
      %c80 = arith.constant 80 : index
      %c0_67 = arith.constant 0 : index
      %74 = vector.load %arg11[%c80, %c0_67] : memref<400x512xbf16, #tpu.memory_space<vmem>>, vector<16x112xbf16>
      tpu.vector_store %arg11[%c80, %c0_67], %68 {strides = array<i32>} : memref<400x512xbf16, #tpu.memory_space<vmem>>, vector<16x112xbf16>,
      %c96 = arith.constant 96 : index
      %c0_68 = arith.constant 0 : index
      %75 = vector.load %arg11[%c96, %c0_68] : memref<400x512xbf16, #tpu.memory_space<vmem>>, vector<16x112xbf16>
      tpu.vector_store %arg11[%c96, %c0_68], %71 {strides = array<i32>} : memref<400x512xbf16, #tpu.memory_space<vmem>>, vector<16x112xbf16>,
      %c112 = arith.constant 112 : index
      %c0_69 = arith.constant 0 : index
      %76 = vector.load %arg11[%c112, %c0_69] : memref<400x512xbf16, #tpu.memory_space<vmem>>, vector<16x112xbf16>
      tpu.vector_store %arg11[%c112, %c0_69], %69 {strides = array<i32>} : memref<400x512xbf16, #tpu.memory_space<vmem>>, vector<16x112xbf16>,
      %c128_70 = arith.constant 128 : index
      %c0_71 = arith.constant 0 : index
      %77 = vector.load %arg11[%c128_70, %c0_71] : memref<400x512xbf16, #tpu.memory_space<vmem>>, vector<16x112xbf16>
      tpu.vector_store %arg11[%c128_70, %c0_71], %72 {strides = array<i32>} : memref<400x512xbf16, #tpu.memory_space<vmem>>, vector<16x112xbf16>,
      %c144 = arith.constant 144 : index
      %c0_72 = arith.constant 0 : index
      %78 = vector.load %arg11[%c144, %c0_72] : memref<400x512xbf16, #tpu.memory_space<vmem>>, vector<16x112xbf16>
      tpu.vector_store %arg11[%c144, %c0_72], %70 {strides = array<i32>} : memref<400x512xbf16, #tpu.memory_space<vmem>>, vector<16x112xbf16>,
      %c80_73 = arith.constant 80 : index
      %c128_74 = arith.constant 128 : index
      %79 = vector.load %arg11[%c80_73, %c128_74] : memref<400x512xbf16, #tpu.memory_space<vmem>>, vector<16x112xbf16>
      tpu.vector_store %arg11[%c80_73, %c128_74], %71 {strides = array<i32>} : memref<400x512xbf16, #tpu.memory_space<vmem>>, vector<16x112xbf16>,
      %c96_75 = arith.constant 96 : index
      %c128_76 = arith.constant 128 : index
      %80 = vector.load %arg11[%c96_75, %c128_76] : memref<400x512xbf16, #tpu.memory_space<vmem>>, vector<16x112xbf16>
      tpu.vector_store %arg11[%c96_75, %c128_76], %69 {strides = array<i32>} : memref<400x512xbf16, #tpu.memory_space<vmem>>, vector<16x112xbf16>,
      %c112_77 = arith.constant 112 : index
      %c128_78 = arith.constant 128 : index
      %81 = vector.load %arg11[%c112_77, %c128_78] : memref<400x512xbf16, #tpu.memory_space<vmem>>, vector<16x112xbf16>
      tpu.vector_store %arg11[%c112_77, %c128_78], %72 {strides = array<i32>} : memref<400x512xbf16, #tpu.memory_space<vmem>>, vector<16x112xbf16>,
      %c128_79 = arith.constant 128 : index
      %c128_80 = arith.constant 128 : index
      %82 = vector.load %arg11[%c128_79, %c128_80] : memref<400x512xbf16, #tpu.memory_space<vmem>>, vector<16x112xbf16>
      tpu.vector_store %arg11[%c128_79, %c128_80], %70 {strides = array<i32>} : memref<400x512xbf16, #tpu.memory_space<vmem>>, vector<16x112xbf16>,
      %c144_81 = arith.constant 144 : index
      %c128_82 = arith.constant 128 : index
      %83 = vector.load %arg11[%c144_81, %c128_82] : memref<400x512xbf16, #tpu.memory_space<vmem>>, vector<16x112xbf16>
      tpu.vector_store %arg11[%c144_81, %c128_82], %73 {strides = array<i32>} : memref<400x512xbf16, #tpu.memory_space<vmem>>, vector<16x112xbf16>,
      %c0_83 = arith.constant 0 : index
      %c256 = arith.constant 256 : index
      %84 = vector.load %arg11[%c0_83, %c256] : memref<400x512xbf16, #tpu.memory_space<vmem>>, vector<16x112xbf16>
      tpu.vector_store %arg11[%c0_83, %c256], %68 {strides = array<i32>} : memref<400x512xbf16, #tpu.memory_space<vmem>>, vector<16x112xbf16>,
      %c16_84 = arith.constant 16 : index
      %c256_85 = arith.constant 256 : index
      %85 = vector.load %arg11[%c16_84, %c256_85] : memref<400x512xbf16, #tpu.memory_space<vmem>>, vector<16x112xbf16>
      tpu.vector_store %arg11[%c16_84, %c256_85], %71 {strides = array<i32>} : memref<400x512xbf16, #tpu.memory_space<vmem>>, vector<16x112xbf16>,
      %c32_86 = arith.constant 32 : index
      %c256_87 = arith.constant 256 : index
      %86 = vector.load %arg11[%c32_86, %c256_87] : memref<400x512xbf16, #tpu.memory_space<vmem>>, vector<16x112xbf16>
      tpu.vector_store %arg11[%c32_86, %c256_87], %69 {strides = array<i32>} : memref<400x512xbf16, #tpu.memory_space<vmem>>, vector<16x112xbf16>,
      %c48_88 = arith.constant 48 : index
      %c256_89 = arith.constant 256 : index
      %87 = vector.load %arg11[%c48_88, %c256_89] : memref<400x512xbf16, #tpu.memory_space<vmem>>, vector<16x112xbf16>
      tpu.vector_store %arg11[%c48_88, %c256_89], %72 {strides = array<i32>} : memref<400x512xbf16, #tpu.memory_space<vmem>>, vector<16x112xbf16>,
      %c64_90 = arith.constant 64 : index
      %c256_91 = arith.constant 256 : index
      %88 = vector.load %arg11[%c64_90, %c256_91] : memref<400x512xbf16, #tpu.memory_space<vmem>>, vector<16x112xbf16>
      tpu.vector_store %arg11[%c64_90, %c256_91], %70 {strides = array<i32>} : memref<400x512xbf16, #tpu.memory_space<vmem>>, vector<16x112xbf16>,
      %c0_92 = arith.constant 0 : index
      %c384 = arith.constant 384 : index
      %89 = vector.load %arg11[%c0_92, %c384] : memref<400x512xbf16, #tpu.memory_space<vmem>>, vector<16x112xbf16>
      tpu.vector_store %arg11[%c0_92, %c384], %71 {strides = array<i32>} : memref<400x512xbf16, #tpu.memory_space<vmem>>, vector<16x112xbf16>,
      %c16_93 = arith.constant 16 : index
      %c384_94 = arith.constant 384 : index
      %90 = vector.load %arg11[%c16_93, %c384_94] : memref<400x512xbf16, #tpu.memory_space<vmem>>, vector<16x112xbf16>
      tpu.vector_store %arg11[%c16_93, %c384_94], %69 {strides = array<i32>} : memref<400x512xbf16, #tpu.memory_space<vmem>>, vector<16x112xbf16>,
      %c32_95 = arith.constant 32 : index
      %c384_96 = arith.constant 384 : index
      %91 = vector.load %arg11[%c32_95, %c384_96] : memref<400x512xbf16, #tpu.memory_space<vmem>>, vector<16x112xbf16>
      tpu.vector_store %arg11[%c32_95, %c384_96], %72 {strides = array<i32>} : memref<400x512xbf16, #tpu.memory_space<vmem>>, vector<16x112xbf16>,
      %c48_97 = arith.constant 48 : index
      %c384_98 = arith.constant 384 : index
      %92 = vector.load %arg11[%c48_97, %c384_98] : memref<400x512xbf16, #tpu.memory_space<vmem>>, vector<16x112xbf16>
      tpu.vector_store %arg11[%c48_97, %c384_98], %70 {strides = array<i32>} : memref<400x512xbf16, #tpu.memory_space<vmem>>, vector<16x112xbf16>,
      %c64_99 = arith.constant 64 : index
      %c384_100 = arith.constant 384 : index
      %93 = vector.load %arg11[%c64_99, %c384_100] : memref<400x512xbf16, #tpu.memory_space<vmem>>, vector<16x112xbf16>
      tpu.vector_store %arg11[%c64_99, %c384_100], %73 {strides = array<i32>} : memref<400x512xbf16, #tpu.memory_space<vmem>>, vector<16x112xbf16>,
      %c2_i32_101 = arith.constant 2 : i32
      %94 = arith.muli %c2_i32_101, %arg14 : i32
      %c2_i32_102 = arith.constant 2 : i32
      %95 = arith.addi %94, %c2_i32_102 : i32
      %96 = arith.index_cast %95 : i32 to index
      %c0_103 = arith.constant 0 : index
      %c0_104 = arith.constant 0 : index
      %97 = vector.load %arg9[%96, %c0_103, %c0_104] : memref<18x16x144xbf16, #tpu.memory_space<vmem>>, vector<1x16x144xbf16>
      %98 = vector.shape_cast %97 : vector<1x16x144xbf16> to vector<16x144xbf16>
      %c2_i32_105 = arith.constant 2 : i32
      %99 = arith.muli %c2_i32_105, %arg14 : i32
      %c2_i32_106 = arith.constant 2 : i32
      %100 = arith.addi %99, %c2_i32_106 : i32
      %101 = arith.index_cast %100 : i32 to index
      %c0_107 = arith.constant 0 : index
      %c0_108 = arith.constant 0 : index
      %102 = vector.load %arg10[%101, %c0_107, %c0_108] : memref<18x16x144xbf16, #tpu.memory_space<vmem>>, vector<1x16x144xbf16>
      %103 = vector.shape_cast %102 : vector<1x16x144xbf16> to vector<16x144xbf16>
      %104 = vector.extract_strided_slice %98 {offsets = [0, 0], sizes = [16, 112], strides = [1, 1]} : vector<16x144xbf16> to vector<16x112xbf16>
      %105 = vector.extract_strided_slice %98 {offsets = [0, 16], sizes = [16, 112], strides = [1, 1]} : vector<16x144xbf16> to vector<16x112xbf16>
      %106 = vector.extract_strided_slice %98 {offsets = [0, 32], sizes = [16, 112], strides = [1, 1]} : vector<16x144xbf16> to vector<16x112xbf16>
      %107 = vector.extract_strided_slice %103 {offsets = [0, 0], sizes = [16, 112], strides = [1, 1]} : vector<16x144xbf16> to vector<16x112xbf16>
      %108 = vector.extract_strided_slice %103 {offsets = [0, 16], sizes = [16, 112], strides = [1, 1]} : vector<16x144xbf16> to vector<16x112xbf16>
      %109 = vector.extract_strided_slice %103 {offsets = [0, 32], sizes = [16, 112], strides = [1, 1]} : vector<16x144xbf16> to vector<16x112xbf16>
      %c160 = arith.constant 160 : index
      %c0_109 = arith.constant 0 : index
      %110 = vector.load %arg11[%c160, %c0_109] : memref<400x512xbf16, #tpu.memory_space<vmem>>, vector<16x112xbf16>
      tpu.vector_store %arg11[%c160, %c0_109], %104 {strides = array<i32>} : memref<400x512xbf16, #tpu.memory_space<vmem>>, vector<16x112xbf16>,
      %c176 = arith.constant 176 : index
      %c0_110 = arith.constant 0 : index
      %111 = vector.load %arg11[%c176, %c0_110] : memref<400x512xbf16, #tpu.memory_space<vmem>>, vector<16x112xbf16>
      tpu.vector_store %arg11[%c176, %c0_110], %107 {strides = array<i32>} : memref<400x512xbf16, #tpu.memory_space<vmem>>, vector<16x112xbf16>,
      %c192 = arith.constant 192 : index
      %c0_111 = arith.constant 0 : index
      %112 = vector.load %arg11[%c192, %c0_111] : memref<400x512xbf16, #tpu.memory_space<vmem>>, vector<16x112xbf16>
      tpu.vector_store %arg11[%c192, %c0_111], %105 {strides = array<i32>} : memref<400x512xbf16, #tpu.memory_space<vmem>>, vector<16x112xbf16>,
      %c208 = arith.constant 208 : index
      %c0_112 = arith.constant 0 : index
      %113 = vector.load %arg11[%c208, %c0_112] : memref<400x512xbf16, #tpu.memory_space<vmem>>, vector<16x112xbf16>
      tpu.vector_store %arg11[%c208, %c0_112], %108 {strides = array<i32>} : memref<400x512xbf16, #tpu.memory_space<vmem>>, vector<16x112xbf16>,
      %c224 = arith.constant 224 : index
      %c0_113 = arith.constant 0 : index
      %114 = vector.load %arg11[%c224, %c0_113] : memref<400x512xbf16, #tpu.memory_space<vmem>>, vector<16x112xbf16>
      tpu.vector_store %arg11[%c224, %c0_113], %106 {strides = array<i32>} : memref<400x512xbf16, #tpu.memory_space<vmem>>, vector<16x112xbf16>,
      %c160_114 = arith.constant 160 : index
      %c128_115 = arith.constant 128 : index
      %115 = vector.load %arg11[%c160_114, %c128_115] : memref<400x512xbf16, #tpu.memory_space<vmem>>, vector<16x112xbf16>
      tpu.vector_store %arg11[%c160_114, %c128_115], %107 {strides = array<i32>} : memref<400x512xbf16, #tpu.memory_space<vmem>>, vector<16x112xbf16>,
      %c176_116 = arith.constant 176 : index
      %c128_117 = arith.constant 128 : index
      %116 = vector.load %arg11[%c176_116, %c128_117] : memref<400x512xbf16, #tpu.memory_space<vmem>>, vector<16x112xbf16>
      tpu.vector_store %arg11[%c176_116, %c128_117], %105 {strides = array<i32>} : memref<400x512xbf16, #tpu.memory_space<vmem>>, vector<16x112xbf16>,
      %c192_118 = arith.constant 192 : index
      %c128_119 = arith.constant 128 : index
      %117 = vector.load %arg11[%c192_118, %c128_119] : memref<400x512xbf16, #tpu.memory_space<vmem>>, vector<16x112xbf16>
      tpu.vector_store %arg11[%c192_118, %c128_119], %108 {strides = array<i32>} : memref<400x512xbf16, #tpu.memory_space<vmem>>, vector<16x112xbf16>,
      %c208_120 = arith.constant 208 : index
      %c128_121 = arith.constant 128 : index
      %118 = vector.load %arg11[%c208_120, %c128_121] : memref<400x512xbf16, #tpu.memory_space<vmem>>, vector<16x112xbf16>
      tpu.vector_store %arg11[%c208_120, %c128_121], %106 {strides = array<i32>} : memref<400x512xbf16, #tpu.memory_space<vmem>>, vector<16x112xbf16>,
      %c224_122 = arith.constant 224 : index
      %c128_123 = arith.constant 128 : index
      %119 = vector.load %arg11[%c224_122, %c128_123] : memref<400x512xbf16, #tpu.memory_space<vmem>>, vector<16x112xbf16>
      tpu.vector_store %arg11[%c224_122, %c128_123], %109 {strides = array<i32>} : memref<400x512xbf16, #tpu.memory_space<vmem>>, vector<16x112xbf16>,
      %c80_124 = arith.constant 80 : index
      %c256_125 = arith.constant 256 : index
      %120 = vector.load %arg11[%c80_124, %c256_125] : memref<400x512xbf16, #tpu.memory_space<vmem>>, vector<16x112xbf16>
      tpu.vector_store %arg11[%c80_124, %c256_125], %104 {strides = array<i32>} : memref<400x512xbf16, #tpu.memory_space<vmem>>, vector<16x112xbf16>,
      %c96_126 = arith.constant 96 : index
      %c256_127 = arith.constant 256 : index
      %121 = vector.load %arg11[%c96_126, %c256_127] : memref<400x512xbf16, #tpu.memory_space<vmem>>, vector<16x112xbf16>
      tpu.vector_store %arg11[%c96_126, %c256_127], %107 {strides = array<i32>} : memref<400x512xbf16, #tpu.memory_space<vmem>>, vector<16x112xbf16>,
      %c112_128 = arith.constant 112 : index
      %c256_129 = arith.constant 256 : index
      %122 = vector.load %arg11[%c112_128, %c256_129] : memref<400x512xbf16, #tpu.memory_space<vmem>>, vector<16x112xbf16>
      tpu.vector_store %arg11[%c112_128, %c256_129], %105 {strides = array<i32>} : memref<400x512xbf16, #tpu.memory_space<vmem>>, vector<16x112xbf16>,
      %c128_130 = arith.constant 128 : index
      %c256_131 = arith.constant 256 : index
      %123 = vector.load %arg11[%c128_130, %c256_131] : memref<400x512xbf16, #tpu.memory_space<vmem>>, vector<16x112xbf16>
      tpu.vector_store %arg11[%c128_130, %c256_131], %108 {strides = array<i32>} : memref<400x512xbf16, #tpu.memory_space<vmem>>, vector<16x112xbf16>,
      %c144_132 = arith.constant 144 : index
      %c256_133 = arith.constant 256 : index
      %124 = vector.load %arg11[%c144_132, %c256_133] : memref<400x512xbf16, #tpu.memory_space<vmem>>, vector<16x112xbf16>
      tpu.vector_store %arg11[%c144_132, %c256_133], %106 {strides = array<i32>} : memref<400x512xbf16, #tpu.memory_space<vmem>>, vector<16x112xbf16>,
      %c80_134 = arith.constant 80 : index
      %c384_135 = arith.constant 384 : index
      %125 = vector.load %arg11[%c80_134, %c384_135] : memref<400x512xbf16, #tpu.memory_space<vmem>>, vector<16x112xbf16>
      tpu.vector_store %arg11[%c80_134, %c384_135], %107 {strides = array<i32>} : memref<400x512xbf16, #tpu.memory_space<vmem>>, vector<16x112xbf16>,
      %c96_136 = arith.constant 96 : index
      %c384_137 = arith.constant 384 : index
      %126 = vector.load %arg11[%c96_136, %c384_137] : memref<400x512xbf16, #tpu.memory_space<vmem>>, vector<16x112xbf16>
      tpu.vector_store %arg11[%c96_136, %c384_137], %105 {strides = array<i32>} : memref<400x512xbf16, #tpu.memory_space<vmem>>, vector<16x112xbf16>,
      %c112_138 = arith.constant 112 : index
      %c384_139 = arith.constant 384 : index
      %127 = vector.load %arg11[%c112_138, %c384_139] : memref<400x512xbf16, #tpu.memory_space<vmem>>, vector<16x112xbf16>
      tpu.vector_store %arg11[%c112_138, %c384_139], %108 {strides = array<i32>} : memref<400x512xbf16, #tpu.memory_space<vmem>>, vector<16x112xbf16>,
      %c128_140 = arith.constant 128 : index
      %c384_141 = arith.constant 384 : index
      %128 = vector.load %arg11[%c128_140, %c384_141] : memref<400x512xbf16, #tpu.memory_space<vmem>>, vector<16x112xbf16>
      tpu.vector_store %arg11[%c128_140, %c384_141], %106 {strides = array<i32>} : memref<400x512xbf16, #tpu.memory_space<vmem>>, vector<16x112xbf16>,
      %c144_142 = arith.constant 144 : index
      %c384_143 = arith.constant 384 : index
      %129 = vector.load %arg11[%c144_142, %c384_143] : memref<400x512xbf16, #tpu.memory_space<vmem>>, vector<16x112xbf16>
      tpu.vector_store %arg11[%c144_142, %c384_143], %109 {strides = array<i32>} : memref<400x512xbf16, #tpu.memory_space<vmem>>, vector<16x112xbf16>,
      %c2_i32_144 = arith.constant 2 : i32
      %130 = arith.muli %c2_i32_144, %arg14 : i32
      %c3_i32 = arith.constant 3 : i32
      %131 = arith.addi %130, %c3_i32 : i32
      %132 = arith.index_cast %131 : i32 to index
      %c0_145 = arith.constant 0 : index
      %c0_146 = arith.constant 0 : index
      %133 = vector.load %arg9[%132, %c0_145, %c0_146] : memref<18x16x144xbf16, #tpu.memory_space<vmem>>, vector<1x16x144xbf16>
      %134 = vector.shape_cast %133 : vector<1x16x144xbf16> to vector<16x144xbf16>
      %c2_i32_147 = arith.constant 2 : i32
      %135 = arith.muli %c2_i32_147, %arg14 : i32
      %c3_i32_148 = arith.constant 3 : i32
      %136 = arith.addi %135, %c3_i32_148 : i32
      %137 = arith.index_cast %136 : i32 to index
      %c0_149 = arith.constant 0 : index
      %c0_150 = arith.constant 0 : index
      %138 = vector.load %arg10[%137, %c0_149, %c0_150] : memref<18x16x144xbf16, #tpu.memory_space<vmem>>, vector<1x16x144xbf16>
      %139 = vector.shape_cast %138 : vector<1x16x144xbf16> to vector<16x144xbf16>
      %140 = vector.extract_strided_slice %134 {offsets = [0, 0], sizes = [16, 112], strides = [1, 1]} : vector<16x144xbf16> to vector<16x112xbf16>
      %141 = vector.extract_strided_slice %134 {offsets = [0, 16], sizes = [16, 112], strides = [1, 1]} : vector<16x144xbf16> to vector<16x112xbf16>
      %142 = vector.extract_strided_slice %134 {offsets = [0, 32], sizes = [16, 112], strides = [1, 1]} : vector<16x144xbf16> to vector<16x112xbf16>
      %143 = vector.extract_strided_slice %139 {offsets = [0, 0], sizes = [16, 112], strides = [1, 1]} : vector<16x144xbf16> to vector<16x112xbf16>
      %144 = vector.extract_strided_slice %139 {offsets = [0, 16], sizes = [16, 112], strides = [1, 1]} : vector<16x144xbf16> to vector<16x112xbf16>
      %145 = vector.extract_strided_slice %139 {offsets = [0, 32], sizes = [16, 112], strides = [1, 1]} : vector<16x144xbf16> to vector<16x112xbf16>
      %c240 = arith.constant 240 : index
      %c0_151 = arith.constant 0 : index
      %146 = vector.load %arg11[%c240, %c0_151] : memref<400x512xbf16, #tpu.memory_space<vmem>>, vector<16x112xbf16>
      tpu.vector_store %arg11[%c240, %c0_151], %140 {strides = array<i32>} : memref<400x512xbf16, #tpu.memory_space<vmem>>, vector<16x112xbf16>,
      %c256_152 = arith.constant 256 : index
      %c0_153 = arith.constant 0 : index
      %147 = vector.load %arg11[%c256_152, %c0_153] : memref<400x512xbf16, #tpu.memory_space<vmem>>, vector<16x112xbf16>
      tpu.vector_store %arg11[%c256_152, %c0_153], %143 {strides = array<i32>} : memref<400x512xbf16, #tpu.memory_space<vmem>>, vector<16x112xbf16>,
      %c272 = arith.constant 272 : index
      %c0_154 = arith.constant 0 : index
      %148 = vector.load %arg11[%c272, %c0_154] : memref<400x512xbf16, #tpu.memory_space<vmem>>, vector<16x112xbf16>
      tpu.vector_store %arg11[%c272, %c0_154], %141 {strides = array<i32>} : memref<400x512xbf16, #tpu.memory_space<vmem>>, vector<16x112xbf16>,
      %c288 = arith.constant 288 : index
      %c0_155 = arith.constant 0 : index
      %149 = vector.load %arg11[%c288, %c0_155] : memref<400x512xbf16, #tpu.memory_space<vmem>>, vector<16x112xbf16>
      tpu.vector_store %arg11[%c288, %c0_155], %144 {strides = array<i32>} : memref<400x512xbf16, #tpu.memory_space<vmem>>, vector<16x112xbf16>,
      %c304 = arith.constant 304 : index
      %c0_156 = arith.constant 0 : index
      %150 = vector.load %arg11[%c304, %c0_156] : memref<400x512xbf16, #tpu.memory_space<vmem>>, vector<16x112xbf16>
      tpu.vector_store %arg11[%c304, %c0_156], %142 {strides = array<i32>} : memref<400x512xbf16, #tpu.memory_space<vmem>>, vector<16x112xbf16>,
      %c240_157 = arith.constant 240 : index
      %c128_158 = arith.constant 128 : index
      %151 = vector.load %arg11[%c240_157, %c128_158] : memref<400x512xbf16, #tpu.memory_space<vmem>>, vector<16x112xbf16>
      tpu.vector_store %arg11[%c240_157, %c128_158], %143 {strides = array<i32>} : memref<400x512xbf16, #tpu.memory_space<vmem>>, vector<16x112xbf16>,
      %c256_159 = arith.constant 256 : index
      %c128_160 = arith.constant 128 : index
      %152 = vector.load %arg11[%c256_159, %c128_160] : memref<400x512xbf16, #tpu.memory_space<vmem>>, vector<16x112xbf16>
      tpu.vector_store %arg11[%c256_159, %c128_160], %141 {strides = array<i32>} : memref<400x512xbf16, #tpu.memory_space<vmem>>, vector<16x112xbf16>,
      %c272_161 = arith.constant 272 : index
      %c128_162 = arith.constant 128 : index
      %153 = vector.load %arg11[%c272_161, %c128_162] : memref<400x512xbf16, #tpu.memory_space<vmem>>, vector<16x112xbf16>
      tpu.vector_store %arg11[%c272_161, %c128_162], %144 {strides = array<i32>} : memref<400x512xbf16, #tpu.memory_space<vmem>>, vector<16x112xbf16>,
      %c288_163 = arith.constant 288 : index
      %c128_164 = arith.constant 128 : index
      %154 = vector.load %arg11[%c288_163, %c128_164] : memref<400x512xbf16, #tpu.memory_space<vmem>>, vector<16x112xbf16>
      tpu.vector_store %arg11[%c288_163, %c128_164], %142 {strides = array<i32>} : memref<400x512xbf16, #tpu.memory_space<vmem>>, vector<16x112xbf16>,
      %c304_165 = arith.constant 304 : index
      %c128_166 = arith.constant 128 : index
      %155 = vector.load %arg11[%c304_165, %c128_166] : memref<400x512xbf16, #tpu.memory_space<vmem>>, vector<16x112xbf16>
      tpu.vector_store %arg11[%c304_165, %c128_166], %145 {strides = array<i32>} : memref<400x512xbf16, #tpu.memory_space<vmem>>, vector<16x112xbf16>,
      %c160_167 = arith.constant 160 : index
      %c256_168 = arith.constant 256 : index
      %156 = vector.load %arg11[%c160_167, %c256_168] : memref<400x512xbf16, #tpu.memory_space<vmem>>, vector<16x112xbf16>
      tpu.vector_store %arg11[%c160_167, %c256_168], %140 {strides = array<i32>} : memref<400x512xbf16, #tpu.memory_space<vmem>>, vector<16x112xbf16>,
      %c176_169 = arith.constant 176 : index
      %c256_170 = arith.constant 256 : index
      %157 = vector.load %arg11[%c176_169, %c256_170] : memref<400x512xbf16, #tpu.memory_space<vmem>>, vector<16x112xbf16>
      tpu.vector_store %arg11[%c176_169, %c256_170], %143 {strides = array<i32>} : memref<400x512xbf16, #tpu.memory_space<vmem>>, vector<16x112xbf16>,
      %c192_171 = arith.constant 192 : index
      %c256_172 = arith.constant 256 : index
      %158 = vector.load %arg11[%c192_171, %c256_172] : memref<400x512xbf16, #tpu.memory_space<vmem>>, vector<16x112xbf16>
      tpu.vector_store %arg11[%c192_171, %c256_172], %141 {strides = array<i32>} : memref<400x512xbf16, #tpu.memory_space<vmem>>, vector<16x112xbf16>,
      %c208_173 = arith.constant 208 : index
      %c256_174 = arith.constant 256 : index
      %159 = vector.load %arg11[%c208_173, %c256_174] : memref<400x512xbf16, #tpu.memory_space<vmem>>, vector<16x112xbf16>
      tpu.vector_store %arg11[%c208_173, %c256_174], %144 {strides = array<i32>} : memref<400x512xbf16, #tpu.memory_space<vmem>>, vector<16x112xbf16>,
      %c224_175 = arith.constant 224 : index
      %c256_176 = arith.constant 256 : index
      %160 = vector.load %arg11[%c224_175, %c256_176] : memref<400x512xbf16, #tpu.memory_space<vmem>>, vector<16x112xbf16>
      tpu.vector_store %arg11[%c224_175, %c256_176], %142 {strides = array<i32>} : memref<400x512xbf16, #tpu.memory_space<vmem>>, vector<16x112xbf16>,
      %c160_177 = arith.constant 160 : index
      %c384_178 = arith.constant 384 : index
      %161 = vector.load %arg11[%c160_177, %c384_178] : memref<400x512xbf16, #tpu.memory_space<vmem>>, vector<16x112xbf16>
      tpu.vector_store %arg11[%c160_177, %c384_178], %143 {strides = array<i32>} : memref<400x512xbf16, #tpu.memory_space<vmem>>, vector<16x112xbf16>,
      %c176_179 = arith.constant 176 : index
      %c384_180 = arith.constant 384 : index
      %162 = vector.load %arg11[%c176_179, %c384_180] : memref<400x512xbf16, #tpu.memory_space<vmem>>, vector<16x112xbf16>
      tpu.vector_store %arg11[%c176_179, %c384_180], %141 {strides = array<i32>} : memref<400x512xbf16, #tpu.memory_space<vmem>>, vector<16x112xbf16>,
      %c192_181 = arith.constant 192 : index
      %c384_182 = arith.constant 384 : index
      %163 = vector.load %arg11[%c192_181, %c384_182] : memref<400x512xbf16, #tpu.memory_space<vmem>>, vector<16x112xbf16>
      tpu.vector_store %arg11[%c192_181, %c384_182], %144 {strides = array<i32>} : memref<400x512xbf16, #tpu.memory_space<vmem>>, vector<16x112xbf16>,
      %c208_183 = arith.constant 208 : index
      %c384_184 = arith.constant 384 : index
      %164 = vector.load %arg11[%c208_183, %c384_184] : memref<400x512xbf16, #tpu.memory_space<vmem>>, vector<16x112xbf16>
      tpu.vector_store %arg11[%c208_183, %c384_184], %142 {strides = array<i32>} : memref<400x512xbf16, #tpu.memory_space<vmem>>, vector<16x112xbf16>,
      %c224_185 = arith.constant 224 : index
      %c384_186 = arith.constant 384 : index
      %165 = vector.load %arg11[%c224_185, %c384_186] : memref<400x512xbf16, #tpu.memory_space<vmem>>, vector<16x112xbf16>
      tpu.vector_store %arg11[%c224_185, %c384_186], %145 {strides = array<i32>} : memref<400x512xbf16, #tpu.memory_space<vmem>>, vector<16x112xbf16>,
      %c2_i32_187 = arith.constant 2 : i32
      %166 = arith.muli %c2_i32_187, %arg14 : i32
      %c4_i32 = arith.constant 4 : i32
      %167 = arith.addi %166, %c4_i32 : i32
      %168 = arith.index_cast %167 : i32 to index
      %c0_188 = arith.constant 0 : index
      %c0_189 = arith.constant 0 : index
      %169 = vector.load %arg9[%168, %c0_188, %c0_189] : memref<18x16x144xbf16, #tpu.memory_space<vmem>>, vector<1x16x144xbf16>
      %170 = vector.shape_cast %169 : vector<1x16x144xbf16> to vector<16x144xbf16>
      %c2_i32_190 = arith.constant 2 : i32
      %171 = arith.muli %c2_i32_190, %arg14 : i32
      %c4_i32_191 = arith.constant 4 : i32
      %172 = arith.addi %171, %c4_i32_191 : i32
      %173 = arith.index_cast %172 : i32 to index
      %c0_192 = arith.constant 0 : index
      %c0_193 = arith.constant 0 : index
      %174 = vector.load %arg10[%173, %c0_192, %c0_193] : memref<18x16x144xbf16, #tpu.memory_space<vmem>>, vector<1x16x144xbf16>
      %175 = vector.shape_cast %174 : vector<1x16x144xbf16> to vector<16x144xbf16>
      %176 = vector.extract_strided_slice %170 {offsets = [0, 0], sizes = [16, 112], strides = [1, 1]} : vector<16x144xbf16> to vector<16x112xbf16>
      %177 = vector.extract_strided_slice %170 {offsets = [0, 16], sizes = [16, 112], strides = [1, 1]} : vector<16x144xbf16> to vector<16x112xbf16>
      %178 = vector.extract_strided_slice %170 {offsets = [0, 32], sizes = [16, 112], strides = [1, 1]} : vector<16x144xbf16> to vector<16x112xbf16>
      %179 = vector.extract_strided_slice %175 {offsets = [0, 0], sizes = [16, 112], strides = [1, 1]} : vector<16x144xbf16> to vector<16x112xbf16>
      %180 = vector.extract_strided_slice %175 {offsets = [0, 16], sizes = [16, 112], strides = [1, 1]} : vector<16x144xbf16> to vector<16x112xbf16>
      %181 = vector.extract_strided_slice %175 {offsets = [0, 32], sizes = [16, 112], strides = [1, 1]} : vector<16x144xbf16> to vector<16x112xbf16>
      %c320 = arith.constant 320 : index
      %c0_194 = arith.constant 0 : index
      %182 = vector.load %arg11[%c320, %c0_194] : memref<400x512xbf16, #tpu.memory_space<vmem>>, vector<16x112xbf16>
      tpu.vector_store %arg11[%c320, %c0_194], %176 {strides = array<i32>} : memref<400x512xbf16, #tpu.memory_space<vmem>>, vector<16x112xbf16>,
      %c336 = arith.constant 336 : index
      %c0_195 = arith.constant 0 : index
      %183 = vector.load %arg11[%c336, %c0_195] : memref<400x512xbf16, #tpu.memory_space<vmem>>, vector<16x112xbf16>
      tpu.vector_store %arg11[%c336, %c0_195], %179 {strides = array<i32>} : memref<400x512xbf16, #tpu.memory_space<vmem>>, vector<16x112xbf16>,
      %c352 = arith.constant 352 : index
      %c0_196 = arith.constant 0 : index
      %184 = vector.load %arg11[%c352, %c0_196] : memref<400x512xbf16, #tpu.memory_space<vmem>>, vector<16x112xbf16>
      tpu.vector_store %arg11[%c352, %c0_196], %177 {strides = array<i32>} : memref<400x512xbf16, #tpu.memory_space<vmem>>, vector<16x112xbf16>,
      %c368 = arith.constant 368 : index
      %c0_197 = arith.constant 0 : index
      %185 = vector.load %arg11[%c368, %c0_197] : memref<400x512xbf16, #tpu.memory_space<vmem>>, vector<16x112xbf16>
      tpu.vector_store %arg11[%c368, %c0_197], %180 {strides = array<i32>} : memref<400x512xbf16, #tpu.memory_space<vmem>>, vector<16x112xbf16>,
      %c384_198 = arith.constant 384 : index
      %c0_199 = arith.constant 0 : index
      %186 = vector.load %arg11[%c384_198, %c0_199] : memref<400x512xbf16, #tpu.memory_space<vmem>>, vector<16x112xbf16>
      tpu.vector_store %arg11[%c384_198, %c0_199], %178 {strides = array<i32>} : memref<400x512xbf16, #tpu.memory_space<vmem>>, vector<16x112xbf16>,
      %c320_200 = arith.constant 320 : index
      %c128_201 = arith.constant 128 : index
      %187 = vector.load %arg11[%c320_200, %c128_201] : memref<400x512xbf16, #tpu.memory_space<vmem>>, vector<16x112xbf16>
      tpu.vector_store %arg11[%c320_200, %c128_201], %179 {strides = array<i32>} : memref<400x512xbf16, #tpu.memory_space<vmem>>, vector<16x112xbf16>,
      %c336_202 = arith.constant 336 : index
      %c128_203 = arith.constant 128 : index
      %188 = vector.load %arg11[%c336_202, %c128_203] : memref<400x512xbf16, #tpu.memory_space<vmem>>, vector<16x112xbf16>
      tpu.vector_store %arg11[%c336_202, %c128_203], %177 {strides = array<i32>} : memref<400x512xbf16, #tpu.memory_space<vmem>>, vector<16x112xbf16>,
      %c352_204 = arith.constant 352 : index
      %c128_205 = arith.constant 128 : index
      %189 = vector.load %arg11[%c352_204, %c128_205] : memref<400x512xbf16, #tpu.memory_space<vmem>>, vector<16x112xbf16>
      tpu.vector_store %arg11[%c352_204, %c128_205], %180 {strides = array<i32>} : memref<400x512xbf16, #tpu.memory_space<vmem>>, vector<16x112xbf16>,
      %c368_206 = arith.constant 368 : index
      %c128_207 = arith.constant 128 : index
      %190 = vector.load %arg11[%c368_206, %c128_207] : memref<400x512xbf16, #tpu.memory_space<vmem>>, vector<16x112xbf16>
      tpu.vector_store %arg11[%c368_206, %c128_207], %178 {strides = array<i32>} : memref<400x512xbf16, #tpu.memory_space<vmem>>, vector<16x112xbf16>,
      %c384_208 = arith.constant 384 : index
      %c128_209 = arith.constant 128 : index
      %191 = vector.load %arg11[%c384_208, %c128_209] : memref<400x512xbf16, #tpu.memory_space<vmem>>, vector<16x112xbf16>
      tpu.vector_store %arg11[%c384_208, %c128_209], %181 {strides = array<i32>} : memref<400x512xbf16, #tpu.memory_space<vmem>>, vector<16x112xbf16>,
      %c240_210 = arith.constant 240 : index
      %c256_211 = arith.constant 256 : index
      %192 = vector.load %arg11[%c240_210, %c256_211] : memref<400x512xbf16, #tpu.memory_space<vmem>>, vector<16x112xbf16>
      tpu.vector_store %arg11[%c240_210, %c256_211], %176 {strides = array<i32>} : memref<400x512xbf16, #tpu.memory_space<vmem>>, vector<16x112xbf16>,
      %c256_212 = arith.constant 256 : index
      %c256_213 = arith.constant 256 : index
      %193 = vector.load %arg11[%c256_212, %c256_213] : memref<400x512xbf16, #tpu.memory_space<vmem>>, vector<16x112xbf16>
      tpu.vector_store %arg11[%c256_212, %c256_213], %179 {strides = array<i32>} : memref<400x512xbf16, #tpu.memory_space<vmem>>, vector<16x112xbf16>,
      %c272_214 = arith.constant 272 : index
      %c256_215 = arith.constant 256 : index
      %194 = vector.load %arg11[%c272_214, %c256_215] : memref<400x512xbf16, #tpu.memory_space<vmem>>, vector<16x112xbf16>
      tpu.vector_store %arg11[%c272_214, %c256_215], %177 {strides = array<i32>} : memref<400x512xbf16, #tpu.memory_space<vmem>>, vector<16x112xbf16>,
      %c288_216 = arith.constant 288 : index
      %c256_217 = arith.constant 256 : index
      %195 = vector.load %arg11[%c288_216, %c256_217] : memref<400x512xbf16, #tpu.memory_space<vmem>>, vector<16x112xbf16>
      tpu.vector_store %arg11[%c288_216, %c256_217], %180 {strides = array<i32>} : memref<400x512xbf16, #tpu.memory_space<vmem>>, vector<16x112xbf16>,
      %c304_218 = arith.constant 304 : index
      %c256_219 = arith.constant 256 : index
      %196 = vector.load %arg11[%c304_218, %c256_219] : memref<400x512xbf16, #tpu.memory_space<vmem>>, vector<16x112xbf16>
      tpu.vector_store %arg11[%c304_218, %c256_219], %178 {strides = array<i32>} : memref<400x512xbf16, #tpu.memory_space<vmem>>, vector<16x112xbf16>,
      %c240_220 = arith.constant 240 : index
      %c384_221 = arith.constant 384 : index
      %197 = vector.load %arg11[%c240_220, %c384_221] : memref<400x512xbf16, #tpu.memory_space<vmem>>, vector<16x112xbf16>
      tpu.vector_store %arg11[%c240_220, %c384_221], %179 {strides = array<i32>} : memref<400x512xbf16, #tpu.memory_space<vmem>>, vector<16x112xbf16>,
      %c256_222 = arith.constant 256 : index
      %c384_223 = arith.constant 384 : index
      %198 = vector.load %arg11[%c256_222, %c384_223] : memref<400x512xbf16, #tpu.memory_space<vmem>>, vector<16x112xbf16>
      tpu.vector_store %arg11[%c256_222, %c384_223], %177 {strides = array<i32>} : memref<400x512xbf16, #tpu.memory_space<vmem>>, vector<16x112xbf16>,
      %c272_224 = arith.constant 272 : index
      %c384_225 = arith.constant 384 : index
      %199 = vector.load %arg11[%c272_224, %c384_225] : memref<400x512xbf16, #tpu.memory_space<vmem>>, vector<16x112xbf16>
      tpu.vector_store %arg11[%c272_224, %c384_225], %180 {strides = array<i32>} : memref<400x512xbf16, #tpu.memory_space<vmem>>, vector<16x112xbf16>,
      %c288_226 = arith.constant 288 : index
      %c384_227 = arith.constant 384 : index
      %200 = vector.load %arg11[%c288_226, %c384_227] : memref<400x512xbf16, #tpu.memory_space<vmem>>, vector<16x112xbf16>
      tpu.vector_store %arg11[%c288_226, %c384_227], %178 {strides = array<i32>} : memref<400x512xbf16, #tpu.memory_space<vmem>>, vector<16x112xbf16>,
      %c304_228 = arith.constant 304 : index
      %c384_229 = arith.constant 384 : index
      %201 = vector.load %arg11[%c304_228, %c384_229] : memref<400x512xbf16, #tpu.memory_space<vmem>>, vector<16x112xbf16>
      tpu.vector_store %arg11[%c304_228, %c384_229], %181 {strides = array<i32>} : memref<400x512xbf16, #tpu.memory_space<vmem>>, vector<16x112xbf16>,
      %c2_i32_230 = arith.constant 2 : i32
      %202 = arith.muli %c2_i32_230, %arg14 : i32
      %c5_i32 = arith.constant 5 : i32
      %203 = arith.addi %202, %c5_i32 : i32
      %204 = arith.index_cast %203 : i32 to index
      %c0_231 = arith.constant 0 : index
      %c0_232 = arith.constant 0 : index
      %205 = vector.load %arg9[%204, %c0_231, %c0_232] : memref<18x16x144xbf16, #tpu.memory_space<vmem>>, vector<1x16x144xbf16>
      %206 = vector.shape_cast %205 : vector<1x16x144xbf16> to vector<16x144xbf16>
      %c2_i32_233 = arith.constant 2 : i32
      %207 = arith.muli %c2_i32_233, %arg14 : i32
      %c5_i32_234 = arith.constant 5 : i32
      %208 = arith.addi %207, %c5_i32_234 : i32
      %209 = arith.index_cast %208 : i32 to index
      %c0_235 = arith.constant 0 : index
      %c0_236 = arith.constant 0 : index
      %210 = vector.load %arg10[%209, %c0_235, %c0_236] : memref<18x16x144xbf16, #tpu.memory_space<vmem>>, vector<1x16x144xbf16>
      %211 = vector.shape_cast %210 : vector<1x16x144xbf16> to vector<16x144xbf16>
      %212 = vector.extract_strided_slice %206 {offsets = [0, 0], sizes = [16, 112], strides = [1, 1]} : vector<16x144xbf16> to vector<16x112xbf16>
      %213 = vector.extract_strided_slice %206 {offsets = [0, 16], sizes = [16, 112], strides = [1, 1]} : vector<16x144xbf16> to vector<16x112xbf16>
      %214 = vector.extract_strided_slice %206 {offsets = [0, 32], sizes = [16, 112], strides = [1, 1]} : vector<16x144xbf16> to vector<16x112xbf16>
      %215 = vector.extract_strided_slice %211 {offsets = [0, 0], sizes = [16, 112], strides = [1, 1]} : vector<16x144xbf16> to vector<16x112xbf16>
      %216 = vector.extract_strided_slice %211 {offsets = [0, 16], sizes = [16, 112], strides = [1, 1]} : vector<16x144xbf16> to vector<16x112xbf16>
      %217 = vector.extract_strided_slice %211 {offsets = [0, 32], sizes = [16, 112], strides = [1, 1]} : vector<16x144xbf16> to vector<16x112xbf16>
      %c320_237 = arith.constant 320 : index
      %c256_238 = arith.constant 256 : index
      %218 = vector.load %arg11[%c320_237, %c256_238] : memref<400x512xbf16, #tpu.memory_space<vmem>>, vector<16x112xbf16>
      tpu.vector_store %arg11[%c320_237, %c256_238], %212 {strides = array<i32>} : memref<400x512xbf16, #tpu.memory_space<vmem>>, vector<16x112xbf16>,
      %c336_239 = arith.constant 336 : index
      %c256_240 = arith.constant 256 : index
      %219 = vector.load %arg11[%c336_239, %c256_240] : memref<400x512xbf16, #tpu.memory_space<vmem>>, vector<16x112xbf16>
      tpu.vector_store %arg11[%c336_239, %c256_240], %215 {strides = array<i32>} : memref<400x512xbf16, #tpu.memory_space<vmem>>, vector<16x112xbf16>,
      %c352_241 = arith.constant 352 : index
      %c256_242 = arith.constant 256 : index
      %220 = vector.load %arg11[%c352_241, %c256_242] : memref<400x512xbf16, #tpu.memory_space<vmem>>, vector<16x112xbf16>
      tpu.vector_store %arg11[%c352_241, %c256_242], %213 {strides = array<i32>} : memref<400x512xbf16, #tpu.memory_space<vmem>>, vector<16x112xbf16>,
      %c368_243 = arith.constant 368 : index
      %c256_244 = arith.constant 256 : index
      %221 = vector.load %arg11[%c368_243, %c256_244] : memref<400x512xbf16, #tpu.memory_space<vmem>>, vector<16x112xbf16>
      tpu.vector_store %arg11[%c368_243, %c256_244], %216 {strides = array<i32>} : memref<400x512xbf16, #tpu.memory_space<vmem>>, vector<16x112xbf16>,
      %c384_245 = arith.constant 384 : index
      %c256_246 = arith.constant 256 : index
      %222 = vector.load %arg11[%c384_245, %c256_246] : memref<400x512xbf16, #tpu.memory_space<vmem>>, vector<16x112xbf16>
      tpu.vector_store %arg11[%c384_245, %c256_246], %214 {strides = array<i32>} : memref<400x512xbf16, #tpu.memory_space<vmem>>, vector<16x112xbf16>,
      %c320_247 = arith.constant 320 : index
      %c384_248 = arith.constant 384 : index
      %223 = vector.load %arg11[%c320_247, %c384_248] : memref<400x512xbf16, #tpu.memory_space<vmem>>, vector<16x112xbf16>
      tpu.vector_store %arg11[%c320_247, %c384_248], %215 {strides = array<i32>} : memref<400x512xbf16, #tpu.memory_space<vmem>>, vector<16x112xbf16>,
      %c336_249 = arith.constant 336 : index
      %c384_250 = arith.constant 384 : index
      %224 = vector.load %arg11[%c336_249, %c384_250] : memref<400x512xbf16, #tpu.memory_space<vmem>>, vector<16x112xbf16>
      tpu.vector_store %arg11[%c336_249, %c384_250], %213 {strides = array<i32>} : memref<400x512xbf16, #tpu.memory_space<vmem>>, vector<16x112xbf16>,
      %c352_251 = arith.constant 352 : index
      %c384_252 = arith.constant 384 : index
      %225 = vector.load %arg11[%c352_251, %c384_252] : memref<400x512xbf16, #tpu.memory_space<vmem>>, vector<16x112xbf16>
      tpu.vector_store %arg11[%c352_251, %c384_252], %216 {strides = array<i32>} : memref<400x512xbf16, #tpu.memory_space<vmem>>, vector<16x112xbf16>,
      %c368_253 = arith.constant 368 : index
      %c384_254 = arith.constant 384 : index
      %226 = vector.load %arg11[%c368_253, %c384_254] : memref<400x512xbf16, #tpu.memory_space<vmem>>, vector<16x112xbf16>
      tpu.vector_store %arg11[%c368_253, %c384_254], %214 {strides = array<i32>} : memref<400x512xbf16, #tpu.memory_space<vmem>>, vector<16x112xbf16>,
      %c384_255 = arith.constant 384 : index
      %c384_256 = arith.constant 384 : index
      %227 = vector.load %arg11[%c384_255, %c384_256] : memref<400x512xbf16, #tpu.memory_space<vmem>>, vector<16x112xbf16>
      tpu.vector_store %arg11[%c384_255, %c384_256], %217 {strides = array<i32>} : memref<400x512xbf16, #tpu.memory_space<vmem>>, vector<16x112xbf16>,
      %c0_257 = arith.constant 0 : index
      %c0_258 = arith.constant 0 : index
      %228 = vector.load %arg11[%c0_257, %c0_258] : memref<400x512xbf16, #tpu.memory_space<vmem>>, vector<400x512xbf16>
      %cst_259 = arith.constant dense<0.000000e+00> : vector<32x512xf32>
      %229 = tpu.matmul %5, %228, %cst_259 {dimension_numbers = #tpu.dot_dimension_numbers<[1], [0], [0], [1], [0, 0, 1, 1], [], []>} : vector<32x400xbf16>, vector<400x512xbf16>, vector<32x512xf32> -> vector<32x512xf32>
      %230 = vector.extract_strided_slice %229 {offsets = [0, 0], sizes = [32, 112], strides = [1, 1]} : vector<32x512xf32> to vector<32x112xf32>
      %231 = vector.extract_strided_slice %229 {offsets = [0, 128], sizes = [32, 112], strides = [1, 1]} : vector<32x512xf32> to vector<32x112xf32>
      %232 = arith.maximumf %230, %231 : vector<32x112xf32>
      %233 = vector.extract_strided_slice %229 {offsets = [0, 256], sizes = [32, 112], strides = [1, 1]} : vector<32x512xf32> to vector<32x112xf32>
      %234 = vector.extract_strided_slice %229 {offsets = [0, 384], sizes = [32, 112], strides = [1, 1]} : vector<32x512xf32> to vector<32x112xf32>
      %235 = arith.maximumf %233, %234 : vector<32x112xf32>
      %236 = arith.maximumf %232, %235 : vector<32x112xf32>
      %237 = vector.broadcast %6 : vector<32x1xf32> to vector<32x112xf32>
      %238 = arith.addf %236, %237 : vector<32x112xf32>
      %cst_260 = arith.constant 0.000000e+00 : f32
      %239 = vector.broadcast %cst_260 : f32 to vector<32x112xf32>
      %240 = arith.maximumf %238, %239 : vector<32x112xf32>
      %c0_261 = arith.constant 0 : index
      %c0_262 = arith.constant 0 : index
      %241 = vector.load %arg12[%c0_261, %c0_262] : memref<32x112xf32, #tpu.memory_space<vmem>>, vector<32x112xf32>
      %242 = arith.index_cast %arg14 : i32 to index
      %c0_263 = arith.constant 0 : index
      %c0_264 = arith.constant 0 : index
      %243 = vector.load %arg6[%242, %c0_263, %c0_264] : memref<14x32x112xf32, #tpu.memory_space<vmem>>, vector<1x32x112xf32>
      %244 = vector.shape_cast %243 : vector<1x32x112xf32> to vector<32x112xf32>
      %245 = arith.mulf %244, %240 : vector<32x112xf32>
      %246 = arith.addf %241, %245 : vector<32x112xf32>
      %c0_265 = arith.constant 0 : index
      %c0_266 = arith.constant 0 : index
      %247 = vector.load %arg12[%c0_265, %c0_266] : memref<32x112xf32, #tpu.memory_space<vmem>>, vector<32x112xf32>
      tpu.vector_store %arg12[%c0_265, %c0_266], %246 {strides = array<i32>} : memref<32x112xf32, #tpu.memory_space<vmem>>, vector<32x112xf32>,
      %c0_267 = arith.constant 0 : index
      %c0_268 = arith.constant 0 : index
      %248 = vector.load %arg13[%c0_267, %c0_268] : memref<32x112xf32, #tpu.memory_space<vmem>>, vector<32x112xf32>
      %c7_i32_269 = arith.constant 7 : i32
      %249 = arith.addi %c7_i32_269, %arg14 : i32
      %250 = arith.index_cast %249 : i32 to index
      %c0_270 = arith.constant 0 : index
      %c0_271 = arith.constant 0 : index
      %251 = vector.load %arg6[%250, %c0_270, %c0_271] : memref<14x32x112xf32, #tpu.memory_space<vmem>>, vector<1x32x112xf32>
      %252 = vector.shape_cast %251 : vector<1x32x112xf32> to vector<32x112xf32>
      %253 = arith.mulf %252, %240 : vector<32x112xf32>
      %254 = arith.addf %248, %253 : vector<32x112xf32>
      %c0_272 = arith.constant 0 : index
      %c0_273 = arith.constant 0 : index
      %255 = vector.load %arg13[%c0_272, %c0_273] : memref<32x112xf32, #tpu.memory_space<vmem>>, vector<32x112xf32>
      tpu.vector_store %arg13[%c0_272, %c0_273], %254 {strides = array<i32>} : memref<32x112xf32, #tpu.memory_space<vmem>>, vector<32x112xf32>,
    }
    %c7_i32_19 = arith.constant 7 : i32
    %c0_20 = arith.constant 0 : index
    %c0_21 = arith.constant 0 : index
    %12 = vector.load %arg12[%c0_20, %c0_21] : memref<32x112xf32, #tpu.memory_space<vmem>>, vector<32x112xf32>
    %cst_22 = arith.constant dense<0.000000e+00> : vector<32xf32>
    %13 = vector.multi_reduction <add>, %12, %cst_22 [1] : vector<32x112xf32> to vector<32xf32>
    %14 = vector.shape_cast %13 : vector<32xf32> to vector<32x1xf32>
    %cst_23 = arith.constant dense<0.000000e+00> : vector<1xf32>
    %15 = vector.multi_reduction <add>, %14, %cst_23 [0] : vector<32x1xf32> to vector<1xf32>
    %16 = vector.shape_cast %15 : vector<1xf32> to vector<1x1xf32>
    %c0_24 = arith.constant 0 : index
    %c0_25 = arith.constant 0 : index
    %17 = vector.load %arg13[%c0_24, %c0_25] : memref<32x112xf32, #tpu.memory_space<vmem>>, vector<32x112xf32>
    %cst_26 = arith.constant dense<0.000000e+00> : vector<32xf32>
    %18 = vector.multi_reduction <add>, %17, %cst_26 [1] : vector<32x112xf32> to vector<32xf32>
    %19 = vector.shape_cast %18 : vector<32xf32> to vector<32x1xf32>
    %cst_27 = arith.constant dense<0.000000e+00> : vector<1xf32>
    %20 = vector.multi_reduction <add>, %19, %cst_27 [0] : vector<32x1xf32> to vector<1xf32>
    %21 = vector.shape_cast %20 : vector<1xf32> to vector<1x1xf32>
    %c0_28 = arith.constant 0 : index
    %c0_29 = arith.constant 0 : index
    %22 = vector.load %arg7[%c0_28, %c0_29] : memref<1x2xf32, #tpu.memory_space<vmem>>, vector<1x1xf32>
    %23 = arith.addf %16, %22 : vector<1x1xf32>
    %c0_30 = arith.constant 0 : index
    %c0_31 = arith.constant 0 : index
    %c0_32 = arith.constant 0 : index
    %24 = vector.load %arg8[%c0_30, %c0_31, %c0_32] : memref<1x1x2xf32, #tpu.memory_space<vmem>>, vector<1x1x1xf32>
    %25 = vector.shape_cast %24 : vector<1x1x1xf32> to vector<1x1xf32>
    %26 = vector.shape_cast %23 : vector<1x1xf32> to vector<1x1x1xf32>
    tpu.vector_store %arg8[%c0_30, %c0_31, %c0_32], %26 {strides = array<i32>} : memref<1x1x2xf32, #tpu.memory_space<vmem>>, vector<1x1x1xf32>,
    %c0_33 = arith.constant 0 : index
    %c1 = arith.constant 1 : index
    %27 = vector.load %arg7[%c0_33, %c1] : memref<1x2xf32, #tpu.memory_space<vmem>>, vector<1x1xf32>
    %28 = arith.addf %21, %27 : vector<1x1xf32>
    %c0_34 = arith.constant 0 : index
    %c0_35 = arith.constant 0 : index
    %c1_36 = arith.constant 1 : index
    %29 = vector.load %arg8[%c0_34, %c0_35, %c1_36] : memref<1x1x2xf32, #tpu.memory_space<vmem>>, vector<1x1x1xf32>
    %30 = vector.shape_cast %29 : vector<1x1x1xf32> to vector<1x1xf32>
    %31 = vector.shape_cast %28 : vector<1x1xf32> to vector<1x1x1xf32>
    tpu.vector_store %arg8[%c0_34, %c0_35, %c1_36], %31 {strides = array<i32>} : memref<1x1x2xf32, #tpu.memory_space<vmem>>, vector<1x1x1xf32>,
    return
  }
  func.func @transform_0(%arg0: i32) -> (i32, i32, i32, i32) {
    %c0_i32 = arith.constant 0 : i32
    %c0_i32_0 = arith.constant 0 : i32
    %c0_i32_1 = arith.constant 0 : i32
    %c0_i32_2 = arith.constant 0 : i32
    return %arg0, %c0_i32, %c0_i32_0, %c0_i32_1 : i32, i32, i32, i32
  }
  func.func @transform_1(%arg0: i32) -> (i32, i32, i32) {
    %c0_i32 = arith.constant 0 : i32
    %c0_i32_0 = arith.constant 0 : i32
    %c0_i32_1 = arith.constant 0 : i32
    %c0_i32_2 = arith.constant 0 : i32
    return %c0_i32, %c0_i32_0, %c0_i32_1 : i32, i32, i32
  }
  func.func @transform_2(%arg0: i32) -> (i32, i32) {
    %c0_i32 = arith.constant 0 : i32
    %c0_i32_0 = arith.constant 0 : i32
    %c0_i32_1 = arith.constant 0 : i32
    return %c0_i32, %c0_i32_0 : i32, i32
  }
  func.func @transform_3(%arg0: i32) -> (i32, i32) {
    %c0_i32 = arith.constant 0 : i32
    %c0_i32_0 = arith.constant 0 : i32
    %c0_i32_1 = arith.constant 0 : i32
    return %c0_i32, %c0_i32_0 : i32, i32
  }
  func.func @transform_4(%arg0: i32) -> (i32, i32) {
    %c0_i32 = arith.constant 0 : i32
    %c0_i32_0 = arith.constant 0 : i32
    %c0_i32_1 = arith.constant 0 : i32
    return %c0_i32, %c0_i32_0 : i32, i32
  }
  func.func @transform_5(%arg0: i32) -> (i32, i32, i32) {
    %c0_i32 = arith.constant 0 : i32
    %c0_i32_0 = arith.constant 0 : i32
    %c0_i32_1 = arith.constant 0 : i32
    %c0_i32_2 = arith.constant 0 : i32
    return %c0_i32, %c0_i32_0, %c0_i32_1 : i32, i32, i32
  }
  func.func @transform_6(%arg0: i32) -> (i32, i32) {
    %c0_i32 = arith.constant 0 : i32
    %c0_i32_0 = arith.constant 0 : i32
    %c0_i32_1 = arith.constant 0 : i32
    return %c0_i32, %c0_i32_0 : i32, i32
  }
  func.func @transform_7(%arg0: i32) -> (i32, i32, i32) {
    %c0_i32 = arith.constant 0 : i32
    %c0_i32_0 = arith.constant 0 : i32
    %c0_i32_1 = arith.constant 0 : i32
    return %arg0, %c0_i32, %c0_i32_0 : i32, i32, i32
  }
}

</mosaic_0001>

<llo_original>
// kernel: cnn_forward.1
$region0: #{cnn_forward.1}
  #allocation0 [shape = 'u32[]', space=smem, size = 0x4, offset = 0x4, fixed_abs, tag = 'smem constant byte address 0x4 - core index']
  #allocation1 [shape = 'u32[144,128]{1,0:T(1,128)}', space=vmem, size = 0x12000, scoped, tag = 'internal scratch']
  #allocation2 [shape = 'bf16[18,16,144]{2,1,0:T(8,128)(2,1)}', space=vmem, size = 0x24000, scoped, tag = 'scratch operand']
  #allocation3 [shape = 'bf16[18,16,144]{2,1,0:T(8,128)(2,1)}', space=vmem, size = 0x24000, scoped, tag = 'scratch operand']
  #allocation4 [shape = 'bf16[400,512]{1,0:T(8,128)(2,1)}', space=vmem, size = 0x64000, scoped, tag = 'scratch operand']
  #allocation5 [shape = 'f32[32,112]{1,0:T(8,128)}', space=vmem, size = 0x4000, scoped, tag = 'scratch operand']
  #allocation6 [shape = 'f32[32,112]{1,0:T(8,128)}', space=vmem, size = 0x4000, scoped, tag = 'scratch operand']
  %s0 = inlined_call_operand.vmem [shape: f32[2,32,4,128], index: 0, kind: input, shape index: {}]
  %s1 = inlined_call_operand.vmem [shape: f32[25,16,128], index: 1, kind: input, shape index: {}]
  %s2 = inlined_call_operand.vmem [shape: f32[16,1], index: 2, kind: input, shape index: {}]
  %s3 = inlined_call_operand.vmem [shape: bf16[32,400], index: 3, kind: input, shape index: {}]
  %s4 = inlined_call_operand.vmem [shape: f32[32,1], index: 4, kind: input, shape index: {}]
  %s5 = inlined_call_operand.vmem [shape: f32[14,32,112], index: 5, kind: input, shape index: {}]
  %s6 = inlined_call_operand.vmem [shape: f32[1,2], index: 6, kind: input, shape index: {}]
  %s7 = inlined_call_operand.hbm [shape: f32[2,1,2], index: 7, kind: output, shape index: {}]
  %s8 = sld [smem:[#allocation0]]
  $region75: #{cnn_forward.1} parent=0
    _
  %s10 = ssub.s32 1, %s8
  %s11 = scalar_select 0, %s10, %s8
  $region1: #{cnn_forward.1} parent=0
    #allocation7 [shape = 'u8[1024]{0}', space=vmem, size = 0x400, scoped, tag = 'output window, operand 0']
    #allocation8 [shape = 's32[2]{0}', space=sflag, size = 0x8, scoped, tag = 'scoped memory for cnn_forward.1']
    %12 = vsyncpa [#allocation8], 0
    %s13 = scalar_lea.sflag [#allocation8], 1
    %14 = vsyncpa %s13, 0
    loop: start=0, step=1, limit=4
    $region2: #{cnn_forward.1} parent=1 // loop_pre_header
      _
    $region3: #{cnn_forward.1} parent=1 // loop_header
      %s16 = sphi 0, %s20
      %p17 = scmp.ge.s32.totalorder %s16, 4
      %s26 = sphi 0, %s28
      %s29 = sphi 0, %s26
      %s30 = sphi 0, %s29
      %s46 = sphi 0, %s30
      %s50 = sphi 0, %s50
      %s52 = sphi 0, %s50
      %s53 = sphi 0, %s52
      %s67 = sphi 0, %s53
      %s71 = sphi 0, %s71
      %s73 = sphi 0, %s71
      %s74 = sphi 0, %s73
      %s88 = sphi 0, %s74
      %s92 = sphi 0, %s92
      %s94 = sphi 0, %s92
      %s95 = sphi 0, %s94
      %s109 = sphi 0, %s95
      %s113 = sphi 0, %s113
      %s115 = sphi 0, %s113
      %s116 = sphi 0, %s115
      %s130 = sphi 0, %s116
      %s134 = sphi 0, %s134
      %s136 = sphi 0, %s134
      %s137 = sphi 0, %s136
      %s151 = sphi 0, %s137
      %s155 = sphi 0, %s155
      %s157 = sphi 0, %s155
      %s158 = sphi 0, %s157
      %s172 = sphi 0, %s158
      %s178 = sphi 0, %s180
      %s181 = sphi 0, %s178
      %s182 = sphi 0, %s181
      %s198 = sphi 0, %s182
    $region4: #{cnn_forward.1} parent=1 // loop_header_branch
      %19 = sbr.rel (%p17) target = $region8
    $region5: #{cnn_forward.1} parent=1 // loop_body
      %s21 = ssub.s32 %s16, 1
      %s22 = ssub.s32 %s16, 2
      %s23 = sadd.s32 %s16, 1
      %s24 = ssub.s32 %s16, %s23
      %p25 = scmp.eq.s32.totalorder %s24, 0
      %s27 = sadd.s32 %s26, 1
      %s28 = scalar_select %p25, %s26, %s27
      %p31 = pneg %p25
      %p32 = scmp.eq.s32.totalorder %s16, 1
      %p33 = por %p31, %p32
      %p34 = scmp.ne.s32.totalorder %s26, %s29
      %p35 = scmp.eq.s32.totalorder %s16, 0
      %p36 = por %p34, %p35
      %p37 = scmp.ne.s32.totalorder %s26, %s29
      %p38 = scmp.eq.s32.totalorder %s21, 1
      %p39 = por %p37, %p38
      %p40 = scmp.ne.s32.totalorder %s29, %s30
      %p41 = scmp.eq.s32.totalorder %s21, 0
      %p42 = por %p40, %p41
      %p43 = scmp.ne.s32.totalorder %s29, %s30
      %p44 = scmp.eq.s32.totalorder %s22, 1
      %p45 = por %p43, %p44
      %p47 = scmp.ne.s32.totalorder %s30, %s46
      %p48 = scmp.eq.s32.totalorder %s22, 0
      %p49 = por %p47, %p48
      %s51 = sadd.s32 %s50, 1
      %p54 = scmp.eq.s32.totalorder %s16, 1
      %p55 = scmp.ne.s32.totalorder %s50, %s52
      %p56 = scmp.eq.s32.totalorder %s16, 0
      %p57 = por %p55, %p56
      %p58 = scmp.ne.s32.totalorder %s50, %s52
      %p59 = scmp.eq.s32.totalorder %s21, 1
      %p60 = por %p58, %p59
      %p61 = scmp.ne.s32.totalorder %s52, %s53
      %p62 = scmp.eq.s32.totalorder %s21, 0
      %p63 = por %p61, %p62
      %p64 = scmp.ne.s32.totalorder %s52, %s53
      %p65 = scmp.eq.s32.totalorder %s22, 1
      %p66 = por %p64, %p65
      %p68 = scmp.ne.s32.totalorder %s53, %s67
      %p69 = scmp.eq.s32.totalorder %s22, 0
      %p70 = por %p68, %p69
      %s72 = sadd.s32 %s71, 1
      %p75 = scmp.eq.s32.totalorder %s16, 1
      %p76 = scmp.ne.s32.totalorder %s71, %s73
      %p77 = scmp.eq.s32.totalorder %s16, 0
      %p78 = por %p76, %p77
      %p79 = scmp.ne.s32.totalorder %s71, %s73
      %p80 = scmp.eq.s32.totalorder %s21, 1
      %p81 = por %p79, %p80
      %p82 = scmp.ne.s32.totalorder %s73, %s74
      %p83 = scmp.eq.s32.totalorder %s21, 0
      %p84 = por %p82, %p83
      %p85 = scmp.ne.s32.totalorder %s73, %s74
      %p86 = scmp.eq.s32.totalorder %s22, 1
      %p87 = por %p85, %p86
      %p89 = scmp.ne.s32.totalorder %s74, %s88
      %p90 = scmp.eq.s32.totalorder %s22, 0
      %p91 = por %p89, %p90
      %s93 = sadd.s32 %s92, 1
      %p96 = scmp.eq.s32.totalorder %s16, 1
      %p97 = scmp.ne.s32.totalorder %s92, %s94
      %p98 = scmp.eq.s32.totalorder %s16, 0
      %p99 = por %p97, %p98
      %p100 = scmp.ne.s32.totalorder %s92, %s94
      %p101 = scmp.eq.s32.totalorder %s21, 1
      %p102 = por %p100, %p101
      %p103 = scmp.ne.s32.totalorder %s94, %s95
      %p104 = scmp.eq.s32.totalorder %s21, 0
      %p105 = por %p103, %p104
      %p106 = scmp.ne.s32.totalorder %s94, %s95
      %p107 = scmp.eq.s32.totalorder %s22, 1
      %p108 = por %p106, %p107
      %p110 = scmp.ne.s32.totalorder %s95, %s109
      %p111 = scmp.eq.s32.totalorder %s22, 0
      %p112 = por %p110, %p111
      %s114 = sadd.s32 %s113, 1
      %p117 = scmp.eq.s32.totalorder %s16, 1
      %p118 = scmp.ne.s32.totalorder %s113, %s115
      %p119 = scmp.eq.s32.totalorder %s16, 0
      %p120 = por %p118, %p119
      %p121 = scmp.ne.s32.totalorder %s113, %s115
      %p122 = scmp.eq.s32.totalorder %s21, 1
      %p123 = por %p121, %p122
      %p124 = scmp.ne.s32.totalorder %s115, %s116
      %p125 = scmp.eq.s32.totalorder %s21, 0
      %p126 = por %p124, %p125
      %p127 = scmp.ne.s32.totalorder %s115, %s116
      %p128 = scmp.eq.s32.totalorder %s22, 1
      %p129 = por %p127, %p128
      %p131 = scmp.ne.s32.totalorder %s116, %s130
      %p132 = scmp.eq.s32.totalorder %s22, 0
      %p133 = por %p131, %p132
      %s135 = sadd.s32 %s134, 1
      %p138 = scmp.eq.s32.totalorder %s16, 1
      %p139 = scmp.ne.s32.totalorder %s134, %s136
      %p140 = scmp.eq.s32.totalorder %s16, 0
      %p141 = por %p139, %p140
      %p142 = scmp.ne.s32.totalorder %s134, %s136
      %p143 = scmp.eq.s32.totalorder %s21, 1
      %p144 = por %p142, %p143
      %p145 = scmp.ne.s32.totalorder %s136, %s137
      %p146 = scmp.eq.s32.totalorder %s21, 0
      %p147 = por %p145, %p146
      %p148 = scmp.ne.s32.totalorder %s136, %s137
      %p149 = scmp.eq.s32.totalorder %s22, 1
      %p150 = por %p148, %p149
      %p152 = scmp.ne.s32.totalorder %s137, %s151
      %p153 = scmp.eq.s32.totalorder %s22, 0
      %p154 = por %p152, %p153
      %s156 = sadd.s32 %s155, 1
      %p159 = scmp.eq.s32.totalorder %s16, 1
      %p160 = scmp.ne.s32.totalorder %s155, %s157
      %p161 = scmp.eq.s32.totalorder %s16, 0
      %p162 = por %p160, %p161
      %p163 = scmp.ne.s32.totalorder %s155, %s157
      %p164 = scmp.eq.s32.totalorder %s21, 1
      %p165 = por %p163, %p164
      %p166 = scmp.ne.s32.totalorder %s157, %s158
      %p167 = scmp.eq.s32.totalorder %s21, 0
      %p168 = por %p166, %p167
      %p169 = scmp.ne.s32.totalorder %s157, %s158
      %p170 = scmp.eq.s32.totalorder %s22, 1
      %p171 = por %p169, %p170
      %p173 = scmp.ne.s32.totalorder %s158, %s172
      %p174 = scmp.eq.s32.totalorder %s22, 0
      %p175 = por %p173, %p174
      %s176 = ssub.s32 %s16, %s23
      %p177 = scmp.eq.s32.totalorder %s176, 0
      %s179 = sadd.s32 %s178, 1
      %s180 = scalar_select %p177, %s178, %s179
      %p183 = pneg %p177
      %p184 = scmp.eq.s32.totalorder %s16, 1
      %p185 = por %p183, %p184
      %p186 = scmp.ne.s32.totalorder %s178, %s181
      %p187 = scmp.eq.s32.totalorder %s16, 0
      %p188 = por %p186, %p187
      %p189 = scmp.ne.s32.totalorder %s178, %s181
      %p190 = scmp.eq.s32.totalorder %s21, 1
      %p191 = por %p189, %p190
      %p192 = scmp.ne.s32.totalorder %s181, %s182
      %p193 = scmp.eq.s32.totalorder %s21, 0
      %p194 = por %p192, %p193
      %p195 = scmp.ne.s32.totalorder %s181, %s182
      %p196 = scmp.eq.s32.totalorder %s22, 1
      %p197 = por %p195, %p196
      %p199 = scmp.ne.s32.totalorder %s182, %s198
      %p200 = scmp.eq.s32.totalorder %s22, 0
      %p201 = por %p199, %p200
      %p202 = scmp.le.s32.totalorder 1, %s16
      %p203 = scmp.lt.s32.totalorder %s16, 3
      %p204 = pnand %p202, %p203
      %p205 = pneg %p204
      // Predicated region
      $region9: #{cnn_forward.1} parent=5 // pred_check
        _
      $region10: #{cnn_forward.1} parent=5 // pred_check_branch
        %207 = sbr.rel (%p204) target = $region12
      $region11: #{cnn_forward.1} parent=5 // pred_region
        %s208 = ssub.s32 %s16, 1
        // Predicated region
        $region13: #{cnn_forward.1} parent=11 // pred_check
          %p209 = pneg %p63
        $region14: #{cnn_forward.1} parent=11 // pred_check_branch
          %211 = sbr.rel (%p209) target = $region16
        $region15: #{cnn_forward.1} parent=11 // pred_region
          _
        $region16: #{cnn_forward.1} parent=11 // pred_fallthru
          _
        // Predicated region
        $region17: #{cnn_forward.1} parent=11 // pred_check
          %p212 = pneg %p84
        $region18: #{cnn_forward.1} parent=11 // pred_check_branch
          %214 = sbr.rel (%p212) target = $region20
        $region19: #{cnn_forward.1} parent=11 // pred_region
          _
        $region20: #{cnn_forward.1} parent=11 // pred_fallthru
          _
        // Predicated region
        $region21: #{cnn_forward.1} parent=11 // pred_check
          %p215 = pneg %p105
        $region22: #{cnn_forward.1} parent=11 // pred_check_branch
          %217 = sbr.rel (%p215) target = $region24
        $region23: #{cnn_forward.1} parent=11 // pred_region
          _
        $region24: #{cnn_forward.1} parent=11 // pred_fallthru
          _
        // Predicated region
        $region25: #{cnn_forward.1} parent=11 // pred_check
          %p218 = pneg %p126
        $region26: #{cnn_forward.1} parent=11 // pred_check_branch
          %220 = sbr.rel (%p218) target = $region28
        $region27: #{cnn_forward.1} parent=11 // pred_region
          _
        $region28: #{cnn_forward.1} parent=11 // pred_fallthru
          _
        // Predicated region
        $region29: #{cnn_forward.1} parent=11 // pred_check
          %p221 = pneg %p147
        $region30: #{cnn_forward.1} parent=11 // pred_check_branch
          %223 = sbr.rel (%p221) target = $region32
        $region31: #{cnn_forward.1} parent=11 // pred_region
          _
        $region32: #{cnn_forward.1} parent=11 // pred_fallthru
          _
        // Predicated region
        $region33: #{cnn_forward.1} parent=11 // pred_check
          %p224 = pneg %p168
        $region34: #{cnn_forward.1} parent=11 // pred_check_branch
          %226 = sbr.rel (%p224) target = $region36
        $region35: #{cnn_forward.1} parent=11 // pred_region
          _
        $region36: #{cnn_forward.1} parent=11 // pred_fallthru
          _
      $region12: #{cnn_forward.1} parent=5 // pred_fallthru
        _
      %p227 = scmp.lt.s32.totalorder %s16, 2
      // Predicated region
      $region37: #{cnn_forward.1} parent=5 // pred_check
        %p228 = pneg %p227
      $region38: #{cnn_forward.1} parent=5 // pred_check_branch
        %230 = sbr.rel (%p228) target = $region40
      $region39: #{cnn_forward.1} parent=5 // pred_region
        // Predicated region
        $region41: #{cnn_forward.1} parent=39 // pred_check
          %p231 = pneg %p36
        $region42: #{cnn_forward.1} parent=39 // pred_check_branch
          %233 = sbr.rel (%p231) target = $region44
        $region43: #{cnn_forward.1} parent=39 // pred_region
          %p234 = scmp.lt.s32.totalorder %s16, 1
          %s235 = scalar_select %p234, %s16, 1
          %s236 = smul.addr %s235, 32
          %s237 = smul.addr %s236, 4
          %s238 = scalar_lea.vmem %s0, %s237
        $region44: #{cnn_forward.1} parent=39 // pred_fallthru
          _
      $region40: #{cnn_forward.1} parent=5 // pred_fallthru
        _
      %p239 = scmp.le.s32.totalorder 1, %s16
      %p240 = scmp.lt.s32.totalorder %s16, 3
      %p241 = pnand %p239, %p240
      %p242 = pneg %p241
      // Predicated region
      $region45: #{cnn_forward.1} parent=5 // pred_check
        _
      $region46: #{cnn_forward.1} parent=5 // pred_check_branch
        %244 = sbr.rel (%p241) target = $region48
      $region47: #{cnn_forward.1} parent=5 // pred_region
        %s245 = ssub.s32 %s16, 1
        %p246 = scmp.lt.s32.totalorder %s21, 1
        %s247 = scalar_select %p246, %s21, 1
        %s248 = smul.addr %s247, 32
        %s249 = smul.addr %s248, 4
        %s250 = scalar_lea.vmem %s0, %s249
        %p251 = pneg %p42
        %p252 = pneg %p39
        %p253 = pneg %p63
        %p254 = pneg %p60
        %p255 = pneg %p84
        %p256 = pneg %p81
        %p257 = pneg %p105
        %p258 = pneg %p102
        %p259 = pneg %p126
        %p260 = pneg %p123
        %p261 = pneg %p147
        %p262 = pneg %p144
        %p263 = pneg %p168
        %p264 = pneg %p165
        %p265 = pneg %p194
        %p266 = pneg %p191
        %s267 = sand.u32 %s181, 1
        %s268 = scalar_lea.sflag [#allocation8], %s267
        %s269 = sand.u32 %s181, 1
        %s270 = scalar_lea.vmem [#allocation7], %s269
        %p271 = scmp.lt.s32.totalorder %s21, 1
        %s272 = scalar_select %p271, %s21, 1
        %s273 = smul.addr %s272, 32
        %s274 = smul.addr %s273, 4
        %s275 = scalar_lea.vmem %s0, %s274
        %vm277 = vcmask 1043456
        %vm278 = vcmask 130052
        %vm279 = vmor %vm278, %vm277
        %280 = vst.msk [vmem:[#allocation2] sm:$0xff] %vm279, 0
        %281 = vst.msk [vmem:[#allocation2 + $0x8] sm:$0xff] %vm279, 0
        %282 = vst.msk [vmem:[#allocation2 + $0x10] sm:$0xff] %vm279, 0
        %283 = vst.msk [vmem:[#allocation2 + $0x18] sm:$0xff] %vm279, 0
        %284 = vst.msk [vmem:[#allocation2 + $0x20] sm:$0xff] %vm279, 0
        %285 = vst.msk [vmem:[#allocation2 + $0x28] sm:$0xff] %vm279, 0
        %286 = vst.msk [vmem:[#allocation2 + $0x30] sm:$0xff] %vm279, 0
        %287 = vst.msk [vmem:[#allocation2 + $0x38] sm:$0xff] %vm279, 0
        %288 = vst.msk [vmem:[#allocation2 + $0x40] sm:$0xff] %vm279, 0
        %289 = vst.msk [vmem:[#allocation2 + $0x48] sm:$0xff] %vm279, 0
        %290 = vst.msk [vmem:[#allocation2 + $0x50] sm:$0xff] %vm279, 0
        %291 = vst.msk [vmem:[#allocation2 + $0x58] sm:$0xff] %vm279, 0
        %292 = vst.msk [vmem:[#allocation2 + $0x60] sm:$0xff] %vm279, 0
        %293 = vst.msk [vmem:[#allocation2 + $0x68] sm:$0xff] %vm279, 0
        %294 = vst.msk [vmem:[#allocation2 + $0x70] sm:$0xff] %vm279, 0
        %295 = vst.msk [vmem:[#allocation2 + $0x78] sm:$0xff] %vm279, 0
        %296 = vst.msk [vmem:[#allocation2 + $0x80] sm:$0xff] %vm279, 0
        %297 = vst.msk [vmem:[#allocation2 + $0x88] sm:$0xff] %vm279, 0
        %298 = vst.msk [vmem:[#allocation2 + $0x90] sm:$0xff] %vm279, 0
        %299 = vst.msk [vmem:[#allocation2 + $0x98] sm:$0xff] %vm279, 0
        %300 = vst.msk [vmem:[#allocation2 + $0xa0] sm:$0xff] %vm279, 0
        %301 = vst.msk [vmem:[#allocation2 + $0xa8] sm:$0xff] %vm279, 0
        %302 = vst.msk [vmem:[#allocation2 + $0xb0] sm:$0xff] %vm279, 0
        %303 = vst.msk [vmem:[#allocation2 + $0xb8] sm:$0xff] %vm279, 0
        %304 = vst.msk [vmem:[#allocation2 + $0xc0] sm:$0xff] %vm279, 0
        %305 = vst.msk [vmem:[#allocation2 + $0xc8] sm:$0xff] %vm279, 0
        %306 = vst.msk [vmem:[#allocation2 + $0xd0] sm:$0xff] %vm279, 0
        %307 = vst.msk [vmem:[#allocation2 + $0xd8] sm:$0xff] %vm279, 0
        %308 = vst.msk [vmem:[#allocation2 + $0xe0] sm:$0xff] %vm279, 0
        %309 = vst.msk [vmem:[#allocation2 + $0xe8] sm:$0xff] %vm279, 0
        %310 = vst.msk [vmem:[#allocation2 + $0xf0] sm:$0xff] %vm279, 0
        %311 = vst.msk [vmem:[#allocation2 + $0xf8] sm:$0xff] %vm279, 0
        %312 = vst.msk [vmem:[#allocation2 + $0x100] sm:$0xff] %vm279, 0
        %313 = vst.msk [vmem:[#allocation2 + $0x108] sm:$0xff] %vm279, 0
        %314 = vst.msk [vmem:[#allocation2 + $0x110] sm:$0xff] %vm279, 0
        %315 = vst.msk [vmem:[#allocation2 + $0x118] sm:$0xff] %vm279, 0
        %316 = vst.msk [vmem:[#allocation3] sm:$0xff] %vm279, 0
        %317 = vst.msk [vmem:[#allocation3 + $0x8] sm:$0xff] %vm279, 0
        %318 = vst.msk [vmem:[#allocation3 + $0x10] sm:$0xff] %vm279, 0
        %319 = vst.msk [vmem:[#allocation3 + $0x18] sm:$0xff] %vm279, 0
        %320 = vst.msk [vmem:[#allocation3 + $0x20] sm:$0xff] %vm279, 0
        %321 = vst.msk [vmem:[#allocation3 + $0x28] sm:$0xff] %vm279, 0
        %322 = vst.msk [vmem:[#allocation3 + $0x30] sm:$0xff] %vm279, 0
        %323 = vst.msk [vmem:[#allocation3 + $0x38] sm:$0xff] %vm279, 0
        %324 = vst.msk [vmem:[#allocation3 + $0x40] sm:$0xff] %vm279, 0
        %325 = vst.msk [vmem:[#allocation3 + $0x48] sm:$0xff] %vm279, 0
        %326 = vst.msk [vmem:[#allocation3 + $0x50] sm:$0xff] %vm279, 0
        %327 = vst.msk [vmem:[#allocation3 + $0x58] sm:$0xff] %vm279, 0
        %328 = vst.msk [vmem:[#allocation3 + $0x60] sm:$0xff] %vm279, 0
        %329 = vst.msk [vmem:[#allocation3 + $0x68] sm:$0xff] %vm279, 0
        %330 = vst.msk [vmem:[#allocation3 + $0x70] sm:$0xff] %vm279, 0
        %331 = vst.msk [vmem:[#allocation3 + $0x78] sm:$0xff] %vm279, 0
        %332 = vst.msk [vmem:[#allocation3 + $0x80] sm:$0xff] %vm279, 0
        %333 = vst.msk [vmem:[#allocation3 + $0x88] sm:$0xff] %vm279, 0
        %334 = vst.msk [vmem:[#allocation3 + $0x90] sm:$0xff] %vm279, 0
        %335 = vst.msk [vmem:[#allocation3 + $0x98] sm:$0xff] %vm279, 0
        %336 = vst.msk [vmem:[#allocation3 + $0xa0] sm:$0xff] %vm279, 0
        %337 = vst.msk [vmem:[#allocation3 + $0xa8] sm:$0xff] %vm279, 0
        %338 = vst.msk [vmem:[#allocation3 + $0xb0] sm:$0xff] %vm279, 0
        %339 = vst.msk [vmem:[#allocation3 + $0xb8] sm:$0xff] %vm279, 0
        %340 = vst.msk [vmem:[#allocation3 + $0xc0] sm:$0xff] %vm279, 0
        %341 = vst.msk [vmem:[#allocation3 + $0xc8] sm:$0xff] %vm279, 0
        %342 = vst.msk [vmem:[#allocation3 + $0xd0] sm:$0xff] %vm279, 0
        %343 = vst.msk [vmem:[#allocation3 + $0xd8] sm:$0xff] %vm279, 0
        %344 = vst.msk [vmem:[#allocation3 + $0xe0] sm:$0xff] %vm279, 0
        %345 = vst.msk [vmem:[#allocation3 + $0xe8] sm:$0xff] %vm279, 0
        %346 = vst.msk [vmem:[#allocation3 + $0xf0] sm:$0xff] %vm279, 0
        %347 = vst.msk [vmem:[#allocation3 + $0xf8] sm:$0xff] %vm279, 0
        %348 = vst.msk [vmem:[#allocation3 + $0x100] sm:$0xff] %vm279, 0
        %349 = vst.msk [vmem:[#allocation3 + $0x108] sm:$0xff] %vm279, 0
        %350 = vst.msk [vmem:[#allocation3 + $0x110] sm:$0xff] %vm279, 0
        %351 = vst.msk [vmem:[#allocation3 + $0x118] sm:$0xff] %vm279, 0
        loop: start=0, step=1, limit=14
        $region49: #{cnn_forward.1} parent=47 // loop_pre_header
          _
        $region50: #{cnn_forward.1} parent=47 // loop_header
          %s353 = sphi 0, %s357
          %p354 = scmp.ge.s32.totalorder %s353, 14
        $region51: #{cnn_forward.1} parent=47 // loop_header_branch
          %356 = sbr.rel (%p354) target = $region55
        $region52: #{cnn_forward.1} parent=47 // loop_body
          %s358 = smul.u32 %s353, 2
          %s359 = smul.u32 %s358, 4
          %s360 = scalar_lea.vmem %s275, %s359
          %v361 = vld [vmem:[%s360] sm:$0xf]
          %v362 = vlaneseq
          %v363 = vshrl.u32 %v362, 7
          %v364 = vsub.s32 0, %v363
          %v365 = vrot.slane %v361, %v364
          %v366 = vlaneseq
          %v367 = vshrl.u32 %v366, 7
          %v368 = vsub.s32 1, %v367
          %v369 = vrot.slane %v361, %v368
          %v370 = vlaneseq
          %v371 = vshrl.u32 %v370, 7
          %v372 = vsub.s32 2, %v371
          %v373 = vrot.slane %v361, %v372
          %v374 = vlaneseq
          %v375 = vshrl.u32 %v374, 7
          %v376 = vsub.s32 3, %v375
          %v377 = vrot.slane %v361, %v376
          %v378 = vld [vmem:[%s1] sm:$0xff]
          %v379 = vld [vmem:[%s1 + $0x8] sm:$0xff]
          %s380 = scalar_lea.vmem %s1, 16
          %v381 = vld [vmem:[%s380] sm:$0xff]
          %v382 = vld [vmem:[%s380 + $0x8] sm:$0xff]
          %s383 = scalar_lea.vmem %s1, 32
          %v384 = vld [vmem:[%s383] sm:$0xff]
          %v385 = vld [vmem:[%s383 + $0x8] sm:$0xff]
          %s386 = scalar_lea.vmem %s1, 48
          %v387 = vld [vmem:[%s386] sm:$0xff]
          %v388 = vld [vmem:[%s386 + $0x8] sm:$0xff]
          %s389 = scalar_lea.vmem %s1, 64
          %v390 = vld [vmem:[%s389] sm:$0xff]
          %v391 = vld [vmem:[%s389 + $0x8] sm:$0xff]
          %v392 = vmul.f32 %v378, %v365
          %v393 = vmul.f32 %v379, %v365
          %v394 = vmul.f32 %v381, %v369
          %v395 = vmul.f32 %v382, %v369
          %v396 = vadd.f32 %v392, %v394
          %v397 = vadd.f32 %v393, %v395
          %v398 = vmul.f32 %v384, %v373
          %v399 = vmul.f32 %v385, %v373
          %v400 = vadd.f32 %v396, %v398
          %v401 = vadd.f32 %v397, %v399
          %v402 = vmul.f32 %v387, %v377
          %v403 = vmul.f32 %v388, %v377
          %v404 = vadd.f32 %v400, %v402
          %v405 = vadd.f32 %v401, %v403
          %407 = vrot.lane.b32.xlu0 %v365, 112
          %v408 = vpop.permute.xlu0 %407
          %v410 = vmul.f32 %v390, %v408
          %v411 = vmul.f32 %v391, %v408
          %v412 = vadd.f32 %v404, %v410
          %v413 = vadd.f32 %v405, %v411
          %v414 = vmul.f32 %v378, %v369
          %v415 = vmul.f32 %v379, %v369
          %v416 = vmul.f32 %v381, %v373
          %v417 = vmul.f32 %v382, %v373
          %v418 = vadd.f32 %v414, %v416
          %v419 = vadd.f32 %v415, %v417
          %v420 = vmul.f32 %v384, %v377
          %v421 = vmul.f32 %v385, %v377
          %v422 = vadd.f32 %v418, %v420
          %v423 = vadd.f32 %v419, %v421
          %v424 = vmul.f32 %v387, %v408
          %v425 = vmul.f32 %v388, %v408
          %v426 = vadd.f32 %v422, %v424
          %v427 = vadd.f32 %v423, %v425
          %429 = vrot.lane.b32.xlu0 %v369, 112
          %v430 = vpop.permute.xlu0 %429
          %v432 = vmul.f32 %v390, %v430
          %v433 = vmul.f32 %v391, %v430
          %v434 = vadd.f32 %v426, %v432
          %v435 = vadd.f32 %v427, %v433
          %v436 = vmul.f32 %v378, %v373
          %v437 = vmul.f32 %v379, %v373
          %v438 = vmul.f32 %v381, %v377
          %v439 = vmul.f32 %v382, %v377
          %v440 = vadd.f32 %v436, %v438
          %v441 = vadd.f32 %v437, %v439
          %v442 = vmul.f32 %v384, %v408
          %v443 = vmul.f32 %v385, %v408
          %v444 = vadd.f32 %v440, %v442
          %v445 = vadd.f32 %v441, %v443
          %v446 = vmul.f32 %v387, %v430
          %v447 = vmul.f32 %v388, %v430
          %v448 = vadd.f32 %v444, %v446
          %v449 = vadd.f32 %v445, %v447
          %451 = vrot.lane.b32.xlu0 %v373, 112
          %v452 = vpop.permute.xlu0 %451
          %v454 = vmul.f32 %v390, %v452
          %v455 = vmul.f32 %v391, %v452
          %v456 = vadd.f32 %v448, %v454
          %v457 = vadd.f32 %v449, %v455
          %v458 = vmul.f32 %v378, %v377
          %v459 = vmul.f32 %v379, %v377
          %v460 = vmul.f32 %v381, %v408
          %v461 = vmul.f32 %v382, %v408
          %v462 = vadd.f32 %v458, %v460
          %v463 = vadd.f32 %v459, %v461
          %v464 = vmul.f32 %v384, %v430
          %v465 = vmul.f32 %v385, %v430
          %v466 = vadd.f32 %v462, %v464
          %v467 = vadd.f32 %v463, %v465
          %v468 = vmul.f32 %v387, %v452
          %v469 = vmul.f32 %v388, %v452
          %v470 = vadd.f32 %v466, %v468
          %v471 = vadd.f32 %v467, %v469
          %473 = vrot.lane.b32.xlu0 %v377, 112
          %v474 = vpop.permute.xlu0 %473
          %v476 = vmul.f32 %v390, %v474
          %v477 = vmul.f32 %v391, %v474
          %v478 = vadd.f32 %v470, %v476
          %v479 = vadd.f32 %v471, %v477
          %s480 = sadd.s32 %s358, 1
          %s481 = smul.u32 %s480, 4
          %s482 = scalar_lea.vmem %s275, %s481
          %v483 = vld [vmem:[%s482] sm:$0xf]
          %v484 = vlaneseq
          %v485 = vshrl.u32 %v484, 7
          %v486 = vsub.s32 0, %v485
          %v487 = vrot.slane %v483, %v486
          %v488 = vlaneseq
          %v489 = vshrl.u32 %v488, 7
          %v490 = vsub.s32 1, %v489
          %v491 = vrot.slane %v483, %v490
          %v492 = vlaneseq
          %v493 = vshrl.u32 %v492, 7
          %v494 = vsub.s32 2, %v493
          %v495 = vrot.slane %v483, %v494
          %v496 = vlaneseq
          %v497 = vshrl.u32 %v496, 7
          %v498 = vsub.s32 3, %v497
          %v499 = vrot.slane %v483, %v498
          %s500 = scalar_lea.vmem %s1, 80
          %v501 = vld [vmem:[%s500] sm:$0xff]
          %v502 = vld [vmem:[%s500 + $0x8] sm:$0xff]
          %s503 = scalar_lea.vmem %s1, 96
          %v504 = vld [vmem:[%s503] sm:$0xff]
          %v505 = vld [vmem:[%s503 + $0x8] sm:$0xff]
          %s506 = scalar_lea.vmem %s1, 112
          %v507 = vld [vmem:[%s506] sm:$0xff]
          %v508 = vld [vmem:[%s506 + $0x8] sm:$0xff]
          %s509 = scalar_lea.vmem %s1, 128
          %v510 = vld [vmem:[%s509] sm:$0xff]
          %v511 = vld [vmem:[%s509 + $0x8] sm:$0xff]
          %s512 = scalar_lea.vmem %s1, 144
          %v513 = vld [vmem:[%s512] sm:$0xff]
          %v514 = vld [vmem:[%s512 + $0x8] sm:$0xff]
          %v515 = vmul.f32 %v501, %v487
          %v516 = vmul.f32 %v502, %v487
          %v517 = vadd.f32 %v412, %v515
          %v518 = vadd.f32 %v413, %v516
          %v519 = vmul.f32 %v504, %v491
          %v520 = vmul.f32 %v505, %v491
          %v521 = vadd.f32 %v517, %v519
          %v522 = vadd.f32 %v518, %v520
          %v523 = vmul.f32 %v507, %v495
          %v524 = vmul.f32 %v508, %v495
          %v525 = vadd.f32 %v521, %v523
          %v526 = vadd.f32 %v522, %v524
          %v527 = vmul.f32 %v510, %v499
          %v528 = vmul.f32 %v511, %v499
          %v529 = vadd.f32 %v525, %v527
          %v530 = vadd.f32 %v526, %v528
          %532 = vrot.lane.b32.xlu0 %v487, 112
          %v533 = vpop.permute.xlu0 %532
          %v535 = vmul.f32 %v513, %v533
          %v536 = vmul.f32 %v514, %v533
          %v537 = vadd.f32 %v529, %v535
          %v538 = vadd.f32 %v530, %v536
          %v539 = vmul.f32 %v501, %v491
          %v540 = vmul.f32 %v502, %v491
          %v541 = vadd.f32 %v434, %v539
          %v542 = vadd.f32 %v435, %v540
          %v543 = vmul.f32 %v504, %v495
          %v544 = vmul.f32 %v505, %v495
          %v545 = vadd.f32 %v541, %v543
          %v546 = vadd.f32 %v542, %v544
          %v547 = vmul.f32 %v507, %v499
          %v548 = vmul.f32 %v508, %v499
          %v549 = vadd.f32 %v545, %v547
          %v550 = vadd.f32 %v546, %v548
          %v551 = vmul.f32 %v510, %v533
          %v552 = vmul.f32 %v511, %v533
          %v553 = vadd.f32 %v549, %v551
          %v554 = vadd.f32 %v550, %v552
          %556 = vrot.lane.b32.xlu0 %v491, 112
          %v557 = vpop.permute.xlu0 %556
          %v559 = vmul.f32 %v513, %v557
          %v560 = vmul.f32 %v514, %v557
          %v561 = vadd.f32 %v553, %v559
          %v562 = vadd.f32 %v554, %v560
          %v563 = vmul.f32 %v501, %v495
          %v564 = vmul.f32 %v502, %v495
          %v565 = vadd.f32 %v456, %v563
          %v566 = vadd.f32 %v457, %v564
          %v567 = vmul.f32 %v504, %v499
          %v568 = vmul.f32 %v505, %v499
          %v569 = vadd.f32 %v565, %v567
          %v570 = vadd.f32 %v566, %v568
          %v571 = vmul.f32 %v507, %v533
          %v572 = vmul.f32 %v508, %v533
          %v573 = vadd.f32 %v569, %v571
          %v574 = vadd.f32 %v570, %v572
          %v575 = vmul.f32 %v510, %v557
          %v576 = vmul.f32 %v511, %v557
          %v577 = vadd.f32 %v573, %v575
          %v578 = vadd.f32 %v574, %v576
          %580 = vrot.lane.b32.xlu0 %v495, 112
          %v581 = vpop.permute.xlu0 %580
          %v583 = vmul.f32 %v513, %v581
          %v584 = vmul.f32 %v514, %v581
          %v585 = vadd.f32 %v577, %v583
          %v586 = vadd.f32 %v578, %v584
          %v587 = vmul.f32 %v501, %v499
          %v588 = vmul.f32 %v502, %v499
          %v589 = vadd.f32 %v478, %v587
          %v590 = vadd.f32 %v479, %v588
          %v591 = vmul.f32 %v504, %v533
          %v592 = vmul.f32 %v505, %v533
          %v593 = vadd.f32 %v589, %v591
          %v594 = vadd.f32 %v590, %v592
          %v595 = vmul.f32 %v507, %v557
          %v596 = vmul.f32 %v508, %v557
          %v597 = vadd.f32 %v593, %v595
          %v598 = vadd.f32 %v594, %v596
          %v599 = vmul.f32 %v510, %v581
          %v600 = vmul.f32 %v511, %v581
          %v601 = vadd.f32 %v597, %v599
          %v602 = vadd.f32 %v598, %v600
          %604 = vrot.lane.b32.xlu0 %v499, 112
          %v605 = vpop.permute.xlu0 %604
          %v607 = vmul.f32 %v513, %v605
          %v608 = vmul.f32 %v514, %v605
          %v609 = vadd.f32 %v601, %v607
          %v610 = vadd.f32 %v602, %v608
          %v611 = vmul.f32 %v378, %v487
          %v612 = vmul.f32 %v379, %v487
          %v613 = vmul.f32 %v381, %v491
          %v614 = vmul.f32 %v382, %v491
          %v615 = vadd.f32 %v611, %v613
          %v616 = vadd.f32 %v612, %v614
          %v617 = vmul.f32 %v384, %v495
          %v618 = vmul.f32 %v385, %v495
          %v619 = vadd.f32 %v615, %v617
          %v620 = vadd.f32 %v616, %v618
          %v621 = vmul.f32 %v387, %v499
          %v622 = vmul.f32 %v388, %v499
          %v623 = vadd.f32 %v619, %v621
          %v624 = vadd.f32 %v620, %v622
          %v625 = vmul.f32 %v390, %v533
          %v626 = vmul.f32 %v391, %v533
          %v627 = vadd.f32 %v623, %v625
          %v628 = vadd.f32 %v624, %v626
          %v629 = vmul.f32 %v378, %v491
          %v630 = vmul.f32 %v379, %v491
          %v631 = vmul.f32 %v381, %v495
          %v632 = vmul.f32 %v382, %v495
          %v633 = vadd.f32 %v629, %v631
          %v634 = vadd.f32 %v630, %v632
          %v635 = vmul.f32 %v384, %v499
          %v636 = vmul.f32 %v385, %v499
          %v637 = vadd.f32 %v633, %v635
          %v638 = vadd.f32 %v634, %v636
          %v639 = vmul.f32 %v387, %v533
          %v640 = vmul.f32 %v388, %v533
          %v641 = vadd.f32 %v637, %v639
          %v642 = vadd.f32 %v638, %v640
          %v643 = vmul.f32 %v390, %v557
          %v644 = vmul.f32 %v391, %v557
          %v645 = vadd.f32 %v641, %v643
          %v646 = vadd.f32 %v642, %v644
          %v647 = vmul.f32 %v378, %v495
          %v648 = vmul.f32 %v379, %v495
          %v649 = vmul.f32 %v381, %v499
          %v650 = vmul.f32 %v382, %v499
          %v651 = vadd.f32 %v647, %v649
          %v652 = vadd.f32 %v648, %v650
          %v653 = vmul.f32 %v384, %v533
          %v654 = vmul.f32 %v385, %v533
          %v655 = vadd.f32 %v651, %v653
          %v656 = vadd.f32 %v652, %v654
          %v657 = vmul.f32 %v387, %v557
          %v658 = vmul.f32 %v388, %v557
          %v659 = vadd.f32 %v655, %v657
          %v660 = vadd.f32 %v656, %v658
          %v661 = vmul.f32 %v390, %v581
          %v662 = vmul.f32 %v391, %v581
          %v663 = vadd.f32 %v659, %v661
          %v664 = vadd.f32 %v660, %v662
          %v665 = vmul.f32 %v378, %v499
          %v666 = vmul.f32 %v379, %v499
          %v667 = vmul.f32 %v381, %v533
          %v668 = vmul.f32 %v382, %v533
          %v669 = vadd.f32 %v665, %v667
          %v670 = vadd.f32 %v666, %v668
          %v671 = vmul.f32 %v384, %v557
          %v672 = vmul.f32 %v385, %v557
          %v673 = vadd.f32 %v669, %v671
          %v674 = vadd.f32 %v670, %v672
          %v675 = vmul.f32 %v387, %v581
          %v676 = vmul.f32 %v388, %v581
          %v677 = vadd.f32 %v673, %v675
          %v678 = vadd.f32 %v674, %v676
          %v679 = vmul.f32 %v390, %v605
          %v680 = vmul.f32 %v391, %v605
          %v681 = vadd.f32 %v677, %v679
          %v682 = vadd.f32 %v678, %v680
          %s683 = sadd.s32 %s358, 2
          %s684 = smul.u32 %s683, 4
          %s685 = scalar_lea.vmem %s275, %s684
          %v686 = vld [vmem:[%s685] sm:$0xf]
          %v687 = vlaneseq
          %v688 = vshrl.u32 %v687, 7
          %v689 = vsub.s32 0, %v688
          %v690 = vrot.slane %v686, %v689
          %v691 = vlaneseq
          %v692 = vshrl.u32 %v691, 7
          %v693 = vsub.s32 1, %v692
          %v694 = vrot.slane %v686, %v693
          %v695 = vlaneseq
          %v696 = vshrl.u32 %v695, 7
          %v697 = vsub.s32 2, %v696
          %v698 = vrot.slane %v686, %v697
          %v699 = vlaneseq
          %v700 = vshrl.u32 %v699, 7
          %v701 = vsub.s32 3, %v700
          %v702 = vrot.slane %v686, %v701
          %s703 = scalar_lea.vmem %s1, 160
          %v704 = vld [vmem:[%s703] sm:$0xff]
          %v705 = vld [vmem:[%s703 + $0x8] sm:$0xff]
          %s706 = scalar_lea.vmem %s1, 176
          %v707 = vld [vmem:[%s706] sm:$0xff]
          %v708 = vld [vmem:[%s706 + $0x8] sm:$0xff]
          %s709 = scalar_lea.vmem %s1, 192
          %v710 = vld [vmem:[%s709] sm:$0xff]
          %v711 = vld [vmem:[%s709 + $0x8] sm:$0xff]
          %s712 = scalar_lea.vmem %s1, 208
          %v713 = vld [vmem:[%s712] sm:$0xff]
          %v714 = vld [vmem:[%s712 + $0x8] sm:$0xff]
          %s715 = scalar_lea.vmem %s1, 224
          %v716 = vld [vmem:[%s715] sm:$0xff]
          %v717 = vld [vmem:[%s715 + $0x8] sm:$0xff]
          %v718 = vmul.f32 %v704, %v690
          %v719 = vmul.f32 %v705, %v690
          %v720 = vadd.f32 %v537, %v718
          %v721 = vadd.f32 %v538, %v719
          %v722 = vmul.f32 %v707, %v694
          %v723 = vmul.f32 %v708, %v694
          %v724 = vadd.f32 %v720, %v722
          %v725 = vadd.f32 %v721, %v723
          %v726 = vmul.f32 %v710, %v698
          %v727 = vmul.f32 %v711, %v698
          %v728 = vadd.f32 %v724, %v726
          %v729 = vadd.f32 %v725, %v727
          %v730 = vmul.f32 %v713, %v702
          %v731 = vmul.f32 %v714, %v702
          %v732 = vadd.f32 %v728, %v730
          %v733 = vadd.f32 %v729, %v731
          %735 = vrot.lane.b32.xlu0 %v690, 112
          %v736 = vpop.permute.xlu0 %735
          %v738 = vmul.f32 %v716, %v736
          %v739 = vmul.f32 %v717, %v736
          %v740 = vadd.f32 %v732, %v738
          %v741 = vadd.f32 %v733, %v739
          %v742 = vmul.f32 %v704, %v694
          %v743 = vmul.f32 %v705, %v694
          %v744 = vadd.f32 %v561, %v742
          %v745 = vadd.f32 %v562, %v743
          %v746 = vmul.f32 %v707, %v698
          %v747 = vmul.f32 %v708, %v698
          %v748 = vadd.f32 %v744, %v746
          %v749 = vadd.f32 %v745, %v747
          %v750 = vmul.f32 %v710, %v702
          %v751 = vmul.f32 %v711, %v702
          %v752 = vadd.f32 %v748, %v750
          %v753 = vadd.f32 %v749, %v751
          %v754 = vmul.f32 %v713, %v736
          %v755 = vmul.f32 %v714, %v736
          %v756 = vadd.f32 %v752, %v754
          %v757 = vadd.f32 %v753, %v755
          %759 = vrot.lane.b32.xlu0 %v694, 112
          %v760 = vpop.permute.xlu0 %759
          %v762 = vmul.f32 %v716, %v760
          %v763 = vmul.f32 %v717, %v760
          %v764 = vadd.f32 %v756, %v762
          %v765 = vadd.f32 %v757, %v763
          %v766 = vmul.f32 %v704, %v698
          %v767 = vmul.f32 %v705, %v698
          %v768 = vadd.f32 %v585, %v766
          %v769 = vadd.f32 %v586, %v767
          %v770 = vmul.f32 %v707, %v702
          %v771 = vmul.f32 %v708, %v702
          %v772 = vadd.f32 %v768, %v770
          %v773 = vadd.f32 %v769, %v771
          %v774 = vmul.f32 %v710, %v736
          %v775 = vmul.f32 %v711, %v736
          %v776 = vadd.f32 %v772, %v774
          %v777 = vadd.f32 %v773, %v775
          %v778 = vmul.f32 %v713, %v760
          %v779 = vmul.f32 %v714, %v760
          %v780 = vadd.f32 %v776, %v778
          %v781 = vadd.f32 %v777, %v779
          %783 = vrot.lane.b32.xlu0 %v698, 112
          %v784 = vpop.permute.xlu0 %783
          %v786 = vmul.f32 %v716, %v784
          %v787 = vmul.f32 %v717, %v784
          %v788 = vadd.f32 %v780, %v786
          %v789 = vadd.f32 %v781, %v787
          %v790 = vmul.f32 %v704, %v702
          %v791 = vmul.f32 %v705, %v702
          %v792 = vadd.f32 %v609, %v790
          %v793 = vadd.f32 %v610, %v791
          %v794 = vmul.f32 %v707, %v736
          %v795 = vmul.f32 %v708, %v736
          %v796 = vadd.f32 %v792, %v794
          %v797 = vadd.f32 %v793, %v795
          %v798 = vmul.f32 %v710, %v760
          %v799 = vmul.f32 %v711, %v760
          %v800 = vadd.f32 %v796, %v798
          %v801 = vadd.f32 %v797, %v799
          %v802 = vmul.f32 %v713, %v784
          %v803 = vmul.f32 %v714, %v784
          %v804 = vadd.f32 %v800, %v802
          %v805 = vadd.f32 %v801, %v803
          %807 = vrot.lane.b32.xlu0 %v702, 112
          %v808 = vpop.permute.xlu0 %807
          %v810 = vmul.f32 %v716, %v808
          %v811 = vmul.f32 %v717, %v808
          %v812 = vadd.f32 %v804, %v810
          %v813 = vadd.f32 %v805, %v811
          %v814 = vmul.f32 %v501, %v690
          %v815 = vmul.f32 %v502, %v690
          %v816 = vadd.f32 %v627, %v814
          %v817 = vadd.f32 %v628, %v815
          %v818 = vmul.f32 %v504, %v694
          %v819 = vmul.f32 %v505, %v694
          %v820 = vadd.f32 %v816, %v818
          %v821 = vadd.f32 %v817, %v819
          %v822 = vmul.f32 %v507, %v698
          %v823 = vmul.f32 %v508, %v698
          %v824 = vadd.f32 %v820, %v822
          %v825 = vadd.f32 %v821, %v823
          %v826 = vmul.f32 %v510, %v702
          %v827 = vmul.f32 %v511, %v702
          %v828 = vadd.f32 %v824, %v826
          %v829 = vadd.f32 %v825, %v827
          %v830 = vmul.f32 %v513, %v736
          %v831 = vmul.f32 %v514, %v736
          %v832 = vadd.f32 %v828, %v830
          %v833 = vadd.f32 %v829, %v831
          %v834 = vmul.f32 %v501, %v694
          %v835 = vmul.f32 %v502, %v694
          %v836 = vadd.f32 %v645, %v834
          %v837 = vadd.f32 %v646, %v835
          %v838 = vmul.f32 %v504, %v698
          %v839 = vmul.f32 %v505, %v698
          %v840 = vadd.f32 %v836, %v838
          %v841 = vadd.f32 %v837, %v839
          %v842 = vmul.f32 %v507, %v702
          %v843 = vmul.f32 %v508, %v702
          %v844 = vadd.f32 %v840, %v842
          %v845 = vadd.f32 %v841, %v843
          %v846 = vmul.f32 %v510, %v736
          %v847 = vmul.f32 %v511, %v736
          %v848 = vadd.f32 %v844, %v846
          %v849 = vadd.f32 %v845, %v847
          %v850 = vmul.f32 %v513, %v760
          %v851 = vmul.f32 %v514, %v760
          %v852 = vadd.f32 %v848, %v850
          %v853 = vadd.f32 %v849, %v851
          %v854 = vmul.f32 %v501, %v698
          %v855 = vmul.f32 %v502, %v698
          %v856 = vadd.f32 %v663, %v854
          %v857 = vadd.f32 %v664, %v855
          %v858 = vmul.f32 %v504, %v702
          %v859 = vmul.f32 %v505, %v702
          %v860 = vadd.f32 %v856, %v858
          %v861 = vadd.f32 %v857, %v859
          %v862 = vmul.f32 %v507, %v736
          %v863 = vmul.f32 %v508, %v736
          %v864 = vadd.f32 %v860, %v862
          %v865 = vadd.f32 %v861, %v863
          %v866 = vmul.f32 %v510, %v760
          %v867 = vmul.f32 %v511, %v760
          %v868 = vadd.f32 %v864, %v866
          %v869 = vadd.f32 %v865, %v867
          %v870 = vmul.f32 %v513, %v784
          %v871 = vmul.f32 %v514, %v784
          %v872 = vadd.f32 %v868, %v870
          %v873 = vadd.f32 %v869, %v871
          %v874 = vmul.f32 %v501, %v702
          %v875 = vmul.f32 %v502, %v702
          %v876 = vadd.f32 %v681, %v874
          %v877 = vadd.f32 %v682, %v875
          %v878 = vmul.f32 %v504, %v736
          %v879 = vmul.f32 %v505, %v736
          %v880 = vadd.f32 %v876, %v878
          %v881 = vadd.f32 %v877, %v879
          %v882 = vmul.f32 %v507, %v760
          %v883 = vmul.f32 %v508, %v760
          %v884 = vadd.f32 %v880, %v882
          %v885 = vadd.f32 %v881, %v883
          %v886 = vmul.f32 %v510, %v784
          %v887 = vmul.f32 %v511, %v784
          %v888 = vadd.f32 %v884, %v886
          %v889 = vadd.f32 %v885, %v887
          %v890 = vmul.f32 %v513, %v808
          %v891 = vmul.f32 %v514, %v808
          %v892 = vadd.f32 %v888, %v890
          %v893 = vadd.f32 %v889, %v891
          %s894 = sadd.s32 %s358, 3
          %s895 = smul.u32 %s894, 4
          %s896 = scalar_lea.vmem %s275, %s895
          %v897 = vld [vmem:[%s896] sm:$0xf]
          %v898 = vlaneseq
          %v899 = vshrl.u32 %v898, 7
          %v900 = vsub.s32 0, %v899
          %v901 = vrot.slane %v897, %v900
          %v902 = vlaneseq
          %v903 = vshrl.u32 %v902, 7
          %v904 = vsub.s32 1, %v903
          %v905 = vrot.slane %v897, %v904
          %v906 = vlaneseq
          %v907 = vshrl.u32 %v906, 7
          %v908 = vsub.s32 2, %v907
          %v909 = vrot.slane %v897, %v908
          %v910 = vlaneseq
          %v911 = vshrl.u32 %v910, 7
          %v912 = vsub.s32 3, %v911
          %v913 = vrot.slane %v897, %v912
          %s914 = scalar_lea.vmem %s1, 240
          %v915 = vld [vmem:[%s914] sm:$0xff]
          %v916 = vld [vmem:[%s914 + $0x8] sm:$0xff]
          %s917 = scalar_lea.vmem %s1, 256
          %v918 = vld [vmem:[%s917] sm:$0xff]
          %v919 = vld [vmem:[%s917 + $0x8] sm:$0xff]
          %s920 = scalar_lea.vmem %s1, 272
          %v921 = vld [vmem:[%s920] sm:$0xff]
          %v922 = vld [vmem:[%s920 + $0x8] sm:$0xff]
          %s923 = scalar_lea.vmem %s1, 288
          %v924 = vld [vmem:[%s923] sm:$0xff]
          %v925 = vld [vmem:[%s923 + $0x8] sm:$0xff]
          %s926 = scalar_lea.vmem %s1, 304
          %v927 = vld [vmem:[%s926] sm:$0xff]
          %v928 = vld [vmem:[%s926 + $0x8] sm:$0xff]
          %v929 = vmul.f32 %v915, %v901
          %v930 = vmul.f32 %v916, %v901
          %v931 = vadd.f32 %v740, %v929
          %v932 = vadd.f32 %v741, %v930
          %v933 = vmul.f32 %v918, %v905
          %v934 = vmul.f32 %v919, %v905
          %v935 = vadd.f32 %v931, %v933
          %v936 = vadd.f32 %v932, %v934
          %v937 = vmul.f32 %v921, %v909
          %v938 = vmul.f32 %v922, %v909
          %v939 = vadd.f32 %v935, %v937
          %v940 = vadd.f32 %v936, %v938
          %v941 = vmul.f32 %v924, %v913
          %v942 = vmul.f32 %v925, %v913
          %v943 = vadd.f32 %v939, %v941
          %v944 = vadd.f32 %v940, %v942
          %946 = vrot.lane.b32.xlu0 %v901, 112
          %v947 = vpop.permute.xlu0 %946
          %v949 = vmul.f32 %v927, %v947
          %v950 = vmul.f32 %v928, %v947
          %v951 = vadd.f32 %v943, %v949
          %v952 = vadd.f32 %v944, %v950
          %v953 = vmul.f32 %v915, %v905
          %v954 = vmul.f32 %v916, %v905
          %v955 = vadd.f32 %v764, %v953
          %v956 = vadd.f32 %v765, %v954
          %v957 = vmul.f32 %v918, %v909
          %v958 = vmul.f32 %v919, %v909
          %v959 = vadd.f32 %v955, %v957
          %v960 = vadd.f32 %v956, %v958
          %v961 = vmul.f32 %v921, %v913
          %v962 = vmul.f32 %v922, %v913
          %v963 = vadd.f32 %v959, %v961
          %v964 = vadd.f32 %v960, %v962
          %v965 = vmul.f32 %v924, %v947
          %v966 = vmul.f32 %v925, %v947
          %v967 = vadd.f32 %v963, %v965
          %v968 = vadd.f32 %v964, %v966
          %970 = vrot.lane.b32.xlu0 %v905, 112
          %v971 = vpop.permute.xlu0 %970
          %v973 = vmul.f32 %v927, %v971
          %v974 = vmul.f32 %v928, %v971
          %v975 = vadd.f32 %v967, %v973
          %v976 = vadd.f32 %v968, %v974
          %v977 = vmul.f32 %v915, %v909
          %v978 = vmul.f32 %v916, %v909
          %v979 = vadd.f32 %v788, %v977
          %v980 = vadd.f32 %v789, %v978
          %v981 = vmul.f32 %v918, %v913
          %v982 = vmul.f32 %v919, %v913
          %v983 = vadd.f32 %v979, %v981
          %v984 = vadd.f32 %v980, %v982
          %v985 = vmul.f32 %v921, %v947
          %v986 = vmul.f32 %v922, %v947
          %v987 = vadd.f32 %v983, %v985
          %v988 = vadd.f32 %v984, %v986
          %v989 = vmul.f32 %v924, %v971
          %v990 = vmul.f32 %v925, %v971
          %v991 = vadd.f32 %v987, %v989
          %v992 = vadd.f32 %v988, %v990
          %994 = vrot.lane.b32.xlu0 %v909, 112
          %v995 = vpop.permute.xlu0 %994
          %v997 = vmul.f32 %v927, %v995
          %v998 = vmul.f32 %v928, %v995
          %v999 = vadd.f32 %v991, %v997
          %v1000 = vadd.f32 %v992, %v998
          %v1001 = vmul.f32 %v915, %v913
          %v1002 = vmul.f32 %v916, %v913
          %v1003 = vadd.f32 %v812, %v1001
          %v1004 = vadd.f32 %v813, %v1002
          %v1005 = vmul.f32 %v918, %v947
          %v1006 = vmul.f32 %v919, %v947
          %v1007 = vadd.f32 %v1003, %v1005
          %v1008 = vadd.f32 %v1004, %v1006
          %v1009 = vmul.f32 %v921, %v971
          %v1010 = vmul.f32 %v922, %v971
          %v1011 = vadd.f32 %v1007, %v1009
          %v1012 = vadd.f32 %v1008, %v1010
          %v1013 = vmul.f32 %v924, %v995
          %v1014 = vmul.f32 %v925, %v995
          %v1015 = vadd.f32 %v1011, %v1013
          %v1016 = vadd.f32 %v1012, %v1014
          %1018 = vrot.lane.b32.xlu0 %v913, 112
          %v1019 = vpop.permute.xlu0 %1018
          %v1021 = vmul.f32 %v927, %v1019
          %v1022 = vmul.f32 %v928, %v1019
          %v1023 = vadd.f32 %v1015, %v1021
          %v1024 = vadd.f32 %v1016, %v1022
          %v1025 = vmul.f32 %v704, %v901
          %v1026 = vmul.f32 %v705, %v901
          %v1027 = vadd.f32 %v832, %v1025
          %v1028 = vadd.f32 %v833, %v1026
          %v1029 = vmul.f32 %v707, %v905
          %v1030 = vmul.f32 %v708, %v905
          %v1031 = vadd.f32 %v1027, %v1029
          %v1032 = vadd.f32 %v1028, %v1030
          %v1033 = vmul.f32 %v710, %v909
          %v1034 = vmul.f32 %v711, %v909
          %v1035 = vadd.f32 %v1031, %v1033
          %v1036 = vadd.f32 %v1032, %v1034
          %v1037 = vmul.f32 %v713, %v913
          %v1038 = vmul.f32 %v714, %v913
          %v1039 = vadd.f32 %v1035, %v1037
          %v1040 = vadd.f32 %v1036, %v1038
          %v1041 = vmul.f32 %v716, %v947
          %v1042 = vmul.f32 %v717, %v947
          %v1043 = vadd.f32 %v1039, %v1041
          %v1044 = vadd.f32 %v1040, %v1042
          %v1045 = vmul.f32 %v704, %v905
          %v1046 = vmul.f32 %v705, %v905
          %v1047 = vadd.f32 %v852, %v1045
          %v1048 = vadd.f32 %v853, %v1046
          %v1049 = vmul.f32 %v707, %v909
          %v1050 = vmul.f32 %v708, %v909
          %v1051 = vadd.f32 %v1047, %v1049
          %v1052 = vadd.f32 %v1048, %v1050
          %v1053 = vmul.f32 %v710, %v913
          %v1054 = vmul.f32 %v711, %v913
          %v1055 = vadd.f32 %v1051, %v1053
          %v1056 = vadd.f32 %v1052, %v1054
          %v1057 = vmul.f32 %v713, %v947
          %v1058 = vmul.f32 %v714, %v947
          %v1059 = vadd.f32 %v1055, %v1057
          %v1060 = vadd.f32 %v1056, %v1058
          %v1061 = vmul.f32 %v716, %v971
          %v1062 = vmul.f32 %v717, %v971
          %v1063 = vadd.f32 %v1059, %v1061
          %v1064 = vadd.f32 %v1060, %v1062
          %v1065 = vmul.f32 %v704, %v909
          %v1066 = vmul.f32 %v705, %v909
          %v1067 = vadd.f32 %v872, %v1065
          %v1068 = vadd.f32 %v873, %v1066
          %v1069 = vmul.f32 %v707, %v913
          %v1070 = vmul.f32 %v708, %v913
          %v1071 = vadd.f32 %v1067, %v1069
          %v1072 = vadd.f32 %v1068, %v1070
          %v1073 = vmul.f32 %v710, %v947
          %v1074 = vmul.f32 %v711, %v947
          %v1075 = vadd.f32 %v1071, %v1073
          %v1076 = vadd.f32 %v1072, %v1074
          %v1077 = vmul.f32 %v713, %v971
          %v1078 = vmul.f32 %v714, %v971
          %v1079 = vadd.f32 %v1075, %v1077
          %v1080 = vadd.f32 %v1076, %v1078
          %v1081 = vmul.f32 %v716, %v995
          %v1082 = vmul.f32 %v717, %v995
          %v1083 = vadd.f32 %v1079, %v1081
          %v1084 = vadd.f32 %v1080, %v1082
          %v1085 = vmul.f32 %v704, %v913
          %v1086 = vmul.f32 %v705, %v913
          %v1087 = vadd.f32 %v892, %v1085
          %v1088 = vadd.f32 %v893, %v1086
          %v1089 = vmul.f32 %v707, %v947
          %v1090 = vmul.f32 %v708, %v947
          %v1091 = vadd.f32 %v1087, %v1089
          %v1092 = vadd.f32 %v1088, %v1090
          %v1093 = vmul.f32 %v710, %v971
          %v1094 = vmul.f32 %v711, %v971
          %v1095 = vadd.f32 %v1091, %v1093
          %v1096 = vadd.f32 %v1092, %v1094
          %v1097 = vmul.f32 %v713, %v995
          %v1098 = vmul.f32 %v714, %v995
          %v1099 = vadd.f32 %v1095, %v1097
          %v1100 = vadd.f32 %v1096, %v1098
          %v1101 = vmul.f32 %v716, %v1019
          %v1102 = vmul.f32 %v717, %v1019
          %v1103 = vadd.f32 %v1099, %v1101
          %v1104 = vadd.f32 %v1100, %v1102
          %s1105 = sadd.s32 %s358, 4
          %s1106 = smul.u32 %s1105, 4
          %s1107 = scalar_lea.vmem %s275, %s1106
          %v1108 = vld [vmem:[%s1107] sm:$0xf]
          %v1109 = vlaneseq
          %v1110 = vshrl.u32 %v1109, 7
          %v1111 = vsub.s32 0, %v1110
          %v1112 = vrot.slane %v1108, %v1111
          %v1113 = vlaneseq
          %v1114 = vshrl.u32 %v1113, 7
          %v1115 = vsub.s32 1, %v1114
          %v1116 = vrot.slane %v1108, %v1115
          %v1117 = vlaneseq
          %v1118 = vshrl.u32 %v1117, 7
          %v1119 = vsub.s32 2, %v1118
          %v1120 = vrot.slane %v1108, %v1119
          %v1121 = vlaneseq
          %v1122 = vshrl.u32 %v1121, 7
          %v1123 = vsub.s32 3, %v1122
          %v1124 = vrot.slane %v1108, %v1123
          %s1125 = scalar_lea.vmem %s1, 320
          %v1126 = vld [vmem:[%s1125] sm:$0xff]
          %v1127 = vld [vmem:[%s1125 + $0x8] sm:$0xff]
          %s1128 = scalar_lea.vmem %s1, 336
          %v1129 = vld [vmem:[%s1128] sm:$0xff]
          %v1130 = vld [vmem:[%s1128 + $0x8] sm:$0xff]
          %s1131 = scalar_lea.vmem %s1, 352
          %v1132 = vld [vmem:[%s1131] sm:$0xff]
          %v1133 = vld [vmem:[%s1131 + $0x8] sm:$0xff]
          %s1134 = scalar_lea.vmem %s1, 368
          %v1135 = vld [vmem:[%s1134] sm:$0xff]
          %v1136 = vld [vmem:[%s1134 + $0x8] sm:$0xff]
          %s1137 = scalar_lea.vmem %s1, 384
          %v1138 = vld [vmem:[%s1137] sm:$0xff]
          %v1139 = vld [vmem:[%s1137 + $0x8] sm:$0xff]
          %v1140 = vmul.f32 %v1126, %v1112
          %v1141 = vmul.f32 %v1127, %v1112
          %v1142 = vadd.f32 %v951, %v1140
          %v1143 = vadd.f32 %v952, %v1141
          %v1144 = vmul.f32 %v1129, %v1116
          %v1145 = vmul.f32 %v1130, %v1116
          %v1146 = vadd.f32 %v1142, %v1144
          %v1147 = vadd.f32 %v1143, %v1145
          %v1148 = vmul.f32 %v1132, %v1120
          %v1149 = vmul.f32 %v1133, %v1120
          %v1150 = vadd.f32 %v1146, %v1148
          %v1151 = vadd.f32 %v1147, %v1149
          %v1152 = vmul.f32 %v1135, %v1124
          %v1153 = vmul.f32 %v1136, %v1124
          %v1154 = vadd.f32 %v1150, %v1152
          %v1155 = vadd.f32 %v1151, %v1153
          %1157 = vrot.lane.b32.xlu0 %v1112, 112
          %v1158 = vpop.permute.xlu0 %1157
          %v1160 = vmul.f32 %v1138, %v1158
          %v1161 = vmul.f32 %v1139, %v1158
          %v1162 = vadd.f32 %v1154, %v1160
          %v1163 = vadd.f32 %v1155, %v1161
          %v1164 = vmul.f32 %v1126, %v1116
          %v1165 = vmul.f32 %v1127, %v1116
          %v1166 = vadd.f32 %v975, %v1164
          %v1167 = vadd.f32 %v976, %v1165
          %v1168 = vmul.f32 %v1129, %v1120
          %v1169 = vmul.f32 %v1130, %v1120
          %v1170 = vadd.f32 %v1166, %v1168
          %v1171 = vadd.f32 %v1167, %v1169
          %v1172 = vmul.f32 %v1132, %v1124
          %v1173 = vmul.f32 %v1133, %v1124
          %v1174 = vadd.f32 %v1170, %v1172
          %v1175 = vadd.f32 %v1171, %v1173
          %v1176 = vmul.f32 %v1135, %v1158
          %v1177 = vmul.f32 %v1136, %v1158
          %v1178 = vadd.f32 %v1174, %v1176
          %v1179 = vadd.f32 %v1175, %v1177
          %1181 = vrot.lane.b32.xlu0 %v1116, 112
          %v1182 = vpop.permute.xlu0 %1181
          %v1184 = vmul.f32 %v1138, %v1182
          %v1185 = vmul.f32 %v1139, %v1182
          %v1186 = vadd.f32 %v1178, %v1184
          %v1187 = vadd.f32 %v1179, %v1185
          %v1188 = vmul.f32 %v1126, %v1120
          %v1189 = vmul.f32 %v1127, %v1120
          %v1190 = vadd.f32 %v999, %v1188
          %v1191 = vadd.f32 %v1000, %v1189
          %v1192 = vmul.f32 %v1129, %v1124
          %v1193 = vmul.f32 %v1130, %v1124
          %v1194 = vadd.f32 %v1190, %v1192
          %v1195 = vadd.f32 %v1191, %v1193
          %v1196 = vmul.f32 %v1132, %v1158
          %v1197 = vmul.f32 %v1133, %v1158
          %v1198 = vadd.f32 %v1194, %v1196
          %v1199 = vadd.f32 %v1195, %v1197
          %v1200 = vmul.f32 %v1135, %v1182
          %v1201 = vmul.f32 %v1136, %v1182
          %v1202 = vadd.f32 %v1198, %v1200
          %v1203 = vadd.f32 %v1199, %v1201
          %1205 = vrot.lane.b32.xlu0 %v1120, 112
          %v1206 = vpop.permute.xlu0 %1205
          %v1208 = vmul.f32 %v1138, %v1206
          %v1209 = vmul.f32 %v1139, %v1206
          %v1210 = vadd.f32 %v1202, %v1208
          %v1211 = vadd.f32 %v1203, %v1209
          %v1212 = vmul.f32 %v1126, %v1124
          %v1213 = vmul.f32 %v1127, %v1124
          %v1214 = vadd.f32 %v1023, %v1212
          %v1215 = vadd.f32 %v1024, %v1213
          %v1216 = vmul.f32 %v1129, %v1158
          %v1217 = vmul.f32 %v1130, %v1158
          %v1218 = vadd.f32 %v1214, %v1216
          %v1219 = vadd.f32 %v1215, %v1217
          %v1220 = vmul.f32 %v1132, %v1182
          %v1221 = vmul.f32 %v1133, %v1182
          %v1222 = vadd.f32 %v1218, %v1220
          %v1223 = vadd.f32 %v1219, %v1221
          %v1224 = vmul.f32 %v1135, %v1206
          %v1225 = vmul.f32 %v1136, %v1206
          %v1226 = vadd.f32 %v1222, %v1224
          %v1227 = vadd.f32 %v1223, %v1225
          %1229 = vrot.lane.b32.xlu0 %v1124, 112
          %v1230 = vpop.permute.xlu0 %1229
          %v1232 = vmul.f32 %v1138, %v1230
          %v1233 = vmul.f32 %v1139, %v1230
          %v1234 = vadd.f32 %v1226, %v1232
          %v1235 = vadd.f32 %v1227, %v1233
          %v1236 = vmul.f32 %v915, %v1112
          %v1237 = vmul.f32 %v916, %v1112
          %v1238 = vadd.f32 %v1043, %v1236
          %v1239 = vadd.f32 %v1044, %v1237
          %v1240 = vmul.f32 %v918, %v1116
          %v1241 = vmul.f32 %v919, %v1116
          %v1242 = vadd.f32 %v1238, %v1240
          %v1243 = vadd.f32 %v1239, %v1241
          %v1244 = vmul.f32 %v921, %v1120
          %v1245 = vmul.f32 %v922, %v1120
          %v1246 = vadd.f32 %v1242, %v1244
          %v1247 = vadd.f32 %v1243, %v1245
          %v1248 = vmul.f32 %v924, %v1124
          %v1249 = vmul.f32 %v925, %v1124
          %v1250 = vadd.f32 %v1246, %v1248
          %v1251 = vadd.f32 %v1247, %v1249
          %v1252 = vmul.f32 %v927, %v1158
          %v1253 = vmul.f32 %v928, %v1158
          %v1254 = vadd.f32 %v1250, %v1252
          %v1255 = vadd.f32 %v1251, %v1253
          %v1256 = vmul.f32 %v915, %v1116
          %v1257 = vmul.f32 %v916, %v1116
          %v1258 = vadd.f32 %v1063, %v1256
          %v1259 = vadd.f32 %v1064, %v1257
          %v1260 = vmul.f32 %v918, %v1120
          %v1261 = vmul.f32 %v919, %v1120
          %v1262 = vadd.f32 %v1258, %v1260
          %v1263 = vadd.f32 %v1259, %v1261
          %v1264 = vmul.f32 %v921, %v1124
          %v1265 = vmul.f32 %v922, %v1124
          %v1266 = vadd.f32 %v1262, %v1264
          %v1267 = vadd.f32 %v1263, %v1265
          %v1268 = vmul.f32 %v924, %v1158
          %v1269 = vmul.f32 %v925, %v1158
          %v1270 = vadd.f32 %v1266, %v1268
          %v1271 = vadd.f32 %v1267, %v1269
          %v1272 = vmul.f32 %v927, %v1182
          %v1273 = vmul.f32 %v928, %v1182
          %v1274 = vadd.f32 %v1270, %v1272
          %v1275 = vadd.f32 %v1271, %v1273
          %v1276 = vmul.f32 %v915, %v1120
          %v1277 = vmul.f32 %v916, %v1120
          %v1278 = vadd.f32 %v1083, %v1276
          %v1279 = vadd.f32 %v1084, %v1277
          %v1280 = vmul.f32 %v918, %v1124
          %v1281 = vmul.f32 %v919, %v1124
          %v1282 = vadd.f32 %v1278, %v1280
          %v1283 = vadd.f32 %v1279, %v1281
          %v1284 = vmul.f32 %v921, %v1158
          %v1285 = vmul.f32 %v922, %v1158
          %v1286 = vadd.f32 %v1282, %v1284
          %v1287 = vadd.f32 %v1283, %v1285
          %v1288 = vmul.f32 %v924, %v1182
          %v1289 = vmul.f32 %v925, %v1182
          %v1290 = vadd.f32 %v1286, %v1288
          %v1291 = vadd.f32 %v1287, %v1289
          %v1292 = vmul.f32 %v927, %v1206
          %v1293 = vmul.f32 %v928, %v1206
          %v1294 = vadd.f32 %v1290, %v1292
          %v1295 = vadd.f32 %v1291, %v1293
          %v1296 = vmul.f32 %v915, %v1124
          %v1297 = vmul.f32 %v916, %v1124
          %v1298 = vadd.f32 %v1103, %v1296
          %v1299 = vadd.f32 %v1104, %v1297
          %v1300 = vmul.f32 %v918, %v1158
          %v1301 = vmul.f32 %v919, %v1158
          %v1302 = vadd.f32 %v1298, %v1300
          %v1303 = vadd.f32 %v1299, %v1301
          %v1304 = vmul.f32 %v921, %v1182
          %v1305 = vmul.f32 %v922, %v1182
          %v1306 = vadd.f32 %v1302, %v1304
          %v1307 = vadd.f32 %v1303, %v1305
          %v1308 = vmul.f32 %v924, %v1206
          %v1309 = vmul.f32 %v925, %v1206
          %v1310 = vadd.f32 %v1306, %v1308
          %v1311 = vadd.f32 %v1307, %v1309
          %v1312 = vmul.f32 %v927, %v1230
          %v1313 = vmul.f32 %v928, %v1230
          %v1314 = vadd.f32 %v1310, %v1312
          %v1315 = vadd.f32 %v1311, %v1313
          %s1316 = sadd.s32 %s358, 5
          %s1317 = smul.u32 %s1316, 4
          %s1318 = scalar_lea.vmem %s275, %s1317
          %v1319 = vld [vmem:[%s1318] sm:$0xf]
          %v1320 = vlaneseq
          %v1321 = vshrl.u32 %v1320, 7
          %v1322 = vsub.s32 0, %v1321
          %v1323 = vrot.slane %v1319, %v1322
          %v1324 = vlaneseq
          %v1325 = vshrl.u32 %v1324, 7
          %v1326 = vsub.s32 1, %v1325
          %v1327 = vrot.slane %v1319, %v1326
          %v1328 = vlaneseq
          %v1329 = vshrl.u32 %v1328, 7
          %v1330 = vsub.s32 2, %v1329
          %v1331 = vrot.slane %v1319, %v1330
          %v1332 = vlaneseq
          %v1333 = vshrl.u32 %v1332, 7
          %v1334 = vsub.s32 3, %v1333
          %v1335 = vrot.slane %v1319, %v1334
          %v1336 = vmul.f32 %v1126, %v1323
          %v1337 = vmul.f32 %v1127, %v1323
          %v1338 = vadd.f32 %v1254, %v1336
          %v1339 = vadd.f32 %v1255, %v1337
          %v1340 = vmul.f32 %v1129, %v1327
          %v1341 = vmul.f32 %v1130, %v1327
          %v1342 = vadd.f32 %v1338, %v1340
          %v1343 = vadd.f32 %v1339, %v1341
          %v1344 = vmul.f32 %v1132, %v1331
          %v1345 = vmul.f32 %v1133, %v1331
          %v1346 = vadd.f32 %v1342, %v1344
          %v1347 = vadd.f32 %v1343, %v1345
          %v1348 = vmul.f32 %v1135, %v1335
          %v1349 = vmul.f32 %v1136, %v1335
          %v1350 = vadd.f32 %v1346, %v1348
          %v1351 = vadd.f32 %v1347, %v1349
          %1353 = vrot.lane.b32.xlu0 %v1323, 112
          %v1354 = vpop.permute.xlu0 %1353
          %v1356 = vmul.f32 %v1138, %v1354
          %v1357 = vmul.f32 %v1139, %v1354
          %v1358 = vadd.f32 %v1350, %v1356
          %v1359 = vadd.f32 %v1351, %v1357
          %v1360 = vmul.f32 %v1126, %v1327
          %v1361 = vmul.f32 %v1127, %v1327
          %v1362 = vadd.f32 %v1274, %v1360
          %v1363 = vadd.f32 %v1275, %v1361
          %v1364 = vmul.f32 %v1129, %v1331
          %v1365 = vmul.f32 %v1130, %v1331
          %v1366 = vadd.f32 %v1362, %v1364
          %v1367 = vadd.f32 %v1363, %v1365
          %v1368 = vmul.f32 %v1132, %v1335
          %v1369 = vmul.f32 %v1133, %v1335
          %v1370 = vadd.f32 %v1366, %v1368
          %v1371 = vadd.f32 %v1367, %v1369
          %v1372 = vmul.f32 %v1135, %v1354
          %v1373 = vmul.f32 %v1136, %v1354
          %v1374 = vadd.f32 %v1370, %v1372
          %v1375 = vadd.f32 %v1371, %v1373
          %1377 = vrot.lane.b32.xlu0 %v1327, 112
          %v1378 = vpop.permute.xlu0 %1377
          %v1380 = vmul.f32 %v1138, %v1378
          %v1381 = vmul.f32 %v1139, %v1378
          %v1382 = vadd.f32 %v1374, %v1380
          %v1383 = vadd.f32 %v1375, %v1381
          %v1384 = vmul.f32 %v1126, %v1331
          %v1385 = vmul.f32 %v1127, %v1331
          %v1386 = vadd.f32 %v1294, %v1384
          %v1387 = vadd.f32 %v1295, %v1385
          %v1388 = vmul.f32 %v1129, %v1335
          %v1389 = vmul.f32 %v1130, %v1335
          %v1390 = vadd.f32 %v1386, %v1388
          %v1391 = vadd.f32 %v1387, %v1389
          %v1392 = vmul.f32 %v1132, %v1354
          %v1393 = vmul.f32 %v1133, %v1354
          %v1394 = vadd.f32 %v1390, %v1392
          %v1395 = vadd.f32 %v1391, %v1393
          %v1396 = vmul.f32 %v1135, %v1378
          %v1397 = vmul.f32 %v1136, %v1378
          %v1398 = vadd.f32 %v1394, %v1396
          %v1399 = vadd.f32 %v1395, %v1397
          %1401 = vrot.lane.b32.xlu0 %v1331, 112
          %v1402 = vpop.permute.xlu0 %1401
          %v1404 = vmul.f32 %v1138, %v1402
          %v1405 = vmul.f32 %v1139, %v1402
          %v1406 = vadd.f32 %v1398, %v1404
          %v1407 = vadd.f32 %v1399, %v1405
          %v1408 = vmul.f32 %v1126, %v1335
          %v1409 = vmul.f32 %v1127, %v1335
          %v1410 = vadd.f32 %v1314, %v1408
          %v1411 = vadd.f32 %v1315, %v1409
          %v1412 = vmul.f32 %v1129, %v1354
          %v1413 = vmul.f32 %v1130, %v1354
          %v1414 = vadd.f32 %v1410, %v1412
          %v1415 = vadd.f32 %v1411, %v1413
          %v1416 = vmul.f32 %v1132, %v1378
          %v1417 = vmul.f32 %v1133, %v1378
          %v1418 = vadd.f32 %v1414, %v1416
          %v1419 = vadd.f32 %v1415, %v1417
          %v1420 = vmul.f32 %v1135, %v1402
          %v1421 = vmul.f32 %v1136, %v1402
          %v1422 = vadd.f32 %v1418, %v1420
          %v1423 = vadd.f32 %v1419, %v1421
          %1425 = vrot.lane.b32.xlu0 %v1335, 112
          %v1426 = vpop.permute.xlu0 %1425
          %v1428 = vmul.f32 %v1138, %v1426
          %v1429 = vmul.f32 %v1139, %v1426
          %v1430 = vadd.f32 %v1422, %v1428
          %v1431 = vadd.f32 %v1423, %v1429
          %v1432 = vld [vmem:[%s2] sm:$0xff]
          %v1433 = vld [vmem:[%s2 + $0x8] sm:$0xff]
          %v1434 = vmax.f32 %v1162, %v1358
          %v1435 = vmax.f32 %v1163, %v1359
          %v1436 = vmax.f32 %v1186, %v1382
          %v1437 = vmax.f32 %v1187, %v1383
          %v1438 = vmax.f32 %v1434, %v1436
          %v1439 = vmax.f32 %v1435, %v1437
          %v1440 = vmax.f32 %v1210, %v1406
          %v1441 = vmax.f32 %v1211, %v1407
          %v1442 = vmax.f32 %v1234, %v1430
          %v1443 = vmax.f32 %v1235, %v1431
          %v1444 = vmax.f32 %v1440, %v1442
          %v1445 = vmax.f32 %v1441, %v1443
          %1447 = vset.pattern.permute.xlu0 0
          %1448 = vperm.xlu0 %1447, %v1432
          %v1449 = vpop.permute.xlu0 %1448
          %1452 = vset.pattern.permute.xlu0 0
          %1453 = vperm.xlu0 %1452, %v1433
          %v1454 = vpop.permute.xlu0 %1453
          %v1456 = vadd.f32 %v1438, %v1449
          %v1457 = vadd.f32 %v1439, %v1454
          %v1458 = vmax.f32 %v1456, 0.0
          %v1459 = vmax.f32 %v1457, 0.0
          %v1460 = vpack.c.bf16 %v1459, %v1458
          %v1461 = vadd.f32 %v1444, %v1449
          %v1462 = vadd.f32 %v1445, %v1454
          %v1463 = vmax.f32 %v1461, 0.0
          %v1464 = vmax.f32 %v1462, 0.0
          %v1465 = vpack.c.bf16 %v1464, %v1463
          %s1466 = sadd.s32 %s353, 2
          %v1468 = vunpack.c.l.b16 %v1460
          %v1469 = vunpack.c.h.b16 %v1460
          %v1470 = vpack.c.b16 %v1468, %v1468
          %v1471 = vpack.c.b16 %v1469, %v1469
          %1472 = vrot.lane.b32.xlu0 %v1470, 16
          %v1473 = vpop.permute.xlu0 %1472
          %1474 = vrot.lane.b32.xlu0 %v1471, 16
          %v1475 = vpop.permute.xlu0 %1474
          %s1478 = smul.u32 %s1466, 4
          %s1479 = smul.addr %s1478, 4
          %s1480 = scalar_lea.vmem [#allocation2], %s1479
          %vm1481 = vcmask 1043584
          %1482 = vst.msk [vmem:[%s1480] sm:$0xf] %vm1481, %v1473
          %1483 = vst.msk [vmem:[%s1480 + $0x8] sm:$0xf] %vm1481, %v1475
          %v1485 = vunpack.c.l.b16 %v1465
          %v1486 = vunpack.c.h.b16 %v1465
          %v1487 = vpack.c.b16 %v1485, %v1485
          %v1488 = vpack.c.b16 %v1486, %v1486
          %1489 = vrot.lane.b32.xlu0 %v1487, 16
          %v1490 = vpop.permute.xlu0 %1489
          %1491 = vrot.lane.b32.xlu0 %v1488, 16
          %v1492 = vpop.permute.xlu0 %1491
          %s1495 = smul.addr %s1478, 4
          %s1496 = scalar_lea.vmem [#allocation3], %s1495
          %1497 = vst.msk [vmem:[%s1496] sm:$0xf] %vm1481, %v1490
          %1498 = vst.msk [vmem:[%s1496 + $0x8] sm:$0xf] %vm1481, %v1492
        $region53: #{cnn_forward.1} parent=47 // loop_footer
          %s357 = sadd.s32 1, %s353
        $region54: #{cnn_forward.1} parent=47 // loop_footer_branch
          %352 = sbr.rel target = $region50
        $region55: #{cnn_forward.1} parent=47 // loop_exit
          _
        %v1499 = vld [vmem:[%s3] sm:$0xff]
        %v1500 = vld [vmem:[%s3 + $0x8] sm:$0xff]
        %v1501 = vld [vmem:[%s3 + $0x10] sm:$0xff]
        %v1502 = vld [vmem:[%s3 + $0x18] sm:$0xff]
        %v1503 = vld [vmem:[%s3 + $0x20] sm:$0xff]
        %v1504 = vld [vmem:[%s3 + $0x28] sm:$0xff]
        %v1505 = vld [vmem:[%s3 + $0x30] sm:$0xff]
        %v1506 = vld [vmem:[%s3 + $0x38] sm:$0xff]
        %v1507 = vld [vmem:[%s4] sm:$0xff]
        %v1508 = vld [vmem:[%s4 + $0x8] sm:$0xff]
        %v1509 = vld [vmem:[%s4 + $0x10] sm:$0xff]
        %v1510 = vld [vmem:[%s4 + $0x18] sm:$0xff]
        %vm1511 = vcmask 916480
        %1512 = vst.msk [vmem:[#allocation5] sm:$0xff] %vm1511, 0.0
        %1513 = vst.msk [vmem:[#allocation5 + $0x8] sm:$0xff] %vm1511, 0.0
        %1514 = vst.msk [vmem:[#allocation5 + $0x10] sm:$0xff] %vm1511, 0.0
        %1515 = vst.msk [vmem:[#allocation5 + $0x18] sm:$0xff] %vm1511, 0.0
        %1516 = vst.msk [vmem:[#allocation6] sm:$0xff] %vm1511, 0.0
        %1517 = vst.msk [vmem:[#allocation6 + $0x8] sm:$0xff] %vm1511, 0.0
        %1518 = vst.msk [vmem:[#allocation6 + $0x10] sm:$0xff] %vm1511, 0.0
        %1519 = vst.msk [vmem:[#allocation6 + $0x18] sm:$0xff] %vm1511, 0.0
        loop: start=0, step=1, limit=7
        $region56: #{cnn_forward.1} parent=47 // loop_pre_header
          _
        $region57: #{cnn_forward.1} parent=47 // loop_header
          %s1521 = sphi 0, %s1525
          %p1522 = scmp.ge.s32.totalorder %s1521, 7
        $region58: #{cnn_forward.1} parent=47 // loop_header_branch
          %1524 = sbr.rel (%p1522) target = $region62
        $region59: #{cnn_forward.1} parent=47 // loop_body
          %s1526 = smul.u32 %s1521, 2
          %s1527 = smul.u32 %s1526, 4
          %s1528 = smul.addr %s1527, 4
          %s1529 = scalar_lea.vmem [#allocation2], %s1528
          %v1530 = vld [vmem:[%s1529] sm:$0xff]
          %v1531 = vld [vmem:[%s1529 + $0x8] sm:$0xff]
          %s1532 = smul.addr %s1527, 4
          %s1533 = scalar_lea.vmem [#allocation3], %s1532
          %v1534 = vld [vmem:[%s1533] sm:$0xff]
          %v1535 = vld [vmem:[%s1533 + $0x8] sm:$0xff]
          %vm1536 = vcmask 912384
          %1537 = vst.msk [vmem:[#allocation4] sm:$0xf] %vm1536, %v1530
          %1538 = vst.msk [vmem:[#allocation4 + $0x10] sm:$0xf] %vm1536, %v1531
          %1539 = vst.msk [vmem:[#allocation4 + $0x20] sm:$0xf] %vm1536, %v1534
          %1540 = vst.msk [vmem:[#allocation4 + $0x30] sm:$0xf] %vm1536, %v1535
          %1543 = vrot.lane.b32.xlu0 %v1530, 112
          %v1544 = vpop.permute.xlu0 %1543
          %1545 = vrot.lane.b32.xlu0 %v1531, 112
          %v1546 = vpop.permute.xlu0 %1545
          %1549 = vst.msk [vmem:[#allocation4 + $0x40] sm:$0xf] %vm1536, %v1544
          %1550 = vst.msk [vmem:[#allocation4 + $0x50] sm:$0xf] %vm1536, %v1546
          %1553 = vrot.lane.b32.xlu0 %v1534, 112
          %v1554 = vpop.permute.xlu0 %1553
          %1555 = vrot.lane.b32.xlu0 %v1535, 112
          %v1556 = vpop.permute.xlu0 %1555
          %1559 = vst.msk [vmem:[#allocation4 + $0x60] sm:$0xf] %vm1536, %v1554
          %1560 = vst.msk [vmem:[#allocation4 + $0x70] sm:$0xf] %vm1536, %v1556
          %1561 = vrot.lane.b32.xlu0 %v1530, 96
          %v1562 = vpop.permute.xlu0 %1561
          %1563 = vrot.lane.b32.xlu0 %v1531, 96
          %v1564 = vpop.permute.xlu0 %1563
          %v1565 = vrot.slane %v1562, 4
          %v1566 = vrot.slane %v1564, 4
          %vm1567 = vcmask 785408
          %v1568 = vsel %vm1567, %v1562, %v1565
          %v1569 = vsel %vm1567, %v1564, %v1566
          %1572 = vst.msk [vmem:[#allocation4 + $0x80] sm:$0xf] %vm1536, %v1568
          %1573 = vst.msk [vmem:[#allocation4 + $0x90] sm:$0xf] %vm1536, %v1569
          %1574 = vst.msk [vmem:[#allocation4 + $0x4] sm:$0xf] %vm1536, %v1534
          %1575 = vst.msk [vmem:[#allocation4 + $0x14] sm:$0xf] %vm1536, %v1535
          %1576 = vst.msk [vmem:[#allocation4 + $0x24] sm:$0xf] %vm1536, %v1544
          %1577 = vst.msk [vmem:[#allocation4 + $0x34] sm:$0xf] %vm1536, %v1546
          %1578 = vst.msk [vmem:[#allocation4 + $0x44] sm:$0xf] %vm1536, %v1554
          %1579 = vst.msk [vmem:[#allocation4 + $0x54] sm:$0xf] %vm1536, %v1556
          %1580 = vst.msk [vmem:[#allocation4 + $0x64] sm:$0xf] %vm1536, %v1568
          %1581 = vst.msk [vmem:[#allocation4 + $0x74] sm:$0xf] %vm1536, %v1569
          %1582 = vrot.lane.b32.xlu0 %v1534, 96
          %v1583 = vpop.permute.xlu0 %1582
          %1584 = vrot.lane.b32.xlu0 %v1535, 96
          %v1585 = vpop.permute.xlu0 %1584
          %v1586 = vrot.slane %v1583, 4
          %v1587 = vrot.slane %v1585, 4
          %v1588 = vsel %vm1567, %v1583, %v1586
          %v1589 = vsel %vm1567, %v1585, %v1587
          %1592 = vst.msk [vmem:[#allocation4 + $0x84] sm:$0xf] %vm1536, %v1588
          %1593 = vst.msk [vmem:[#allocation4 + $0x94] sm:$0xf] %vm1536, %v1589
          %s1594 = sadd.s32 %s1526, 1
          %s1595 = smul.u32 %s1594, 4
          %s1596 = smul.addr %s1595, 4
          %s1597 = scalar_lea.vmem [#allocation2], %s1596
          %v1598 = vld [vmem:[%s1597] sm:$0xff]
          %v1599 = vld [vmem:[%s1597 + $0x8] sm:$0xff]
          %s1600 = smul.addr %s1595, 4
          %s1601 = scalar_lea.vmem [#allocation3], %s1600
          %v1602 = vld [vmem:[%s1601] sm:$0xff]
          %v1603 = vld [vmem:[%s1601 + $0x8] sm:$0xff]
          %1604 = vst.msk [vmem:[#allocation4 + $0xa0] sm:$0xf] %vm1536, %v1598
          %1605 = vst.msk [vmem:[#allocation4 + $0xb0] sm:$0xf] %vm1536, %v1599
          %1606 = vst.msk [vmem:[#allocation4 + $0xc0] sm:$0xf] %vm1536, %v1602
          %1607 = vst.msk [vmem:[#allocation4 + $0xd0] sm:$0xf] %vm1536, %v1603
          %1610 = vrot.lane.b32.xlu0 %v1598, 112
          %v1611 = vpop.permute.xlu0 %1610
          %1612 = vrot.lane.b32.xlu0 %v1599, 112
          %v1613 = vpop.permute.xlu0 %1612
          %1616 = vst.msk [vmem:[#allocation4 + $0xe0] sm:$0xf] %vm1536, %v1611
          %1617 = vst.msk [vmem:[#allocation4 + $0xf0] sm:$0xf] %vm1536, %v1613
          %1620 = vrot.lane.b32.xlu0 %v1602, 112
          %v1621 = vpop.permute.xlu0 %1620
          %1622 = vrot.lane.b32.xlu0 %v1603, 112
          %v1623 = vpop.permute.xlu0 %1622
          %1626 = vst.msk [vmem:[#allocation4 + $0x100] sm:$0xf] %vm1536, %v1621
          %1627 = vst.msk [vmem:[#allocation4 + $0x110] sm:$0xf] %vm1536, %v1623
          %1628 = vrot.lane.b32.xlu0 %v1598, 96
          %v1629 = vpop.permute.xlu0 %1628
          %1630 = vrot.lane.b32.xlu0 %v1599, 96
          %v1631 = vpop.permute.xlu0 %1630
          %v1632 = vrot.slane %v1629, 4
          %v1633 = vrot.slane %v1631, 4
          %v1634 = vsel %vm1567, %v1629, %v1632
          %v1635 = vsel %vm1567, %v1631, %v1633
          %1638 = vst.msk [vmem:[#allocation4 + $0x120] sm:$0xf] %vm1536, %v1634
          %1639 = vst.msk [vmem:[#allocation4 + $0x130] sm:$0xf] %vm1536, %v1635
          %1640 = vst.msk [vmem:[#allocation4 + $0xa4] sm:$0xf] %vm1536, %v1602
          %1641 = vst.msk [vmem:[#allocation4 + $0xb4] sm:$0xf] %vm1536, %v1603
          %1642 = vst.msk [vmem:[#allocation4 + $0xc4] sm:$0xf] %vm1536, %v1611
          %1643 = vst.msk [vmem:[#allocation4 + $0xd4] sm:$0xf] %vm1536, %v1613
          %1644 = vst.msk [vmem:[#allocation4 + $0xe4] sm:$0xf] %vm1536, %v1621
          %1645 = vst.msk [vmem:[#allocation4 + $0xf4] sm:$0xf] %vm1536, %v1623
          %1646 = vst.msk [vmem:[#allocation4 + $0x104] sm:$0xf] %vm1536, %v1634
          %1647 = vst.msk [vmem:[#allocation4 + $0x114] sm:$0xf] %vm1536, %v1635
          %1648 = vrot.lane.b32.xlu0 %v1602, 96
          %v1649 = vpop.permute.xlu0 %1648
          %1650 = vrot.lane.b32.xlu0 %v1603, 96
          %v1651 = vpop.permute.xlu0 %1650
          %v1652 = vrot.slane %v1649, 4
          %v1653 = vrot.slane %v1651, 4
          %v1654 = vsel %vm1567, %v1649, %v1652
          %v1655 = vsel %vm1567, %v1651, %v1653
          %1658 = vst.msk [vmem:[#allocation4 + $0x124] sm:$0xf] %vm1536, %v1654
          %1659 = vst.msk [vmem:[#allocation4 + $0x134] sm:$0xf] %vm1536, %v1655
          %1660 = vst.msk [vmem:[#allocation4 + $0x8] sm:$0xf] %vm1536, %v1598
          %1661 = vst.msk [vmem:[#allocation4 + $0x18] sm:$0xf] %vm1536, %v1599
          %1662 = vst.msk [vmem:[#allocation4 + $0x28] sm:$0xf] %vm1536, %v1602
          %1663 = vst.msk [vmem:[#allocation4 + $0x38] sm:$0xf] %vm1536, %v1603
          %1664 = vst.msk [vmem:[#allocation4 + $0x48] sm:$0xf] %vm1536, %v1611
          %1665 = vst.msk [vmem:[#allocation4 + $0x58] sm:$0xf] %vm1536, %v1613
          %1666 = vst.msk [vmem:[#allocation4 + $0x68] sm:$0xf] %vm1536, %v1621
          %1667 = vst.msk [vmem:[#allocation4 + $0x78] sm:$0xf] %vm1536, %v1623
          %1668 = vst.msk [vmem:[#allocation4 + $0x88] sm:$0xf] %vm1536, %v1634
          %1669 = vst.msk [vmem:[#allocation4 + $0x98] sm:$0xf] %vm1536, %v1635
          %1670 = vst.msk [vmem:[#allocation4 + $0xc] sm:$0xf] %vm1536, %v1602
          %1671 = vst.msk [vmem:[#allocation4 + $0x1c] sm:$0xf] %vm1536, %v1603
          %1672 = vst.msk [vmem:[#allocation4 + $0x2c] sm:$0xf] %vm1536, %v1611
          %1673 = vst.msk [vmem:[#allocation4 + $0x3c] sm:$0xf] %vm1536, %v1613
          %1674 = vst.msk [vmem:[#allocation4 + $0x4c] sm:$0xf] %vm1536, %v1621
          %1675 = vst.msk [vmem:[#allocation4 + $0x5c] sm:$0xf] %vm1536, %v1623
          %1676 = vst.msk [vmem:[#allocation4 + $0x6c] sm:$0xf] %vm1536, %v1634
          %1677 = vst.msk [vmem:[#allocation4 + $0x7c] sm:$0xf] %vm1536, %v1635
          %1678 = vst.msk [vmem:[#allocation4 + $0x8c] sm:$0xf] %vm1536, %v1654
          %1679 = vst.msk [vmem:[#allocation4 + $0x9c] sm:$0xf] %vm1536, %v1655
          %s1680 = sadd.s32 %s1526, 2
          %s1681 = smul.u32 %s1680, 4
          %s1682 = smul.addr %s1681, 4
          %s1683 = scalar_lea.vmem [#allocation2], %s1682
          %v1684 = vld [vmem:[%s1683] sm:$0xff]
          %v1685 = vld [vmem:[%s1683 + $0x8] sm:$0xff]
          %s1686 = smul.addr %s1681, 4
          %s1687 = scalar_lea.vmem [#allocation3], %s1686
          %v1688 = vld [vmem:[%s1687] sm:$0xff]
          %v1689 = vld [vmem:[%s1687 + $0x8] sm:$0xff]
          %1690 = vst.msk [vmem:[#allocation4 + $0x140] sm:$0xf] %vm1536, %v1684
          %1691 = vst.msk [vmem:[#allocation4 + $0x150] sm:$0xf] %vm1536, %v1685
          %1692 = vst.msk [vmem:[#allocation4 + $0x160] sm:$0xf] %vm1536, %v1688
          %1693 = vst.msk [vmem:[#allocation4 + $0x170] sm:$0xf] %vm1536, %v1689
          %1696 = vrot.lane.b32.xlu0 %v1684, 112
          %v1697 = vpop.permute.xlu0 %1696
          %1698 = vrot.lane.b32.xlu0 %v1685, 112
          %v1699 = vpop.permute.xlu0 %1698
          %1702 = vst.msk [vmem:[#allocation4 + $0x180] sm:$0xf] %vm1536, %v1697
          %1703 = vst.msk [vmem:[#allocation4 + $0x190] sm:$0xf] %vm1536, %v1699
          %1706 = vrot.lane.b32.xlu0 %v1688, 112
          %v1707 = vpop.permute.xlu0 %1706
          %1708 = vrot.lane.b32.xlu0 %v1689, 112
          %v1709 = vpop.permute.xlu0 %1708
          %1712 = vst.msk [vmem:[#allocation4 + $0x1a0] sm:$0xf] %vm1536, %v1707
          %1713 = vst.msk [vmem:[#allocation4 + $0x1b0] sm:$0xf] %vm1536, %v1709
          %1714 = vrot.lane.b32.xlu0 %v1684, 96
          %v1715 = vpop.permute.xlu0 %1714
          %1716 = vrot.lane.b32.xlu0 %v1685, 96
          %v1717 = vpop.permute.xlu0 %1716
          %v1718 = vrot.slane %v1715, 4
          %v1719 = vrot.slane %v1717, 4
          %v1720 = vsel %vm1567, %v1715, %v1718
          %v1721 = vsel %vm1567, %v1717, %v1719
          %1724 = vst.msk [vmem:[#allocation4 + $0x1c0] sm:$0xf] %vm1536, %v1720
          %1725 = vst.msk [vmem:[#allocation4 + $0x1d0] sm:$0xf] %vm1536, %v1721
          %1726 = vst.msk [vmem:[#allocation4 + $0x144] sm:$0xf] %vm1536, %v1688
          %1727 = vst.msk [vmem:[#allocation4 + $0x154] sm:$0xf] %vm1536, %v1689
          %1728 = vst.msk [vmem:[#allocation4 + $0x164] sm:$0xf] %vm1536, %v1697
          %1729 = vst.msk [vmem:[#allocation4 + $0x174] sm:$0xf] %vm1536, %v1699
          %1730 = vst.msk [vmem:[#allocation4 + $0x184] sm:$0xf] %vm1536, %v1707
          %1731 = vst.msk [vmem:[#allocation4 + $0x194] sm:$0xf] %vm1536, %v1709
          %1732 = vst.msk [vmem:[#allocation4 + $0x1a4] sm:$0xf] %vm1536, %v1720
          %1733 = vst.msk [vmem:[#allocation4 + $0x1b4] sm:$0xf] %vm1536, %v1721
          %1734 = vrot.lane.b32.xlu0 %v1688, 96
          %v1735 = vpop.permute.xlu0 %1734
          %1736 = vrot.lane.b32.xlu0 %v1689, 96
          %v1737 = vpop.permute.xlu0 %1736
          %v1738 = vrot.slane %v1735, 4
          %v1739 = vrot.slane %v1737, 4
          %v1740 = vsel %vm1567, %v1735, %v1738
          %v1741 = vsel %vm1567, %v1737, %v1739
          %1744 = vst.msk [vmem:[#allocation4 + $0x1c4] sm:$0xf] %vm1536, %v1740
          %1745 = vst.msk [vmem:[#allocation4 + $0x1d4] sm:$0xf] %vm1536, %v1741
          %1746 = vst.msk [vmem:[#allocation4 + $0xa8] sm:$0xf] %vm1536, %v1684
          %1747 = vst.msk [vmem:[#allocation4 + $0xb8] sm:$0xf] %vm1536, %v1685
          %1748 = vst.msk [vmem:[#allocation4 + $0xc8] sm:$0xf] %vm1536, %v1688
          %1749 = vst.msk [vmem:[#allocation4 + $0xd8] sm:$0xf] %vm1536, %v1689
          %1750 = vst.msk [vmem:[#allocation4 + $0xe8] sm:$0xf] %vm1536, %v1697
          %1751 = vst.msk [vmem:[#allocation4 + $0xf8] sm:$0xf] %vm1536, %v1699
          %1752 = vst.msk [vmem:[#allocation4 + $0x108] sm:$0xf] %vm1536, %v1707
          %1753 = vst.msk [vmem:[#allocation4 + $0x118] sm:$0xf] %vm1536, %v1709
          %1754 = vst.msk [vmem:[#allocation4 + $0x128] sm:$0xf] %vm1536, %v1720
          %1755 = vst.msk [vmem:[#allocation4 + $0x138] sm:$0xf] %vm1536, %v1721
          %1756 = vst.msk [vmem:[#allocation4 + $0xac] sm:$0xf] %vm1536, %v1688
          %1757 = vst.msk [vmem:[#allocation4 + $0xbc] sm:$0xf] %vm1536, %v1689
          %1758 = vst.msk [vmem:[#allocation4 + $0xcc] sm:$0xf] %vm1536, %v1697
          %1759 = vst.msk [vmem:[#allocation4 + $0xdc] sm:$0xf] %vm1536, %v1699
          %1760 = vst.msk [vmem:[#allocation4 + $0xec] sm:$0xf] %vm1536, %v1707
          %1761 = vst.msk [vmem:[#allocation4 + $0xfc] sm:$0xf] %vm1536, %v1709
          %1762 = vst.msk [vmem:[#allocation4 + $0x10c] sm:$0xf] %vm1536, %v1720
          %1763 = vst.msk [vmem:[#allocation4 + $0x11c] sm:$0xf] %vm1536, %v1721
          %1764 = vst.msk [vmem:[#allocation4 + $0x12c] sm:$0xf] %vm1536, %v1740
          %1765 = vst.msk [vmem:[#allocation4 + $0x13c] sm:$0xf] %vm1536, %v1741
          %s1766 = sadd.s32 %s1526, 3
          %s1767 = smul.u32 %s1766, 4
          %s1768 = smul.addr %s1767, 4
          %s1769 = scalar_lea.vmem [#allocation2], %s1768
          %v1770 = vld [vmem:[%s1769] sm:$0xff]
          %v1771 = vld [vmem:[%s1769 + $0x8] sm:$0xff]
          %s1772 = smul.addr %s1767, 4
          %s1773 = scalar_lea.vmem [#allocation3], %s1772
          %v1774 = vld [vmem:[%s1773] sm:$0xff]
          %v1775 = vld [vmem:[%s1773 + $0x8] sm:$0xff]
          %1776 = vst.msk [vmem:[#allocation4 + $0x1e0] sm:$0xf] %vm1536, %v1770
          %1777 = vst.msk [vmem:[#allocation4 + $0x1f0] sm:$0xf] %vm1536, %v1771
          %1778 = vst.msk [vmem:[#allocation4 + $0x200] sm:$0xf] %vm1536, %v1774
          %1779 = vst.msk [vmem:[#allocation4 + $0x210] sm:$0xf] %vm1536, %v1775
          %1782 = vrot.lane.b32.xlu0 %v1770, 112
          %v1783 = vpop.permute.xlu0 %1782
          %1784 = vrot.lane.b32.xlu0 %v1771, 112
          %v1785 = vpop.permute.xlu0 %1784
          %1788 = vst.msk [vmem:[#allocation4 + $0x220] sm:$0xf] %vm1536, %v1783
          %1789 = vst.msk [vmem:[#allocation4 + $0x230] sm:$0xf] %vm1536, %v1785
          %1792 = vrot.lane.b32.xlu0 %v1774, 112
          %v1793 = vpop.permute.xlu0 %1792
          %1794 = vrot.lane.b32.xlu0 %v1775, 112
          %v1795 = vpop.permute.xlu0 %1794
          %1798 = vst.msk [vmem:[#allocation4 + $0x240] sm:$0xf] %vm1536, %v1793
          %1799 = vst.msk [vmem:[#allocation4 + $0x250] sm:$0xf] %vm1536, %v1795
          %1800 = vrot.lane.b32.xlu0 %v1770, 96
          %v1801 = vpop.permute.xlu0 %1800
          %1802 = vrot.lane.b32.xlu0 %v1771, 96
          %v1803 = vpop.permute.xlu0 %1802
          %v1804 = vrot.slane %v1801, 4
          %v1805 = vrot.slane %v1803, 4
          %v1806 = vsel %vm1567, %v1801, %v1804
          %v1807 = vsel %vm1567, %v1803, %v1805
          %1810 = vst.msk [vmem:[#allocation4 + $0x260] sm:$0xf] %vm1536, %v1806
          %1811 = vst.msk [vmem:[#allocation4 + $0x270] sm:$0xf] %vm1536, %v1807
          %1812 = vst.msk [vmem:[#allocation4 + $0x1e4] sm:$0xf] %vm1536, %v1774
          %1813 = vst.msk [vmem:[#allocation4 + $0x1f4] sm:$0xf] %vm1536, %v1775
          %1814 = vst.msk [vmem:[#allocation4 + $0x204] sm:$0xf] %vm1536, %v1783
          %1815 = vst.msk [vmem:[#allocation4 + $0x214] sm:$0xf] %vm1536, %v1785
          %1816 = vst.msk [vmem:[#allocation4 + $0x224] sm:$0xf] %vm1536, %v1793
          %1817 = vst.msk [vmem:[#allocation4 + $0x234] sm:$0xf] %vm1536, %v1795
          %1818 = vst.msk [vmem:[#allocation4 + $0x244] sm:$0xf] %vm1536, %v1806
          %1819 = vst.msk [vmem:[#allocation4 + $0x254] sm:$0xf] %vm1536, %v1807
          %1820 = vrot.lane.b32.xlu0 %v1774, 96
          %v1821 = vpop.permute.xlu0 %1820
          %1822 = vrot.lane.b32.xlu0 %v1775, 96
          %v1823 = vpop.permute.xlu0 %1822
          %v1824 = vrot.slane %v1821, 4
          %v1825 = vrot.slane %v1823, 4
          %v1826 = vsel %vm1567, %v1821, %v1824
          %v1827 = vsel %vm1567, %v1823, %v1825
          %1830 = vst.msk [vmem:[#allocation4 + $0x264] sm:$0xf] %vm1536, %v1826
          %1831 = vst.msk [vmem:[#allocation4 + $0x274] sm:$0xf] %vm1536, %v1827
          %1832 = vst.msk [vmem:[#allocation4 + $0x148] sm:$0xf] %vm1536, %v1770
          %1833 = vst.msk [vmem:[#allocation4 + $0x158] sm:$0xf] %vm1536, %v1771
          %1834 = vst.msk [vmem:[#allocation4 + $0x168] sm:$0xf] %vm1536, %v1774
          %1835 = vst.msk [vmem:[#allocation4 + $0x178] sm:$0xf] %vm1536, %v1775
          %1836 = vst.msk [vmem:[#allocation4 + $0x188] sm:$0xf] %vm1536, %v1783
          %1837 = vst.msk [vmem:[#allocation4 + $0x198] sm:$0xf] %vm1536, %v1785
          %1838 = vst.msk [vmem:[#allocation4 + $0x1a8] sm:$0xf] %vm1536, %v1793
          %1839 = vst.msk [vmem:[#allocation4 + $0x1b8] sm:$0xf] %vm1536, %v1795
          %1840 = vst.msk [vmem:[#allocation4 + $0x1c8] sm:$0xf] %vm1536, %v1806
          %1841 = vst.msk [vmem:[#allocation4 + $0x1d8] sm:$0xf] %vm1536, %v1807
          %1842 = vst.msk [vmem:[#allocation4 + $0x14c] sm:$0xf] %vm1536, %v1774
          %1843 = vst.msk [vmem:[#allocation4 + $0x15c] sm:$0xf] %vm1536, %v1775
          %1844 = vst.msk [vmem:[#allocation4 + $0x16c] sm:$0xf] %vm1536, %v1783
          %1845 = vst.msk [vmem:[#allocation4 + $0x17c] sm:$0xf] %vm1536, %v1785
          %1846 = vst.msk [vmem:[#allocation4 + $0x18c] sm:$0xf] %vm1536, %v1793
          %1847 = vst.msk [vmem:[#allocation4 + $0x19c] sm:$0xf] %vm1536, %v1795
          %1848 = vst.msk [vmem:[#allocation4 + $0x1ac] sm:$0xf] %vm1536, %v1806
          %1849 = vst.msk [vmem:[#allocation4 + $0x1bc] sm:$0xf] %vm1536, %v1807
          %1850 = vst.msk [vmem:[#allocation4 + $0x1cc] sm:$0xf] %vm1536, %v1826
          %1851 = vst.msk [vmem:[#allocation4 + $0x1dc] sm:$0xf] %vm1536, %v1827
          %s1852 = sadd.s32 %s1526, 4
          %s1853 = smul.u32 %s1852, 4
          %s1854 = smul.addr %s1853, 4
          %s1855 = scalar_lea.vmem [#allocation2], %s1854
          %v1856 = vld [vmem:[%s1855] sm:$0xff]
          %v1857 = vld [vmem:[%s1855 + $0x8] sm:$0xff]
          %s1858 = smul.addr %s1853, 4
          %s1859 = scalar_lea.vmem [#allocation3], %s1858
          %v1860 = vld [vmem:[%s1859] sm:$0xff]
          %v1861 = vld [vmem:[%s1859 + $0x8] sm:$0xff]
          %1862 = vst.msk [vmem:[#allocation4 + $0x280] sm:$0xf] %vm1536, %v1856
          %1863 = vst.msk [vmem:[#allocation4 + $0x290] sm:$0xf] %vm1536, %v1857
          %1864 = vst.msk [vmem:[#allocation4 + $0x2a0] sm:$0xf] %vm1536, %v1860
          %1865 = vst.msk [vmem:[#allocation4 + $0x2b0] sm:$0xf] %vm1536, %v1861
          %1868 = vrot.lane.b32.xlu0 %v1856, 112
          %v1869 = vpop.permute.xlu0 %1868
          %1870 = vrot.lane.b32.xlu0 %v1857, 112
          %v1871 = vpop.permute.xlu0 %1870
          %1874 = vst.msk [vmem:[#allocation4 + $0x2c0] sm:$0xf] %vm1536, %v1869
          %1875 = vst.msk [vmem:[#allocation4 + $0x2d0] sm:$0xf] %vm1536, %v1871
          %1878 = vrot.lane.b32.xlu0 %v1860, 112
          %v1879 = vpop.permute.xlu0 %1878
          %1880 = vrot.lane.b32.xlu0 %v1861, 112
          %v1881 = vpop.permute.xlu0 %1880
          %1884 = vst.msk [vmem:[#allocation4 + $0x2e0] sm:$0xf] %vm1536, %v1879
          %1885 = vst.msk [vmem:[#allocation4 + $0x2f0] sm:$0xf] %vm1536, %v1881
          %1886 = vrot.lane.b32.xlu0 %v1856, 96
          %v1887 = vpop.permute.xlu0 %1886
          %1888 = vrot.lane.b32.xlu0 %v1857, 96
          %v1889 = vpop.permute.xlu0 %1888
          %v1890 = vrot.slane %v1887, 4
          %v1891 = vrot.slane %v1889, 4
          %v1892 = vsel %vm1567, %v1887, %v1890
          %v1893 = vsel %vm1567, %v1889, %v1891
          %1896 = vst.msk [vmem:[#allocation4 + $0x300] sm:$0xf] %vm1536, %v1892
          %1897 = vst.msk [vmem:[#allocation4 + $0x310] sm:$0xf] %vm1536, %v1893
          %1898 = vst.msk [vmem:[#allocation4 + $0x284] sm:$0xf] %vm1536, %v1860
          %1899 = vst.msk [vmem:[#allocation4 + $0x294] sm:$0xf] %vm1536, %v1861
          %1900 = vst.msk [vmem:[#allocation4 + $0x2a4] sm:$0xf] %vm1536, %v1869
          %1901 = vst.msk [vmem:[#allocation4 + $0x2b4] sm:$0xf] %vm1536, %v1871
          %1902 = vst.msk [vmem:[#allocation4 + $0x2c4] sm:$0xf] %vm1536, %v1879
          %1903 = vst.msk [vmem:[#allocation4 + $0x2d4] sm:$0xf] %vm1536, %v1881
          %1904 = vst.msk [vmem:[#allocation4 + $0x2e4] sm:$0xf] %vm1536, %v1892
          %1905 = vst.msk [vmem:[#allocation4 + $0x2f4] sm:$0xf] %vm1536, %v1893
          %1906 = vrot.lane.b32.xlu0 %v1860, 96
          %v1907 = vpop.permute.xlu0 %1906
          %1908 = vrot.lane.b32.xlu0 %v1861, 96
          %v1909 = vpop.permute.xlu0 %1908
          %v1910 = vrot.slane %v1907, 4
          %v1911 = vrot.slane %v1909, 4
          %v1912 = vsel %vm1567, %v1907, %v1910
          %v1913 = vsel %vm1567, %v1909, %v1911
          %1916 = vst.msk [vmem:[#allocation4 + $0x304] sm:$0xf] %vm1536, %v1912
          %1917 = vst.msk [vmem:[#allocation4 + $0x314] sm:$0xf] %vm1536, %v1913
          %1918 = vst.msk [vmem:[#allocation4 + $0x1e8] sm:$0xf] %vm1536, %v1856
          %1919 = vst.msk [vmem:[#allocation4 + $0x1f8] sm:$0xf] %vm1536, %v1857
          %1920 = vst.msk [vmem:[#allocation4 + $0x208] sm:$0xf] %vm1536, %v1860
          %1921 = vst.msk [vmem:[#allocation4 + $0x218] sm:$0xf] %vm1536, %v1861
          %1922 = vst.msk [vmem:[#allocation4 + $0x228] sm:$0xf] %vm1536, %v1869
          %1923 = vst.msk [vmem:[#allocation4 + $0x238] sm:$0xf] %vm1536, %v1871
          %1924 = vst.msk [vmem:[#allocation4 + $0x248] sm:$0xf] %vm1536, %v1879
          %1925 = vst.msk [vmem:[#allocation4 + $0x258] sm:$0xf] %vm1536, %v1881
          %1926 = vst.msk [vmem:[#allocation4 + $0x268] sm:$0xf] %vm1536, %v1892
          %1927 = vst.msk [vmem:[#allocation4 + $0x278] sm:$0xf] %vm1536, %v1893
          %1928 = vst.msk [vmem:[#allocation4 + $0x1ec] sm:$0xf] %vm1536, %v1860
          %1929 = vst.msk [vmem:[#allocation4 + $0x1fc] sm:$0xf] %vm1536, %v1861
          %1930 = vst.msk [vmem:[#allocation4 + $0x20c] sm:$0xf] %vm1536, %v1869
          %1931 = vst.msk [vmem:[#allocation4 + $0x21c] sm:$0xf] %vm1536, %v1871
          %1932 = vst.msk [vmem:[#allocation4 + $0x22c] sm:$0xf] %vm1536, %v1879
          %1933 = vst.msk [vmem:[#allocation4 + $0x23c] sm:$0xf] %vm1536, %v1881
          %1934 = vst.msk [vmem:[#allocation4 + $0x24c] sm:$0xf] %vm1536, %v1892
          %1935 = vst.msk [vmem:[#allocation4 + $0x25c] sm:$0xf] %vm1536, %v1893
          %1936 = vst.msk [vmem:[#allocation4 + $0x26c] sm:$0xf] %vm1536, %v1912
          %1937 = vst.msk [vmem:[#allocation4 + $0x27c] sm:$0xf] %vm1536, %v1913
          %s1938 = sadd.s32 %s1526, 5
          %s1939 = smul.u32 %s1938, 4
          %s1940 = smul.addr %s1939, 4
          %s1941 = scalar_lea.vmem [#allocation2], %s1940
          %v1942 = vld [vmem:[%s1941] sm:$0xff]
          %v1943 = vld [vmem:[%s1941 + $0x8] sm:$0xff]
          %s1944 = smul.addr %s1939, 4
          %s1945 = scalar_lea.vmem [#allocation3], %s1944
          %v1946 = vld [vmem:[%s1945] sm:$0xff]
          %v1947 = vld [vmem:[%s1945 + $0x8] sm:$0xff]
          %1948 = vst.msk [vmem:[#allocation4 + $0x288] sm:$0xf] %vm1536, %v1942
          %1949 = vst.msk [vmem:[#allocation4 + $0x298] sm:$0xf] %vm1536, %v1943
          %1950 = vst.msk [vmem:[#allocation4 + $0x2a8] sm:$0xf] %vm1536, %v1946
          %1951 = vst.msk [vmem:[#allocation4 + $0x2b8] sm:$0xf] %vm1536, %v1947
          %1954 = vrot.lane.b32.xlu0 %v1942, 112
          %v1955 = vpop.permute.xlu0 %1954
          %1956 = vrot.lane.b32.xlu0 %v1943, 112
          %v1957 = vpop.permute.xlu0 %1956
          %1960 = vst.msk [vmem:[#allocation4 + $0x2c8] sm:$0xf] %vm1536, %v1955
          %1961 = vst.msk [vmem:[#allocation4 + $0x2d8] sm:$0xf] %vm1536, %v1957
          %1964 = vrot.lane.b32.xlu0 %v1946, 112
          %v1965 = vpop.permute.xlu0 %1964
          %1966 = vrot.lane.b32.xlu0 %v1947, 112
          %v1967 = vpop.permute.xlu0 %1966
          %1970 = vst.msk [vmem:[#allocation4 + $0x2e8] sm:$0xf] %vm1536, %v1965
          %1971 = vst.msk [vmem:[#allocation4 + $0x2f8] sm:$0xf] %vm1536, %v1967
          %1972 = vrot.lane.b32.xlu0 %v1942, 96
          %v1973 = vpop.permute.xlu0 %1972
          %1974 = vrot.lane.b32.xlu0 %v1943, 96
          %v1975 = vpop.permute.xlu0 %1974
          %v1976 = vrot.slane %v1973, 4
          %v1977 = vrot.slane %v1975, 4
          %v1978 = vsel %vm1567, %v1973, %v1976
          %v1979 = vsel %vm1567, %v1975, %v1977
          %1982 = vst.msk [vmem:[#allocation4 + $0x308] sm:$0xf] %vm1536, %v1978
          %1983 = vst.msk [vmem:[#allocation4 + $0x318] sm:$0xf] %vm1536, %v1979
          %1984 = vst.msk [vmem:[#allocation4 + $0x28c] sm:$0xf] %vm1536, %v1946
          %1985 = vst.msk [vmem:[#allocation4 + $0x29c] sm:$0xf] %vm1536, %v1947
          %1986 = vst.msk [vmem:[#allocation4 + $0x2ac] sm:$0xf] %vm1536, %v1955
          %1987 = vst.msk [vmem:[#allocation4 + $0x2bc] sm:$0xf] %vm1536, %v1957
          %1988 = vst.msk [vmem:[#allocation4 + $0x2cc] sm:$0xf] %vm1536, %v1965
          %1989 = vst.msk [vmem:[#allocation4 + $0x2dc] sm:$0xf] %vm1536, %v1967
          %1990 = vst.msk [vmem:[#allocation4 + $0x2ec] sm:$0xf] %vm1536, %v1978
          %1991 = vst.msk [vmem:[#allocation4 + $0x2fc] sm:$0xf] %vm1536, %v1979
          %1992 = vrot.lane.b32.xlu0 %v1946, 96
          %v1993 = vpop.permute.xlu0 %1992
          %1994 = vrot.lane.b32.xlu0 %v1947, 96
          %v1995 = vpop.permute.xlu0 %1994
          %v1996 = vrot.slane %v1993, 4
          %v1997 = vrot.slane %v1995, 4
          %v1998 = vsel %vm1567, %v1993, %v1996
          %v1999 = vsel %vm1567, %v1995, %v1997
          %2002 = vst.msk [vmem:[#allocation4 + $0x30c] sm:$0xf] %vm1536, %v1998
          %2003 = vst.msk [vmem:[#allocation4 + $0x31c] sm:$0xf] %vm1536, %v1999
          %v2004 = vld [vmem:[#allocation4] sm:$0xff]
          %v2005 = vld [vmem:[#allocation4 + $0x8] sm:$0xff]
          %v2006 = vld [vmem:[#allocation4 + $0x10] sm:$0xff]
          %v2007 = vld [vmem:[#allocation4 + $0x18] sm:$0xff]
          %v2008 = vld [vmem:[#allocation4 + $0x20] sm:$0xff]
          %v2009 = vld [vmem:[#allocation4 + $0x28] sm:$0xff]
          %v2010 = vld [vmem:[#allocation4 + $0x30] sm:$0xff]
          %v2011 = vld [vmem:[#allocation4 + $0x38] sm:$0xff]
          %v2012 = vld [vmem:[#allocation4 + $0x40] sm:$0xff]
          %v2013 = vld [vmem:[#allocation4 + $0x48] sm:$0xff]
          %v2014 = vld [vmem:[#allocation4 + $0x50] sm:$0xff]
          %v2015 = vld [vmem:[#allocation4 + $0x58] sm:$0xff]
          %v2016 = vld [vmem:[#allocation4 + $0x60] sm:$0xff]
          %v2017 = vld [vmem:[#allocation4 + $0x68] sm:$0xff]
          %v2018 = vld [vmem:[#allocation4 + $0x70] sm:$0xff]
          %v2019 = vld [vmem:[#allocation4 + $0x78] sm:$0xff]
          %v2020 = vld [vmem:[#allocation4 + $0x80] sm:$0xff]
          %v2021 = vld [vmem:[#allocation4 + $0x88] sm:$0xff]
          %v2022 = vld [vmem:[#allocation4 + $0x90] sm:$0xff]
          %v2023 = vld [vmem:[#allocation4 + $0x98] sm:$0xff]
          %v2024 = vld [vmem:[#allocation4 + $0xa0] sm:$0xff]
          %v2025 = vld [vmem:[#allocation4 + $0xa8] sm:$0xff]
          %v2026 = vld [vmem:[#allocation4 + $0xb0] sm:$0xff]
          %v2027 = vld [vmem:[#allocation4 + $0xb8] sm:$0xff]
          %v2028 = vld [vmem:[#allocation4 + $0xc0] sm:$0xff]
          %v2029 = vld [vmem:[#allocation4 + $0xc8] sm:$0xff]
          %v2030 = vld [vmem:[#allocation4 + $0xd0] sm:$0xff]
          %v2031 = vld [vmem:[#allocation4 + $0xd8] sm:$0xff]
          %v2032 = vld [vmem:[#allocation4 + $0xe0] sm:$0xff]
          %v2033 = vld [vmem:[#allocation4 + $0xe8] sm:$0xff]
          %v2034 = vld [vmem:[#allocation4 + $0xf0] sm:$0xff]
          %v2035 = vld [vmem:[#allocation4 + $0xf8] sm:$0xff]
          %v2036 = vld [vmem:[#allocation4 + $0x100] sm:$0xff]
          %v2037 = vld [vmem:[#allocation4 + $0x108] sm:$0xff]
          %v2038 = vld [vmem:[#allocation4 + $0x110] sm:$0xff]
          %v2039 = vld [vmem:[#allocation4 + $0x118] sm:$0xff]
          %v2040 = vld [vmem:[#allocation4 + $0x120] sm:$0xff]
          %v2041 = vld [vmem:[#allocation4 + $0x128] sm:$0xff]
          %v2042 = vld [vmem:[#allocation4 + $0x130] sm:$0xff]
          %v2043 = vld [vmem:[#allocation4 + $0x138] sm:$0xff]
          %v2044 = vld [vmem:[#allocation4 + $0x140] sm:$0xff]
          %v2045 = vld [vmem:[#allocation4 + $0x148] sm:$0xff]
          %v2046 = vld [vmem:[#allocation4 + $0x150] sm:$0xff]
          %v2047 = vld [vmem:[#allocation4 + $0x158] sm:$0xff]
          %v2048 = vld [vmem:[#allocation4 + $0x160] sm:$0xff]
          %v2049 = vld [vmem:[#allocation4 + $0x168] sm:$0xff]
          %v2050 = vld [vmem:[#allocation4 + $0x170] sm:$0xff]
          %v2051 = vld [vmem:[#allocation4 + $0x178] sm:$0xff]
          %v2052 = vld [vmem:[#allocation4 + $0x180] sm:$0xff]
          %v2053 = vld [vmem:[#allocation4 + $0x188] sm:$0xff]
          %v2054 = vld [vmem:[#allocation4 + $0x190] sm:$0xff]
          %v2055 = vld [vmem:[#allocation4 + $0x198] sm:$0xff]
          %v2056 = vld [vmem:[#allocation4 + $0x1a0] sm:$0xff]
          %v2057 = vld [vmem:[#allocation4 + $0x1a8] sm:$0xff]
          %v2058 = vld [vmem:[#allocation4 + $0x1b0] sm:$0xff]
          %v2059 = vld [vmem:[#allocation4 + $0x1b8] sm:$0xff]
          %v2060 = vld [vmem:[#allocation4 + $0x1c0] sm:$0xff]
          %v2061 = vld [vmem:[#allocation4 + $0x1c8] sm:$0xff]
          %v2062 = vld [vmem:[#allocation4 + $0x1d0] sm:$0xff]
          %v2063 = vld [vmem:[#allocation4 + $0x1d8] sm:$0xff]
          %v2064 = vld [vmem:[#allocation4 + $0x1e0] sm:$0xff]
          %v2065 = vld [vmem:[#allocation4 + $0x1e8] sm:$0xff]
          %v2066 = vld [vmem:[#allocation4 + $0x1f0] sm:$0xff]
          %v2067 = vld [vmem:[#allocation4 + $0x1f8] sm:$0xff]
          %v2068 = vld [vmem:[#allocation4 + $0x200] sm:$0xff]
          %v2069 = vld [vmem:[#allocation4 + $0x208] sm:$0xff]
          %v2070 = vld [vmem:[#allocation4 + $0x210] sm:$0xff]
          %v2071 = vld [vmem:[#allocation4 + $0x218] sm:$0xff]
          %v2072 = vld [vmem:[#allocation4 + $0x220] sm:$0xff]
          %v2073 = vld [vmem:[#allocation4 + $0x228] sm:$0xff]
          %v2074 = vld [vmem:[#allocation4 + $0x230] sm:$0xff]
          %v2075 = vld [vmem:[#allocation4 + $0x238] sm:$0xff]
          %v2076 = vld [vmem:[#allocation4 + $0x240] sm:$0xff]
          %v2077 = vld [vmem:[#allocation4 + $0x248] sm:$0xff]
          %v2078 = vld [vmem:[#allocation4 + $0x250] sm:$0xff]
          %v2079 = vld [vmem:[#allocation4 + $0x258] sm:$0xff]
          %v2080 = vld [vmem:[#allocation4 + $0x260] sm:$0xff]
          %v2081 = vld [vmem:[#allocation4 + $0x268] sm:$0xff]
          %v2082 = vld [vmem:[#allocation4 + $0x270] sm:$0xff]
          %v2083 = vld [vmem:[#allocation4 + $0x278] sm:$0xff]
          %v2084 = vld [vmem:[#allocation4 + $0x280] sm:$0xff]
          %v2085 = vld [vmem:[#allocation4 + $0x288] sm:$0xff]
          %v2086 = vld [vmem:[#allocation4 + $0x290] sm:$0xff]
          %v2087 = vld [vmem:[#allocation4 + $0x298] sm:$0xff]
          %v2088 = vld [vmem:[#allocation4 + $0x2a0] sm:$0xff]
          %v2089 = vld [vmem:[#allocation4 + $0x2a8] sm:$0xff]
          %v2090 = vld [vmem:[#allocation4 + $0x2b0] sm:$0xff]
          %v2091 = vld [vmem:[#allocation4 + $0x2b8] sm:$0xff]
          %v2092 = vld [vmem:[#allocation4 + $0x2c0] sm:$0xff]
          %v2093 = vld [vmem:[#allocation4 + $0x2c8] sm:$0xff]
          %v2094 = vld [vmem:[#allocation4 + $0x2d0] sm:$0xff]
          %v2095 = vld [vmem:[#allocation4 + $0x2d8] sm:$0xff]
          %v2096 = vld [vmem:[#allocation4 + $0x2e0] sm:$0xff]
          %v2097 = vld [vmem:[#allocation4 + $0x2e8] sm:$0xff]
          %v2098 = vld [vmem:[#allocation4 + $0x2f0] sm:$0xff]
          %v2099 = vld [vmem:[#allocation4 + $0x2f8] sm:$0xff]
          %v2100 = vld [vmem:[#allocation4 + $0x300] sm:$0xff]
          %v2101 = vld [vmem:[#allocation4 + $0x308] sm:$0xff]
          %v2102 = vld [vmem:[#allocation4 + $0x310] sm:$0xff]
          %v2103 = vld [vmem:[#allocation4 + $0x318] sm:$0xff]
          %v2112 = vunpack.c.l.b16 %v1499
          %v2113 = vunpack.c.h.b16 %v1499
          %v2114 = vunpack.c.l.b16 %v1500
          %v2115 = vunpack.c.h.b16 %v1500
          %v2116 = vunpack.c.l.b16 %v1501
          %v2117 = vunpack.c.h.b16 %v1501
          %v2118 = vunpack.c.l.b16 %v1502
          %v2119 = vunpack.c.h.b16 %v1502
          %v2120 = vunpack.c.l.b16 %v1503
          %v2121 = vunpack.c.h.b16 %v1503
          %v2122 = vunpack.c.l.b16 %v1504
          %v2123 = vunpack.c.h.b16 %v1504
          %v2124 = vunpack.c.l.b16 %v1505
          %v2125 = vunpack.c.h.b16 %v1505
          %v2126 = vunpack.c.l.b16 %v1506
          %v2127 = vunpack.c.h.b16 %v1506
          %v2128 = vpack.c.b16 %v2116, %v2112
          %v2129 = vpack.c.b16 %v2117, %v2113
          %v2130 = vpack.c.b16 %v2118, %v2114
          %v2131 = vpack.c.b16 %v2119, %v2115
          %v2132 = vpack.c.b16 %v2124, %v2120
          %v2133 = vpack.c.b16 %v2125, %v2121
          %v2134 = vpack.c.b16 %v2126, %v2122
          %v2135 = vpack.c.b16 %v2127, %v2123
          %v2242 = vunpack.c.l.b16 %v2004
          %v2243 = vunpack.c.h.b16 %v2004
          %v2244 = vunpack.c.l.b16 %v2005
          %v2245 = vunpack.c.h.b16 %v2005
          %v2246 = vunpack.c.l.b16 %v2006
          %v2247 = vunpack.c.h.b16 %v2006
          %v2248 = vunpack.c.l.b16 %v2007
          %v2249 = vunpack.c.h.b16 %v2007
          %v2250 = vunpack.c.l.b16 %v2008
          %v2251 = vunpack.c.h.b16 %v2008
          %v2252 = vunpack.c.l.b16 %v2009
          %v2253 = vunpack.c.h.b16 %v2009
          %v2254 = vunpack.c.l.b16 %v2010
          %v2255 = vunpack.c.h.b16 %v2010
          %v2256 = vunpack.c.l.b16 %v2011
          %v2257 = vunpack.c.h.b16 %v2011
          %v2258 = vunpack.c.l.b16 %v2012
          %v2259 = vunpack.c.h.b16 %v2012
          %v2260 = vunpack.c.l.b16 %v2013
          %v2261 = vunpack.c.h.b16 %v2013
          %v2262 = vunpack.c.l.b16 %v2014
          %v2263 = vunpack.c.h.b16 %v2014
          %v2264 = vunpack.c.l.b16 %v2015
          %v2265 = vunpack.c.h.b16 %v2015
          %v2266 = vunpack.c.l.b16 %v2016
          %v2267 = vunpack.c.h.b16 %v2016
          %v2268 = vunpack.c.l.b16 %v2017
          %v2269 = vunpack.c.h.b16 %v2017
          %v2270 = vunpack.c.l.b16 %v2018
          %v2271 = vunpack.c.h.b16 %v2018
          %v2272 = vunpack.c.l.b16 %v2019
          %v2273 = vunpack.c.h.b16 %v2019
          %v2274 = vunpack.c.l.b16 %v2020
          %v2275 = vunpack.c.h.b16 %v2020
          %v2276 = vunpack.c.l.b16 %v2021
          %v2277 = vunpack.c.h.b16 %v2021
          %v2278 = vunpack.c.l.b16 %v2022
          %v2279 = vunpack.c.h.b16 %v2022
          %v2280 = vunpack.c.l.b16 %v2023
          %v2281 = vunpack.c.h.b16 %v2023
          %v2282 = vunpack.c.l.b16 %v2024
          %v2283 = vunpack.c.h.b16 %v2024
          %v2284 = vunpack.c.l.b16 %v2025
          %v2285 = vunpack.c.h.b16 %v2025
          %v2286 = vunpack.c.l.b16 %v2026
          %v2287 = vunpack.c.h.b16 %v2026
          %v2288 = vunpack.c.l.b16 %v2027
          %v2289 = vunpack.c.h.b16 %v2027
          %v2290 = vunpack.c.l.b16 %v2028
          %v2291 = vunpack.c.h.b16 %v2028
          %v2292 = vunpack.c.l.b16 %v2029
          %v2293 = vunpack.c.h.b16 %v2029
          %v2294 = vunpack.c.l.b16 %v2030
          %v2295 = vunpack.c.h.b16 %v2030
          %v2296 = vunpack.c.l.b16 %v2031
          %v2297 = vunpack.c.h.b16 %v2031
          %v2298 = vunpack.c.l.b16 %v2032
          %v2299 = vunpack.c.h.b16 %v2032
          %v2300 = vunpack.c.l.b16 %v2033
          %v2301 = vunpack.c.h.b16 %v2033
          %v2302 = vunpack.c.l.b16 %v2034
          %v2303 = vunpack.c.h.b16 %v2034
          %v2304 = vunpack.c.l.b16 %v2035
          %v2305 = vunpack.c.h.b16 %v2035
          %v2306 = vunpack.c.l.b16 %v2036
          %v2307 = vunpack.c.h.b16 %v2036
          %v2308 = vunpack.c.l.b16 %v2037
          %v2309 = vunpack.c.h.b16 %v2037
          %v2310 = vunpack.c.l.b16 %v2038
          %v2311 = vunpack.c.h.b16 %v2038
          %v2312 = vunpack.c.l.b16 %v2039
          %v2313 = vunpack.c.h.b16 %v2039
          %v2314 = vunpack.c.l.b16 %v2040
          %v2315 = vunpack.c.h.b16 %v2040
          %v2316 = vunpack.c.l.b16 %v2041
          %v2317 = vunpack.c.h.b16 %v2041
          %v2318 = vunpack.c.l.b16 %v2042
          %v2319 = vunpack.c.h.b16 %v2042
          %v2320 = vunpack.c.l.b16 %v2043
          %v2321 = vunpack.c.h.b16 %v2043
          %v2322 = vunpack.c.l.b16 %v2044
          %v2323 = vunpack.c.h.b16 %v2044
          %v2324 = vunpack.c.l.b16 %v2045
          %v2325 = vunpack.c.h.b16 %v2045
          %v2326 = vunpack.c.l.b16 %v2046
          %v2327 = vunpack.c.h.b16 %v2046
          %v2328 = vunpack.c.l.b16 %v2047
          %v2329 = vunpack.c.h.b16 %v2047
          %v2330 = vunpack.c.l.b16 %v2048
          %v2331 = vunpack.c.h.b16 %v2048
          %v2332 = vunpack.c.l.b16 %v2049
          %v2333 = vunpack.c.h.b16 %v2049
          %v2334 = vunpack.c.l.b16 %v2050
          %v2335 = vunpack.c.h.b16 %v2050
          %v2336 = vunpack.c.l.b16 %v2051
          %v2337 = vunpack.c.h.b16 %v2051
          %v2338 = vunpack.c.l.b16 %v2052
          %v2339 = vunpack.c.h.b16 %v2052
          %v2340 = vunpack.c.l.b16 %v2053
          %v2341 = vunpack.c.h.b16 %v2053
          %v2342 = vunpack.c.l.b16 %v2054
          %v2343 = vunpack.c.h.b16 %v2054
          %v2344 = vunpack.c.l.b16 %v2055
          %v2345 = vunpack.c.h.b16 %v2055
          %v2346 = vunpack.c.l.b16 %v2056
          %v2347 = vunpack.c.h.b16 %v2056
          %v2348 = vunpack.c.l.b16 %v2057
          %v2349 = vunpack.c.h.b16 %v2057
          %v2350 = vunpack.c.l.b16 %v2058
          %v2351 = vunpack.c.h.b16 %v2058
          %v2352 = vunpack.c.l.b16 %v2059
          %v2353 = vunpack.c.h.b16 %v2059
          %v2354 = vunpack.c.l.b16 %v2060
          %v2355 = vunpack.c.h.b16 %v2060
          %v2356 = vunpack.c.l.b16 %v2061
          %v2357 = vunpack.c.h.b16 %v2061
          %v2358 = vunpack.c.l.b16 %v2062
          %v2359 = vunpack.c.h.b16 %v2062
          %v2360 = vunpack.c.l.b16 %v2063
          %v2361 = vunpack.c.h.b16 %v2063
          %v2362 = vunpack.c.l.b16 %v2064
          %v2363 = vunpack.c.h.b16 %v2064
          %v2364 = vunpack.c.l.b16 %v2065
          %v2365 = vunpack.c.h.b16 %v2065
          %v2366 = vunpack.c.l.b16 %v2066
          %v2367 = vunpack.c.h.b16 %v2066
          %v2368 = vunpack.c.l.b16 %v2067
          %v2369 = vunpack.c.h.b16 %v2067
          %v2370 = vunpack.c.l.b16 %v2068
          %v2371 = vunpack.c.h.b16 %v2068
          %v2372 = vunpack.c.l.b16 %v2069
          %v2373 = vunpack.c.h.b16 %v2069
          %v2374 = vunpack.c.l.b16 %v2070
          %v2375 = vunpack.c.h.b16 %v2070
          %v2376 = vunpack.c.l.b16 %v2071
          %v2377 = vunpack.c.h.b16 %v2071
          %v2378 = vunpack.c.l.b16 %v2072
          %v2379 = vunpack.c.h.b16 %v2072
          %v2380 = vunpack.c.l.b16 %v2073
          %v2381 = vunpack.c.h.b16 %v2073
          %v2382 = vunpack.c.l.b16 %v2074
          %v2383 = vunpack.c.h.b16 %v2074
          %v2384 = vunpack.c.l.b16 %v2075
          %v2385 = vunpack.c.h.b16 %v2075
          %v2386 = vunpack.c.l.b16 %v2076
          %v2387 = vunpack.c.h.b16 %v2076
          %v2388 = vunpack.c.l.b16 %v2077
          %v2389 = vunpack.c.h.b16 %v2077
          %v2390 = vunpack.c.l.b16 %v2078
          %v2391 = vunpack.c.h.b16 %v2078
          %v2392 = vunpack.c.l.b16 %v2079
          %v2393 = vunpack.c.h.b16 %v2079
          %v2394 = vunpack.c.l.b16 %v2080
          %v2395 = vunpack.c.h.b16 %v2080
          %v2396 = vunpack.c.l.b16 %v2081
          %v2397 = vunpack.c.h.b16 %v2081
          %v2398 = vunpack.c.l.b16 %v2082
          %v2399 = vunpack.c.h.b16 %v2082
          %v2400 = vunpack.c.l.b16 %v2083
          %v2401 = vunpack.c.h.b16 %v2083
          %v2402 = vunpack.c.l.b16 %v2084
          %v2403 = vunpack.c.h.b16 %v2084
          %v2404 = vunpack.c.l.b16 %v2085
          %v2405 = vunpack.c.h.b16 %v2085
          %v2406 = vunpack.c.l.b16 %v2086
          %v2407 = vunpack.c.h.b16 %v2086
          %v2408 = vunpack.c.l.b16 %v2087
          %v2409 = vunpack.c.h.b16 %v2087
          %v2410 = vunpack.c.l.b16 %v2088
          %v2411 = vunpack.c.h.b16 %v2088
          %v2412 = vunpack.c.l.b16 %v2089
          %v2413 = vunpack.c.h.b16 %v2089
          %v2414 = vunpack.c.l.b16 %v2090
          %v2415 = vunpack.c.h.b16 %v2090
          %v2416 = vunpack.c.l.b16 %v2091
          %v2417 = vunpack.c.h.b16 %v2091
          %v2418 = vunpack.c.l.b16 %v2092
          %v2419 = vunpack.c.h.b16 %v2092
          %v2420 = vunpack.c.l.b16 %v2093
          %v2421 = vunpack.c.h.b16 %v2093
          %v2422 = vunpack.c.l.b16 %v2094
          %v2423 = vunpack.c.h.b16 %v2094
          %v2424 = vunpack.c.l.b16 %v2095
          %v2425 = vunpack.c.h.b16 %v2095
          %v2426 = vunpack.c.l.b16 %v2096
          %v2427 = vunpack.c.h.b16 %v2096
          %v2428 = vunpack.c.l.b16 %v2097
          %v2429 = vunpack.c.h.b16 %v2097
          %v2430 = vunpack.c.l.b16 %v2098
          %v2431 = vunpack.c.h.b16 %v2098
          %v2432 = vunpack.c.l.b16 %v2099
          %v2433 = vunpack.c.h.b16 %v2099
          %v2434 = vunpack.c.l.b16 %v2100
          %v2435 = vunpack.c.h.b16 %v2100
          %v2436 = vunpack.c.l.b16 %v2101
          %v2437 = vunpack.c.h.b16 %v2101
          %v2438 = vunpack.c.l.b16 %v2102
          %v2439 = vunpack.c.h.b16 %v2102
          %v2440 = vunpack.c.l.b16 %v2103
          %v2441 = vunpack.c.h.b16 %v2103
          %v2442 = vpack.c.b16 %v2246, %v2242
          %v2443 = vpack.c.b16 %v2247, %v2243
          %v2444 = vpack.c.b16 %v2248, %v2244
          %v2445 = vpack.c.b16 %v2249, %v2245
          %v2446 = vpack.c.b16 %v2254, %v2250
          %v2447 = vpack.c.b16 %v2255, %v2251
          %v2448 = vpack.c.b16 %v2256, %v2252
          %v2449 = vpack.c.b16 %v2257, %v2253
          %v2450 = vpack.c.b16 %v2262, %v2258
          %v2451 = vpack.c.b16 %v2263, %v2259
          %v2452 = vpack.c.b16 %v2264, %v2260
          %v2453 = vpack.c.b16 %v2265, %v2261
          %v2454 = vpack.c.b16 %v2270, %v2266
          %v2455 = vpack.c.b16 %v2271, %v2267
          %v2456 = vpack.c.b16 %v2272, %v2268
          %v2457 = vpack.c.b16 %v2273, %v2269
          %v2458 = vpack.c.b16 %v2278, %v2274
          %v2459 = vpack.c.b16 %v2279, %v2275
          %v2460 = vpack.c.b16 %v2280, %v2276
          %v2461 = vpack.c.b16 %v2281, %v2277
          %v2462 = vpack.c.b16 %v2286, %v2282
          %v2463 = vpack.c.b16 %v2287, %v2283
          %v2464 = vpack.c.b16 %v2288, %v2284
          %v2465 = vpack.c.b16 %v2289, %v2285
          %v2466 = vpack.c.b16 %v2294, %v2290
          %v2467 = vpack.c.b16 %v2295, %v2291
          %v2468 = vpack.c.b16 %v2296, %v2292
          %v2469 = vpack.c.b16 %v2297, %v2293
          %v2470 = vpack.c.b16 %v2302, %v2298
          %v2471 = vpack.c.b16 %v2303, %v2299
          %v2472 = vpack.c.b16 %v2304, %v2300
          %v2473 = vpack.c.b16 %v2305, %v2301
          %v2474 = vpack.c.b16 %v2310, %v2306
          %v2475 = vpack.c.b16 %v2311, %v2307
          %v2476 = vpack.c.b16 %v2312, %v2308
          %v2477 = vpack.c.b16 %v2313, %v2309
          %v2478 = vpack.c.b16 %v2318, %v2314
          %v2479 = vpack.c.b16 %v2319, %v2315
          %v2480 = vpack.c.b16 %v2320, %v2316
          %v2481 = vpack.c.b16 %v2321, %v2317
          %v2482 = vpack.c.b16 %v2326, %v2322
          %v2483 = vpack.c.b16 %v2327, %v2323
          %v2484 = vpack.c.b16 %v2328, %v2324
          %v2485 = vpack.c.b16 %v2329, %v2325
          %v2486 = vpack.c.b16 %v2334, %v2330
          %v2487 = vpack.c.b16 %v2335, %v2331
          %v2488 = vpack.c.b16 %v2336, %v2332
          %v2489 = vpack.c.b16 %v2337, %v2333
          %v2490 = vpack.c.b16 %v2342, %v2338
          %v2491 = vpack.c.b16 %v2343, %v2339
          %v2492 = vpack.c.b16 %v2344, %v2340
          %v2493 = vpack.c.b16 %v2345, %v2341
          %v2494 = vpack.c.b16 %v2350, %v2346
          %v2495 = vpack.c.b16 %v2351, %v2347
          %v2496 = vpack.c.b16 %v2352, %v2348
          %v2497 = vpack.c.b16 %v2353, %v2349
          %v2498 = vpack.c.b16 %v2358, %v2354
          %v2499 = vpack.c.b16 %v2359, %v2355
          %v2500 = vpack.c.b16 %v2360, %v2356
          %v2501 = vpack.c.b16 %v2361, %v2357
          %v2502 = vpack.c.b16 %v2366, %v2362
          %v2503 = vpack.c.b16 %v2367, %v2363
          %v2504 = vpack.c.b16 %v2368, %v2364
          %v2505 = vpack.c.b16 %v2369, %v2365
          %v2506 = vpack.c.b16 %v2374, %v2370
          %v2507 = vpack.c.b16 %v2375, %v2371
          %v2508 = vpack.c.b16 %v2376, %v2372
          %v2509 = vpack.c.b16 %v2377, %v2373
          %v2510 = vpack.c.b16 %v2382, %v2378
          %v2511 = vpack.c.b16 %v2383, %v2379
          %v2512 = vpack.c.b16 %v2384, %v2380
          %v2513 = vpack.c.b16 %v2385, %v2381
          %v2514 = vpack.c.b16 %v2390, %v2386
          %v2515 = vpack.c.b16 %v2391, %v2387
          %v2516 = vpack.c.b16 %v2392, %v2388
          %v2517 = vpack.c.b16 %v2393, %v2389
          %v2518 = vpack.c.b16 %v2398, %v2394
          %v2519 = vpack.c.b16 %v2399, %v2395
          %v2520 = vpack.c.b16 %v2400, %v2396
          %v2521 = vpack.c.b16 %v2401, %v2397
          %v2522 = vpack.c.b16 %v2406, %v2402
          %v2523 = vpack.c.b16 %v2407, %v2403
          %v2524 = vpack.c.b16 %v2408, %v2404
          %v2525 = vpack.c.b16 %v2409, %v2405
          %v2526 = vpack.c.b16 %v2414, %v2410
          %v2527 = vpack.c.b16 %v2415, %v2411
          %v2528 = vpack.c.b16 %v2416, %v2412
          %v2529 = vpack.c.b16 %v2417, %v2413
          %v2530 = vpack.c.b16 %v2422, %v2418
          %v2531 = vpack.c.b16 %v2423, %v2419
          %v2532 = vpack.c.b16 %v2424, %v2420
          %v2533 = vpack.c.b16 %v2425, %v2421
          %v2534 = vpack.c.b16 %v2430, %v2426
          %v2535 = vpack.c.b16 %v2431, %v2427
          %v2536 = vpack.c.b16 %v2432, %v2428
          %v2537 = vpack.c.b16 %v2433, %v2429
          %v2538 = vpack.c.b16 %v2438, %v2434
          %v2539 = vpack.c.b16 %v2439, %v2435
          %v2540 = vpack.c.b16 %v2440, %v2436
          %v2541 = vpack.c.b16 %v2441, %v2437
          %vm2642 = vcmask 130048
          %v2644 = vsel %vm2642, %v2131, 0
          %v2647 = vsel %vm2642, %v2135, 0
          %2649 = vmatprep.subr.bf16.mxu0 %v2471
          %2650 = vmatpush1.bf16.msra.mxu0 %v2470
          %2651 = vmatprep.subr.bf16.mxu0 %v2467
          %2652 = vmatpush1.bf16.msra.mxu0 %v2466
          %2653 = vmatprep.subr.bf16.mxu0 %v2463
          %2654 = vmatpush1.bf16.msra.mxu0 %v2462
          %2655 = vmatprep.subr.bf16.mxu0 %v2459
          %2656 = vmatpush1.bf16.msra.mxu0 %v2458
          %2657 = vmatprep.subr.bf16.mxu0 %v2455
          %2658 = vmatpush1.bf16.msra.mxu0 %v2454
          %2659 = vmatprep.subr.bf16.mxu0 %v2451
          %2660 = vmatpush1.bf16.msra.mxu0 %v2450
          %2661 = vmatprep.subr.bf16.mxu0 %v2447
          %2662 = vmatpush1.bf16.msra.mxu0 %v2446
          %2663 = vmatprep.subr.bf16.mxu0 %v2443
          %2664 = vmatpush1.bf16.msra.mxu0 %v2442
          %2665 = vmatprep.subr.bf16.mxu0 %v2503
          %2666 = vmatpush2.bf16.msra.mxu0 %v2502
          %2667 = vmatprep.subr.bf16.mxu0 %v2499
          %2668 = vmatpush2.bf16.msra.mxu0 %v2498
          %2669 = vmatprep.subr.bf16.mxu0 %v2495
          %2670 = vmatpush2.bf16.msra.mxu0 %v2494
          %2671 = vmatprep.subr.bf16.mxu0 %v2491
          %2672 = vmatpush2.bf16.msra.mxu0 %v2490
          %2673 = vmatprep.subr.bf16.mxu0 %v2487
          %2674 = vmatpush2.bf16.msra.mxu0 %v2486
          %2675 = vmatprep.subr.bf16.mxu0 %v2483
          %2676 = vmatpush2.bf16.msra.mxu0 %v2482
          %2677 = vmatprep.subr.bf16.mxu0 %v2479
          %2678 = vmatpush2.bf16.msra.mxu0 %v2478
          %2679 = vmatprep.subr.bf16.mxu0 %v2475
          %2680 = vmatpush2.bf16.msra.mxu0 %v2474
          %2681 = vmatprep.mubr.bf16.mxu0 %v2129
          %2682 = vmatmul.mubr.bf16.gmra.mxu0 %v2128
          %v2683 = vpop.f32.mrf.mxu0
          %v2684 = vadd.f32 0.0, %v2683
          %v2685 = vpop.f32.mrf.mxu0
          %v2686 = vadd.f32 0.0, %v2685
          %v2687 = vpop.f32.mrf.mxu0
          %v2688 = vadd.f32 0.0, %v2687
          %v2689 = vpop.f32.mrf.mxu0
          %v2690 = vadd.f32 0.0, %v2689
          %2691 = vmatprep.mubr.bf16.mxu0 %v2133
          %2692 = vmatmul.mubr.bf16.gmra.mxu0 %v2132
          %v2693 = vpop.f32.mrf.mxu0
          %v2694 = vadd.f32 0.0, %v2693
          %v2695 = vpop.f32.mrf.mxu0
          %v2696 = vadd.f32 0.0, %v2695
          %v2697 = vpop.f32.mrf.mxu0
          %v2698 = vadd.f32 0.0, %v2697
          %v2699 = vpop.f32.mrf.mxu0
          %v2700 = vadd.f32 0.0, %v2699
          %2701 = vdwg.mxu0
          %2702 = vmatprep.subr.bf16.mxu0 %v2535
          %2703 = vmatpush1.bf16.msra.mxu0 %v2534
          %2704 = vmatprep.subr.bf16.mxu0 %v2531
          %2705 = vmatpush1.bf16.msra.mxu0 %v2530
          %2706 = vmatprep.subr.bf16.mxu0 %v2527
          %2707 = vmatpush1.bf16.msra.mxu0 %v2526
          %2708 = vmatprep.subr.bf16.mxu0 %v2523
          %2709 = vmatpush1.bf16.msra.mxu0 %v2522
          %2710 = vmatprep.subr.bf16.mxu0 %v2519
          %2711 = vmatpush1.bf16.msra.mxu0 %v2518
          %2712 = vmatprep.subr.bf16.mxu0 %v2515
          %2713 = vmatpush1.bf16.msra.mxu0 %v2514
          %2714 = vmatprep.subr.bf16.mxu0 %v2511
          %2715 = vmatpush1.bf16.msra.mxu0 %v2510
          %2716 = vmatprep.subr.bf16.mxu0 %v2507
          %2717 = vmatpush1.bf16.msra.mxu0 %v2506
          %2718 = vmatprep.subr.bf16.mxu0 0
          %2719 = vmatpush2.bf16.msra.mxu0 0
          %2720 = vmatprep.subr.bf16.mxu0 0
          %2721 = vmatpush2.bf16.msra.mxu0 0
          %2722 = vmatprep.subr.bf16.mxu0 0
          %2723 = vmatpush2.bf16.msra.mxu0 0
          %2724 = vmatprep.subr.bf16.mxu0 0
          %2725 = vmatpush2.bf16.msra.mxu0 0
          %2726 = vmatprep.subr.bf16.mxu0 0
          %2727 = vmatpush2.bf16.msra.mxu0 0
          %2728 = vmatprep.subr.bf16.mxu0 0
          %2729 = vmatpush2.bf16.msra.mxu0 0
          %2730 = vmatprep.subr.bf16.mxu0 0
          %2731 = vmatpush2.bf16.msra.mxu0 0
          %2732 = vmatprep.subr.bf16.mxu0 %v2539
          %2733 = vmatpush2.bf16.msra.mxu0 %v2538
          %2734 = vmatprep.mubr.bf16.mxu0 %v2644
          %2735 = vmatmul.mubr.bf16.gmra.mxu0 %v2130
          %v2736 = vpop.f32.mrf.mxu0
          %v2737 = vadd.f32 %v2684, %v2736
          %v2738 = vpop.f32.mrf.mxu0
          %v2739 = vadd.f32 %v2686, %v2738
          %v2740 = vpop.f32.mrf.mxu0
          %v2741 = vadd.f32 %v2688, %v2740
          %v2742 = vpop.f32.mrf.mxu0
          %v2743 = vadd.f32 %v2690, %v2742
          %2744 = vmatprep.mubr.bf16.mxu0 %v2647
          %2745 = vmatmul.mubr.bf16.gmra.mxu0 %v2134
          %v2746 = vpop.f32.mrf.mxu0
          %v2747 = vadd.f32 %v2694, %v2746
          %v2748 = vpop.f32.mrf.mxu0
          %v2749 = vadd.f32 %v2696, %v2748
          %v2750 = vpop.f32.mrf.mxu0
          %v2751 = vadd.f32 %v2698, %v2750
          %v2752 = vpop.f32.mrf.mxu0
          %v2753 = vadd.f32 %v2700, %v2752
          %2754 = vdwg.mxu0
          %2755 = vmatprep.subr.bf16.mxu0 %v2473
          %2756 = vmatpush1.bf16.msra.mxu0 %v2472
          %2757 = vmatprep.subr.bf16.mxu0 %v2469
          %2758 = vmatpush1.bf16.msra.mxu0 %v2468
          %2759 = vmatprep.subr.bf16.mxu0 %v2465
          %2760 = vmatpush1.bf16.msra.mxu0 %v2464
          %2761 = vmatprep.subr.bf16.mxu0 %v2461
          %2762 = vmatpush1.bf16.msra.mxu0 %v2460
          %2763 = vmatprep.subr.bf16.mxu0 %v2457
          %2764 = vmatpush1.bf16.msra.mxu0 %v2456
          %2765 = vmatprep.subr.bf16.mxu0 %v2453
          %2766 = vmatpush1.bf16.msra.mxu0 %v2452
          %2767 = vmatprep.subr.bf16.mxu0 %v2449
          %2768 = vmatpush1.bf16.msra.mxu0 %v2448
          %2769 = vmatprep.subr.bf16.mxu0 %v2445
          %2770 = vmatpush1.bf16.msra.mxu0 %v2444
          %2771 = vmatprep.subr.bf16.mxu0 %v2505
          %2772 = vmatpush2.bf16.msra.mxu0 %v2504
          %2773 = vmatprep.subr.bf16.mxu0 %v2501
          %2774 = vmatpush2.bf16.msra.mxu0 %v2500
          %2775 = vmatprep.subr.bf16.mxu0 %v2497
          %2776 = vmatpush2.bf16.msra.mxu0 %v2496
          %2777 = vmatprep.subr.bf16.mxu0 %v2493
          %2778 = vmatpush2.bf16.msra.mxu0 %v2492
          %2779 = vmatprep.subr.bf16.mxu0 %v2489
          %2780 = vmatpush2.bf16.msra.mxu0 %v2488
          %2781 = vmatprep.subr.bf16.mxu0 %v2485
          %2782 = vmatpush2.bf16.msra.mxu0 %v2484
          %2783 = vmatprep.subr.bf16.mxu0 %v2481
          %2784 = vmatpush2.bf16.msra.mxu0 %v2480
          %2785 = vmatprep.subr.bf16.mxu0 %v2477
          %2786 = vmatpush2.bf16.msra.mxu0 %v2476
          %2787 = vmatprep.mubr.bf16.mxu0 %v2129
          %2788 = vmatmul.mubr.bf16.gmra.mxu0 %v2128
          %v2789 = vpop.f32.mrf.mxu0
          %v2790 = vadd.f32 0.0, %v2789
          %v2791 = vpop.f32.mrf.mxu0
          %v2792 = vadd.f32 0.0, %v2791
          %v2793 = vpop.f32.mrf.mxu0
          %v2794 = vadd.f32 0.0, %v2793
          %v2795 = vpop.f32.mrf.mxu0
          %v2796 = vadd.f32 0.0, %v2795
          %2797 = vmatprep.mubr.bf16.mxu0 %v2133
          %2798 = vmatmul.mubr.bf16.gmra.mxu0 %v2132
          %v2799 = vpop.f32.mrf.mxu0
          %v2800 = vadd.f32 0.0, %v2799
          %v2801 = vpop.f32.mrf.mxu0
          %v2802 = vadd.f32 0.0, %v2801
          %v2803 = vpop.f32.mrf.mxu0
          %v2804 = vadd.f32 0.0, %v2803
          %v2805 = vpop.f32.mrf.mxu0
          %v2806 = vadd.f32 0.0, %v2805
          %2807 = vdwg.mxu0
          %2808 = vmatprep.subr.bf16.mxu0 %v2537
          %2809 = vmatpush1.bf16.msra.mxu0 %v2536
          %2810 = vmatprep.subr.bf16.mxu0 %v2533
          %2811 = vmatpush1.bf16.msra.mxu0 %v2532
          %2812 = vmatprep.subr.bf16.mxu0 %v2529
          %2813 = vmatpush1.bf16.msra.mxu0 %v2528
          %2814 = vmatprep.subr.bf16.mxu0 %v2525
          %2815 = vmatpush1.bf16.msra.mxu0 %v2524
          %2816 = vmatprep.subr.bf16.mxu0 %v2521
          %2817 = vmatpush1.bf16.msra.mxu0 %v2520
          %2818 = vmatprep.subr.bf16.mxu0 %v2517
          %2819 = vmatpush1.bf16.msra.mxu0 %v2516
          %2820 = vmatprep.subr.bf16.mxu0 %v2513
          %2821 = vmatpush1.bf16.msra.mxu0 %v2512
          %2822 = vmatprep.subr.bf16.mxu0 %v2509
          %2823 = vmatpush1.bf16.msra.mxu0 %v2508
          %2824 = vmatprep.subr.bf16.mxu0 0
          %2825 = vmatpush2.bf16.msra.mxu0 0
          %2826 = vmatprep.subr.bf16.mxu0 0
          %2827 = vmatpush2.bf16.msra.mxu0 0
          %2828 = vmatprep.subr.bf16.mxu0 0
          %2829 = vmatpush2.bf16.msra.mxu0 0
          %2830 = vmatprep.subr.bf16.mxu0 0
          %2831 = vmatpush2.bf16.msra.mxu0 0
          %2832 = vmatprep.subr.bf16.mxu0 0
          %2833 = vmatpush2.bf16.msra.mxu0 0
          %2834 = vmatprep.subr.bf16.mxu0 0
          %2835 = vmatpush2.bf16.msra.mxu0 0
          %2836 = vmatprep.subr.bf16.mxu0 0
          %2837 = vmatpush2.bf16.msra.mxu0 0
          %2838 = vmatprep.subr.bf16.mxu0 %v2541
          %2839 = vmatpush2.bf16.msra.mxu0 %v2540
          %2840 = vmatprep.mubr.bf16.mxu0 %v2644
          %2841 = vmatmul.mubr.bf16.gmra.mxu0 %v2130
          %v2842 = vpop.f32.mrf.mxu0
          %v2843 = vadd.f32 %v2790, %v2842
          %v2844 = vpop.f32.mrf.mxu0
          %v2845 = vadd.f32 %v2792, %v2844
          %v2846 = vpop.f32.mrf.mxu0
          %v2847 = vadd.f32 %v2794, %v2846
          %v2848 = vpop.f32.mrf.mxu0
          %v2849 = vadd.f32 %v2796, %v2848
          %2850 = vmatprep.mubr.bf16.mxu0 %v2647
          %2851 = vmatmul.mubr.bf16.gmra.mxu0 %v2134
          %v2852 = vpop.f32.mrf.mxu0
          %v2853 = vadd.f32 %v2800, %v2852
          %v2854 = vpop.f32.mrf.mxu0
          %v2855 = vadd.f32 %v2802, %v2854
          %v2856 = vpop.f32.mrf.mxu0
          %v2857 = vadd.f32 %v2804, %v2856
          %v2858 = vpop.f32.mrf.mxu0
          %v2859 = vadd.f32 %v2806, %v2858
          %2860 = vdwg.mxu0
          %v2861 = vmax.f32 %v2737, %v2739
          %v2862 = vmax.f32 %v2741, %v2743
          %v2863 = vmax.f32 %v2747, %v2749
          %v2864 = vmax.f32 %v2751, %v2753
          %v2865 = vmax.f32 %v2843, %v2845
          %v2866 = vmax.f32 %v2847, %v2849
          %v2867 = vmax.f32 %v2853, %v2855
          %v2868 = vmax.f32 %v2857, %v2859
          %v2869 = vmax.f32 %v2861, %v2865
          %v2870 = vmax.f32 %v2862, %v2866
          %v2871 = vmax.f32 %v2863, %v2867
          %v2872 = vmax.f32 %v2864, %v2868
          %2874 = vset.pattern.permute.xlu0 0
          %2875 = vperm.xlu0 %2874, %v1507
          %v2876 = vpop.permute.xlu0 %2875
          %2879 = vset.pattern.permute.xlu0 0
          %2880 = vperm.xlu0 %2879, %v1508
          %v2881 = vpop.permute.xlu0 %2880
          %2884 = vset.pattern.permute.xlu0 0
          %2885 = vperm.xlu0 %2884, %v1509
          %v2886 = vpop.permute.xlu0 %2885
          %2889 = vset.pattern.permute.xlu0 0
          %2890 = vperm.xlu0 %2889, %v1510
          %v2891 = vpop.permute.xlu0 %2890
          %v2893 = vadd.f32 %v2869, %v2876
          %v2894 = vadd.f32 %v2870, %v2881
          %v2895 = vadd.f32 %v2871, %v2886
          %v2896 = vadd.f32 %v2872, %v2891
          %v2897 = vmax.f32 %v2893, 0.0
          %v2898 = vmax.f32 %v2894, 0.0
          %v2899 = vmax.f32 %v2895, 0.0
          %v2900 = vmax.f32 %v2896, 0.0
          %v2901 = vld [vmem:[#allocation5] sm:$0xff]
          %v2902 = vld [vmem:[#allocation5 + $0x8] sm:$0xff]
          %v2903 = vld [vmem:[#allocation5 + $0x10] sm:$0xff]
          %v2904 = vld [vmem:[#allocation5 + $0x18] sm:$0xff]
          %s2905 = smul.u32 %s1521, 32
          %s2906 = scalar_lea.vmem %s5, %s2905
          %v2907 = vld [vmem:[%s2906] sm:$0xff]
          %v2908 = vld [vmem:[%s2906 + $0x8] sm:$0xff]
          %v2909 = vld [vmem:[%s2906 + $0x10] sm:$0xff]
          %v2910 = vld [vmem:[%s2906 + $0x18] sm:$0xff]
          %v2911 = vmul.f32 %v2907, %v2897
          %v2912 = vmul.f32 %v2908, %v2898
          %v2913 = vmul.f32 %v2909, %v2899
          %v2914 = vmul.f32 %v2910, %v2900
          %v2915 = vadd.f32 %v2901, %v2911
          %v2916 = vadd.f32 %v2902, %v2912
          %v2917 = vadd.f32 %v2903, %v2913
          %v2918 = vadd.f32 %v2904, %v2914
          %2919 = vst.msk [vmem:[#allocation5] sm:$0xff] %vm1511, %v2915
          %2920 = vst.msk [vmem:[#allocation5 + $0x8] sm:$0xff] %vm1511, %v2916
          %2921 = vst.msk [vmem:[#allocation5 + $0x10] sm:$0xff] %vm1511, %v2917
          %2922 = vst.msk [vmem:[#allocation5 + $0x18] sm:$0xff] %vm1511, %v2918
          %v2923 = vld [vmem:[#allocation6] sm:$0xff]
          %v2924 = vld [vmem:[#allocation6 + $0x8] sm:$0xff]
          %v2925 = vld [vmem:[#allocation6 + $0x10] sm:$0xff]
          %v2926 = vld [vmem:[#allocation6 + $0x18] sm:$0xff]
          %s2927 = sadd.s32 %s1521, 7
          %s2928 = smul.u32 %s2927, 32
          %s2929 = scalar_lea.vmem %s5, %s2928
          %v2930 = vld [vmem:[%s2929] sm:$0xff]
          %v2931 = vld [vmem:[%s2929 + $0x8] sm:$0xff]
          %v2932 = vld [vmem:[%s2929 + $0x10] sm:$0xff]
          %v2933 = vld [vmem:[%s2929 + $0x18] sm:$0xff]
          %v2934 = vmul.f32 %v2930, %v2897
          %v2935 = vmul.f32 %v2931, %v2898
          %v2936 = vmul.f32 %v2932, %v2899
          %v2937 = vmul.f32 %v2933, %v2900
          %v2938 = vadd.f32 %v2923, %v2934
          %v2939 = vadd.f32 %v2924, %v2935
          %v2940 = vadd.f32 %v2925, %v2936
          %v2941 = vadd.f32 %v2926, %v2937
          %2942 = vst.msk [vmem:[#allocation6] sm:$0xff] %vm1511, %v2938
          %2943 = vst.msk [vmem:[#allocation6 + $0x8] sm:$0xff] %vm1511, %v2939
          %2944 = vst.msk [vmem:[#allocation6 + $0x10] sm:$0xff] %vm1511, %v2940
          %2945 = vst.msk [vmem:[#allocation6 + $0x18] sm:$0xff] %vm1511, %v2941
        $region60: #{cnn_forward.1} parent=47 // loop_footer
          %s1525 = sadd.s32 1, %s1521
        $region61: #{cnn_forward.1} parent=47 // loop_footer_branch
          %1520 = sbr.rel target = $region57
        $region62: #{cnn_forward.1} parent=47 // loop_exit
          _
        %v2946 = vld [vmem:[#allocation5] sm:$0xff]
        %v2947 = vld [vmem:[#allocation5 + $0x8] sm:$0xff]
        %v2948 = vld [vmem:[#allocation5 + $0x10] sm:$0xff]
        %v2949 = vld [vmem:[#allocation5 + $0x18] sm:$0xff]
        %v2950 = vsel %vm1511, %v2946, 0.0
        %2951 = vadd.xlane.f32.xlu0 %v2950
        %v2952 = vpop.xlane.xlu0 %2951
        %v2953 = vsel %vm1511, %v2947, 0.0
        %2954 = vadd.xlane.f32.xlu0 %v2953
        %v2955 = vpop.xlane.xlu0 %2954
        %v2956 = vsel %vm1511, %v2948, 0.0
        %2957 = vadd.xlane.f32.xlu0 %v2956
        %v2958 = vpop.xlane.xlu0 %2957
        %v2959 = vsel %vm1511, %v2949, 0.0
        %2960 = vadd.xlane.f32.xlu0 %v2959
        %v2961 = vpop.xlane.xlu0 %2960
        %v2962 = vadd.f32 %v2952, %v2955
        %v2963 = vadd.f32 %v2962, %v2958
        %v2964 = vadd.f32 %v2963, %v2961
        %v2965 = vrot.slane %v2964, 4
        %v2966 = vadd.f32 %v2964, %v2965
        %v2967 = vrot.slane %v2966, 2
        %v2968 = vadd.f32 %v2966, %v2967
        %v2969 = vrot.slane %v2968, 1
        %v2970 = vadd.f32 %v2968, %v2969
        %v2971 = vld [vmem:[#allocation6] sm:$0xff]
        %v2972 = vld [vmem:[#allocation6 + $0x8] sm:$0xff]
        %v2973 = vld [vmem:[#allocation6 + $0x10] sm:$0xff]
        %v2974 = vld [vmem:[#allocation6 + $0x18] sm:$0xff]
        %v2975 = vsel %vm1511, %v2971, 0.0
        %2976 = vadd.xlane.f32.xlu0 %v2975
        %v2977 = vpop.xlane.xlu0 %2976
        %v2978 = vsel %vm1511, %v2972, 0.0
        %2979 = vadd.xlane.f32.xlu0 %v2978
        %v2980 = vpop.xlane.xlu0 %2979
        %v2981 = vsel %vm1511, %v2973, 0.0
        %2982 = vadd.xlane.f32.xlu0 %v2981
        %v2983 = vpop.xlane.xlu0 %2982
        %v2984 = vsel %vm1511, %v2974, 0.0
        %2985 = vadd.xlane.f32.xlu0 %v2984
        %v2986 = vpop.xlane.xlu0 %2985
        %v2987 = vadd.f32 %v2977, %v2980
        %v2988 = vadd.f32 %v2987, %v2983
        %v2989 = vadd.f32 %v2988, %v2986
        %v2990 = vrot.slane %v2989, 4
        %v2991 = vadd.f32 %v2989, %v2990
        %v2992 = vrot.slane %v2991, 2
        %v2993 = vadd.f32 %v2991, %v2992
        %v2994 = vrot.slane %v2993, 1
        %v2995 = vadd.f32 %v2993, %v2994
        %v2996 = vld [vmem:[%s6] sm:$0x1]
        %v2997 = vadd.f32 %v2970, %v2996
        %vm2998 = vcmask 0
        %2999 = vst.msk [vmem:[%s270] sm:$0x1] %vm2998, %v2997
        %v3000 = vld [vmem:[%s6] sm:$0x1]
        %v3001 = vadd.f32 %v2995, %v3000
        %vm3002 = vcmask 8200
        %3003 = vst.msk [vmem:[%s270] sm:$0x1] %vm3002, %v3001
        %s3004 = sand.u32 %s181, 1
        %s3005 = scalar_lea.sflag [#allocation8], %s3004
        %s3006 = sand.u32 %s181, 1
        %s3007 = scalar_lea.vmem [#allocation7], %s3006
        // Predicated region
        $region63: #{cnn_forward.1} parent=47 // pred_check
          %p3008 = pneg %p191
        $region64: #{cnn_forward.1} parent=47 // pred_check_branch
          %3010 = sbr.rel (%p3008) target = $region66
        $region65: #{cnn_forward.1} parent=47 // pred_region
          %s3012 = ssub.s32 16, 16
          %3013 = vsyncadd %s3005, %s3012
          %s3014 = smul.addr %s21, 16
          %s3015 = scalar_lea.hbm %s7, %s3014
          %s3017 = sshll.u32 %s3007, 4
          %s3018 = int_to_ptr.vmem [resolvable:$true] %s3017
          %3020 = dma.vmem_to_hbm [thread:$0]  %s3018, 16, %s3015, %s3005
        $region66: #{cnn_forward.1} parent=47 // pred_fallthru
          _
      $region48: #{cnn_forward.1} parent=5 // pred_fallthru
        _
      %p3021 = scmp.le.s32.totalorder 2, %s16
      // Predicated region
      $region67: #{cnn_forward.1} parent=5 // pred_check
        %p3022 = pneg %p3021
      $region68: #{cnn_forward.1} parent=5 // pred_check_branch
        %3024 = sbr.rel (%p3022) target = $region70
      $region69: #{cnn_forward.1} parent=5 // pred_region
        %s3025 = ssub.s32 %s16, 2
        // Predicated region
        $region71: #{cnn_forward.1} parent=69 // pred_check
          %p3026 = pneg %p197
        $region72: #{cnn_forward.1} parent=69 // pred_check_branch
          %3028 = sbr.rel (%p3026) target = $region74
        $region73: #{cnn_forward.1} parent=69 // pred_region
          %s3029 = sand.u32 %s182, 1
          %s3030 = scalar_lea.sflag [#allocation8], %s3029
          %s3031 = sand.u32 %s182, 1
          %s3032 = scalar_lea.vmem [#allocation7], %s3031
          %3033 = dma.done %s3030, 16
        $region74: #{cnn_forward.1} parent=69 // pred_fallthru
          _
      $region70: #{cnn_forward.1} parent=5 // pred_fallthru
        _
    $region6: #{cnn_forward.1} parent=1 // loop_footer
      %s20 = sadd.s32 1, %s16
    $region7: #{cnn_forward.1} parent=1 // loop_footer_branch
      %15 = sbr.rel target = $region3
    $region8: #{cnn_forward.1} parent=1 // loop_exit
      _
    %3034 = vsyncpa [#allocation8], 1
    %s3035 = scalar_lea.sflag [#allocation8], 1
    %3036 = vsyncpa %s3035, 1

</llo_original>
